<compile_context>
chip_gen: v7x
topology: tpu7x:2x2x1
jax: 0.10.0
libtpu: 0.0.40
codegen_flags: <defaults>
</compile_context>

<pallas_src>
import functools

import numpy as np
import jax
import jax.numpy as jnp
from jax.experimental import pallas as pl
from jax.experimental.pallas import tpu as pltpu

_H = _W = 3
_POS = _H * _W  # 9 board positions


def _round_up(v, m):
    return (v + m - 1) // m * m


# --------------------------- fused Pallas kernel -----------------------------

def _resnet_fused_kernel(x_ref, w_start_ref, w_stack_ref, shifts_ref, w_lin_ref,
                         o_ref, *, num_blocks):
    """Entire ResNet forward on VMEM-resident operands (one batch tile).

    x_ref:      (TILE_B, 128)      NCHW-flattened input, zero-padded lanes (f32)
    w_start:    (128, 384)         start conv as dense matmul, bf16 (BN folded)
    w_stack:    (2*nb+1, 384, 384) block convs + fused policy/value head conv, bf16
    shifts:     (8, 384)           f32 rows: start, blk shifts..., heads, linear bias
    w_lin:      (384, 128)         block-diag policy/value Linear weights, bf16
    o_ref:      (TILE_B, 128)      policy logits in cols [0:9), raw value in col 9
    """
    f32 = jnp.float32
    bf16 = jnp.bfloat16

    # startBlock: conv + BN + ReLU (BN scale pre-folded into weight columns).
    x = jnp.maximum(
        jnp.dot(x_ref[...].astype(bf16), w_start_ref[...],
                preferred_element_type=f32) + shifts_ref[0:1, :], 0.0)

    # backBone: ResBlocks  (relu(bn2(conv2(relu(bn1(conv1(x))))) + x))
    for i in range(num_blocks):
        residual = x
        h = jnp.maximum(
            jnp.dot(x.astype(bf16), w_stack_ref[2 * i],
                    preferred_element_type=f32)
            + shifts_ref[2 * i + 1:2 * i + 2, :], 0.0)
        h = (jnp.dot(h.astype(bf16), w_stack_ref[2 * i + 1],
                     preferred_element_type=f32)
             + shifts_ref[2 * i + 2:2 * i + 3, :])
        x = jnp.maximum(h + residual, 0.0)

    # Both head convs fused in one matmul (policy lanes [0:288), value [288:315)).
    hsr = 2 * num_blocks + 1
    heads = jnp.maximum(
        jnp.dot(x.astype(bf16), w_stack_ref[2 * num_blocks],
                preferred_element_type=f32)
        + shifts_ref[hsr:hsr + 1, :], 0.0)

    # Both head Linears as one block-diagonal matmul; raw logits out (tanh on
    # the single value column happens in the wrapper).
    out_w = o_ref.shape[-1]
    o_ref[...] = (jnp.dot(heads.astype(bf16), w_lin_ref[...],
                          preferred_element_type=f32)
                  + shifts_ref[hsr + 1:hsr + 2, :out_w])


# --------------------------- host-side weight packing ------------------------

def _conv3x3_matmul_weight(w_hwio, scale):
    """3x3 / pad=1 conv on a 3x3 board as a dense (9*Cin, 9*Cout) matrix
    acting on position-major / channel-minor flattened boards.  The BN scale
    is folded into the output (Cout) columns."""
    w = np.asarray(w_hwio, np.float32) * np.asarray(scale, np.float32)
    cin, cout = w.shape[2], w.shape[3]
    m = np.zeros((_POS, cin, _POS, cout), np.float32)
    for py in range(_H):
        for px in range(_W):
            for qy in range(_H):
                for qx in range(_W):
                    dy, dx = qy - py + 1, qx - px + 1
                    if 0 <= dy < 3 and 0 <= dx < 3:
                        m[qy * _W + qx, :, py * _W + px, :] = w[dy, dx]
    return m.reshape(_POS * cin, _POS * cout)


def _hwc_from_chw_rows(w, c):
    """Permute rows from NCHW-flatten order (c*9 + p) to position-major (p*C + c)."""
    perm = np.array([(r % c) * _POS + (r // c) for r in range(_POS * c)])
    return np.asarray(w, np.float32)[perm]


def _chw_from_hwc_rows(w, c):
    """Permute rows from position-major (p*C + c) to NCHW-flatten order (c*9 + p)."""
    perm = np.array([(r % _POS) * c + (r // _POS) for r in range(_POS * c)])
    return np.asarray(w, np.float32)[perm]


def pack_params(params, num_hidden, action_size):
    """Pack the per-layer conv/BN/linear parameters into 4 lane-dense,
    VMEM-resident operands for the fused kernel (matmul weights in bf16)."""
    nblk = len(params["blocks"])
    cph = _POS * num_hidden                 # hidden lanes actually used (288)
    cp = _round_up(cph, 128)                # padded hidden width (384) - minimal
    cpp = _POS * 32                         # policy-conv lanes (288)
    cv = _POS * 3                           # value-conv lanes (27)
    kin = _round_up(_POS * 3, 128)          # padded input width (128)
    outp = 128                              # padded output width
    assert cpp + cv <= cp and action_size + 1 <= outp

    def conv_shift_row(shift_vec):
        row = np.zeros((cp,), np.float32)
        sv = np.asarray(shift_vec, np.float32)
        row[:_POS * sv.shape[0]] = np.tile(sv, _POS)
        return row

    # startBlock conv: rows permuted to NCHW-flatten order so the raw
    # x.reshape(B, 27) is consumed directly (no transpose in the forward).
    w, sc, sh = params["start"]
    w_start = np.zeros((kin, cp), np.float32)
    w_start[:_POS * 3, :cph] = _chw_from_hwc_rows(_conv3x3_matmul_weight(w, sc), 3)
    shift_rows = [conv_shift_row(sh)]

    # ResBlock convs + fused head conv, stacked into one VMEM operand.
    w_stack = np.zeros((2 * nblk + 1, cp, cp), np.float32)
    for i, (c1, c2) in enumerate(params["blocks"]):
        for j, (wc, scc, shc) in enumerate((c1, c2)):
            w_stack[2 * i + j, :cph, :cph] = _conv3x3_matmul_weight(wc, scc)
            shift_rows.append(conv_shift_row(shc))

    wp, scp, shp = params["policy_conv"]
    wv, scv, shv = params["value_conv"]
    w_stack[2 * nblk, :cph, :cpp] = _conv3x3_matmul_weight(wp, scp)
    w_stack[2 * nblk, :cph, cpp:cpp + cv] = _conv3x3_matmul_weight(wv, scv)
    hrow = np.zeros((cp,), np.float32)
    hrow[:cpp] = np.tile(np.asarray(shp, np.float32), _POS)
    hrow[cpp:cpp + cv] = np.tile(np.asarray(shv, np.float32), _POS)
    shift_rows.append(hrow)

    # Both head Linears as one block-diagonal matmul; rows permuted so the
    # NCHW Flatten order of the PyTorch heads is reproduced exactly.
    w_lin = np.zeros((cp, outp), np.float32)
    w_lin[:cpp, :action_size] = _hwc_from_chw_rows(params["policy_w"], 32)
    w_lin[cpp:cpp + cv, action_size:action_size + 1] = _hwc_from_chw_rows(
        params["value_w"], 3)
    lrow = np.zeros((cp,), np.float32)
    lrow[:action_size] = np.asarray(params["policy_b"], np.float32)
    lrow[action_size] = float(np.asarray(params["value_b"])[0])
    shift_rows.append(lrow)

    shifts = np.stack(shift_rows)                        # (2*nblk + 3, cp)
    pad = (-shifts.shape[0]) % 8
    if pad:
        shifts = np.concatenate([shifts, np.zeros((pad, cp), np.float32)], axis=0)

    # Matmul weights in bf16 (f32 accumulation inside the kernel); shifts in f32.
    return {
        "w_start": jnp.asarray(w_start, dtype=jnp.bfloat16),
        "w_stack": jnp.asarray(w_stack, dtype=jnp.bfloat16),
        "shifts": jnp.asarray(shifts, dtype=jnp.float32),
        "w_lin": jnp.asarray(w_lin, dtype=jnp.bfloat16),
    }


# --------------------------- forward ------------------------------------------

def resnet_forward(packed, x_nchw, *, num_blocks, action_size, tile_b=None):
    """x_nchw: (B, 3, 3, 3) float32 NCHW.  Returns (policy_logits, value)."""
    b = x_nchw.shape[0]
    kin = packed["w_start"].shape[0]
    outp = packed["w_lin"].shape[1]

    # Batch tile: multiple of 8 sublanes; 256 saturates the v6e/v7x MXU
    # (pass tile_b=128 on v5e's 4x128x128 MXU).
    if tile_b is None:
        tile_b = min(_round_up(b, 8), 256)
    bp = _round_up(b, tile_b)

    x_flat = x_nchw.astype(jnp.float32).reshape(b, -1)       # NCHW flatten
    x_flat = jnp.pad(x_flat, ((0, bp - b), (0, kin - x_flat.shape[1])))

    kernel = functools.partial(_resnet_fused_kernel, num_blocks=num_blocks)
    out = pl.pallas_call(
        kernel,
        out_shape=jax.ShapeDtypeStruct((bp, outp), jnp.float32),
        grid=(bp // tile_b,),
        in_specs=[
            # Only the batch slab is pipelined per grid step.
            pl.BlockSpec((tile_b, kin), lambda i: (i, 0)),
            # Weights: whole-array blocks with constant index_map -> fetched
            # once, never re-DMA'd across batch tiles.
            pl.BlockSpec(packed["w_start"].shape, lambda i: (0, 0)),
            pl.BlockSpec(packed["w_stack"].shape, lambda i: (0, 0, 0)),
            pl.BlockSpec(packed["shifts"].shape, lambda i: (0, 0)),
            pl.BlockSpec(packed["w_lin"].shape, lambda i: (0, 0)),
        ],
        out_specs=pl.BlockSpec((tile_b, outp), lambda i: (i, 0)),
        compiler_params=pltpu.CompilerParams(
            dimension_semantics=("parallel",)),
    )(x_flat, packed["w_start"], packed["w_stack"], packed["shifts"],
      packed["w_lin"])

    policy = out[:b, :action_size]
    # tanh only on the single value column (kept out of the kernel epilogue).
    value = jnp.tanh(out[:b, action_size:action_size + 1])
    return policy, value


# --------------------------- parameters ---------------------------------------

def _fold_bn(conv_bias, gamma, beta, mean, var, eps=1e-5):
    scale = gamma / jnp.sqrt(var + eps)
    shift = (conv_bias - mean) * scale + beta
    return scale, shift


def _conv_bn_params(key, cin, cout):
    kw, kb, kg, kbeta, km, kv = jax.random.split(key, 6)
    w = jax.random.normal(kw, (3, 3, cin, cout), jnp.float32) * 0.1      # HWIO
    b = jax.random.normal(kb, (cout,), jnp.float32) * 0.05               # conv bias
    gamma = 1.0 + 0.1 * jax.random.normal(kg, (cout,), jnp.float32)
    beta = 0.05 * jax.random.normal(kbeta, (cout,), jnp.float32)
    mean = 0.05 * jax.random.normal(km, (cout,), jnp.float32)
    var = 1.0 + 0.1 * jax.random.uniform(kv, (cout,), jnp.float32)
    scale, shift = _fold_bn(b, gamma, beta, mean, var)
    return (w, scale, shift)


def init_resnet_params(key, num_res_blocks, num_hidden, rows, cols, action_size):
    keys = jax.random.split(key, 7 + 2 * num_res_blocks)
    it = iter(keys)
    params = {}
    params["start"] = _conv_bn_params(next(it), 3, num_hidden)
    params["blocks"] = []
    for _ in range(num_res_blocks):
        c1 = _conv_bn_params(next(it), num_hidden, num_hidden)
        c2 = _conv_bn_params(next(it), num_hidden, num_hidden)
        params["blocks"].append((c1, c2))
    params["policy_conv"] = _conv_bn_params(next(it), num_hidden, 32)
    params["value_conv"] = _conv_bn_params(next(it), num_hidden, 3)
    # Linear weights stored in PyTorch nn.Flatten (NCHW, i.e. c*9+p) row order.
    params["policy_w"] = jax.random.normal(
        next(it), (32 * rows * cols, action_size), jnp.float32) * 0.05
    params["policy_b"] = jax.random.normal(next(it), (action_size,), jnp.float32) * 0.01
    params["value_w"] = jax.random.normal(next(it), (3 * rows * cols, 1), jnp.float32) * 0.05
    params["value_b"] = jax.random.normal(next(it), (1,), jnp.float32) * 0.01
    return params


# --------------------------- pure-JAX reference (sanity check) -----------------

def _reference_forward(params, x_nchw):
    hp = jax.lax.Precision.HIGHEST

    def conv_bn_relu(x, w, scale, shift, residual=None):
        B, H, W, cin = x.shape
        cout = w.shape[-1]
        xpad = jnp.pad(x, ((0, 0), (1, 1), (1, 1), (0, 0)))
        patches = jnp.concatenate(
            [xpad[:, dy:dy + H, dx:dx + W, :] for dy in range(3) for dx in range(3)],
            axis=-1)
        y = jnp.dot(patches.reshape(B * H * W, 9 * cin), w.reshape(9 * cin, cout),
                    precision=hp)
        y = y * scale + shift
        if residual is not None:
            y = y + residual.reshape(B * H * W, cout)
        return jnp.maximum(y, 0.0).reshape(B, H, W, cout)

    x = jnp.transpose(x_nchw, (0, 2, 3, 1)).astype(jnp.float32)
    B = x.shape[0]
    x = conv_bn_relu(x, *params["start"])
    for c1, c2 in params["blocks"]:
        r = x
        x = conv_bn_relu(x, *c1)
        x = conv_bn_relu(x, *c2, residual=r)
    p = conv_bn_relu(x, *params["policy_conv"])
    p_flat = jnp.transpose(p, (0, 3, 1, 2)).reshape(B, -1)
    policy = jnp.dot(p_flat, params["policy_w"], precision=hp) + params["policy_b"]
    v = conv_bn_relu(x, *params["value_conv"])
    v_flat = jnp.transpose(v, (0, 3, 1, 2)).reshape(B, -1)
    value = jnp.tanh(jnp.dot(v_flat, params["value_w"], precision=hp) + params["value_b"])
    return policy, value


# --------------------------- main ---------------------------------------------

if __name__ == "__main__":
    # TicTacToe: 3x3 board, 3 input planes, action_size = 9.
    B, rows, cols = 2, 3, 3
    num_res_blocks, num_hidden = 2, 32
    action_size = rows * cols

    key = jax.random.PRNGKey(0)
    pkey, xkey, xkey2 = jax.random.split(key, 3)
    params = init_resnet_params(pkey, num_res_blocks, num_hidden, rows, cols, action_size)
    packed = pack_params(params, num_hidden, action_size)
    x = jax.random.normal(xkey, (B, 3, rows, cols), jnp.float32)   # NCHW

    fwd = jax.jit(functools.partial(resnet_forward,
                                    num_blocks=num_res_blocks,
                                    action_size=action_size))
    policy, value = fwd(packed, x)
    jax.block_until_ready((policy, value))

    # Sanity check against a pure-JAX f32 reference of the same module
    # (bf16 matmul operands -> slightly looser tolerance).
    p_ref, v_ref = _reference_forward(params, x)
    np.testing.assert_allclose(np.asarray(policy), np.asarray(p_ref),
                               rtol=5e-2, atol=5e-2)
    np.testing.assert_allclose(np.asarray(value), np.asarray(v_ref),
                               rtol=5e-2, atol=5e-2)
    assert policy.shape == (B, action_size) and policy.dtype == jnp.float32
    assert value.shape == (B, 1) and value.dtype == jnp.float32

    # Exercise the batch grid (multiple grid steps, constant-index weight specs).
    B2, tile_b2 = 48, 16
    x2 = jax.random.normal(xkey2, (B2, 3, rows, cols), jnp.float32)
    fwd2 = jax.jit(functools.partial(resnet_forward,
                                     num_blocks=num_res_blocks,
                                     action_size=action_size,
                                     tile_b=tile_b2))
    policy2, value2 = fwd2(packed, x2)
    jax.block_until_ready((policy2, value2))
    p_ref2, v_ref2 = _reference_forward(params, x2)
    np.testing.assert_allclose(np.asarray(policy2), np.asarray(p_ref2),
                               rtol=5e-2, atol=5e-2)
    np.testing.assert_allclose(np.asarray(value2), np.asarray(v_ref2),
                               rtol=5e-2, atol=5e-2)
    assert policy2.shape == (B2, action_size) and value2.shape == (B2, 1)

    print("KERNEL_OK")
</pallas_src>

<mosaic_0001>
module attributes {stable_mosaic.version = 11 : i64} {
  func.func @_resnet_fused_kernel(%arg0: i32, %arg1: memref<8x128xf32, #tpu.memory_space<vmem>>, %arg2: memref<128x384xbf16, #tpu.memory_space<vmem>>, %arg3: memref<5x384x384xbf16, #tpu.memory_space<vmem>>, %arg4: memref<8x384xf32, #tpu.memory_space<vmem>>, %arg5: memref<384x128xbf16, #tpu.memory_space<vmem>>, %arg6: memref<8x128xf32, #tpu.memory_space<vmem>>) attributes {dimension_semantics = [#tpu.dimension_semantics<parallel>], iteration_bounds = array<i64: 1>, scalar_prefetch = 0 : i64, scratch_operands = 0 : i64, tpu.core_type = #tpu.core_type<tc>, window_params = [{transform_indices = @transform_0, window_bounds = array<i64: 8, 128>}, {pipeline_mode = #tpu.pipeline_mode<synchronous>, transform_indices = @transform_1, window_bounds = array<i64: 128, 384>}, {pipeline_mode = #tpu.pipeline_mode<synchronous>, transform_indices = @transform_2, window_bounds = array<i64: 5, 384, 384>}, {pipeline_mode = #tpu.pipeline_mode<synchronous>, transform_indices = @transform_3, window_bounds = array<i64: 8, 384>}, {pipeline_mode = #tpu.pipeline_mode<synchronous>, transform_indices = @transform_4, window_bounds = array<i64: 384, 128>}, {transform_indices = @transform_5, window_bounds = array<i64: 8, 128>}]} {
    %c0 = arith.constant 0 : index
    %c0_0 = arith.constant 0 : index
    %0 = vector.load %arg1[%c0, %c0_0] : memref<8x128xf32, #tpu.memory_space<vmem>>, vector<8x128xf32>
    %1 = arith.truncf %0 : vector<8x128xf32> to vector<8x128xbf16>
    %c0_1 = arith.constant 0 : index
    %c0_2 = arith.constant 0 : index
    %2 = vector.load %arg2[%c0_1, %c0_2] : memref<128x384xbf16, #tpu.memory_space<vmem>>, vector<128x384xbf16>
    %cst = arith.constant dense<0.000000e+00> : vector<8x384xf32>
    %3 = tpu.matmul %1, %2, %cst {dimension_numbers = #tpu.dot_dimension_numbers<[1], [0], [0], [1], [0, 0, 1, 1], [], []>} : vector<8x128xbf16>, vector<128x384xbf16>, vector<8x384xf32> -> vector<8x384xf32>
    %c0_3 = arith.constant 0 : index
    %c0_4 = arith.constant 0 : index
    %4 = vector.load %arg4[%c0_3, %c0_4] : memref<8x384xf32, #tpu.memory_space<vmem>>, vector<1x384xf32>
    %5 = vector.broadcast %4 : vector<1x384xf32> to vector<8x384xf32>
    %6 = arith.addf %3, %5 : vector<8x384xf32>
    %cst_5 = arith.constant 0.000000e+00 : f32
    %7 = vector.broadcast %cst_5 : f32 to vector<8x384xf32>
    %8 = arith.maximumf %6, %7 : vector<8x384xf32>
    %9 = arith.truncf %8 : vector<8x384xf32> to vector<8x384xbf16>
    %c0_6 = arith.constant 0 : index
    %c0_7 = arith.constant 0 : index
    %c0_8 = arith.constant 0 : index
    %10 = vector.load %arg3[%c0_6, %c0_7, %c0_8] : memref<5x384x384xbf16, #tpu.memory_space<vmem>>, vector<1x384x384xbf16>
    %11 = vector.shape_cast %10 : vector<1x384x384xbf16> to vector<384x384xbf16>
    %cst_9 = arith.constant dense<0.000000e+00> : vector<8x384xf32>
    %12 = tpu.matmul %9, %11, %cst_9 {dimension_numbers = #tpu.dot_dimension_numbers<[1], [0], [0], [1], [0, 0, 1, 1], [], []>} : vector<8x384xbf16>, vector<384x384xbf16>, vector<8x384xf32> -> vector<8x384xf32>
    %c1 = arith.constant 1 : index
    %c0_10 = arith.constant 0 : index
    %13 = vector.load %arg4[%c1, %c0_10] : memref<8x384xf32, #tpu.memory_space<vmem>>, vector<1x384xf32>
    %14 = vector.broadcast %13 : vector<1x384xf32> to vector<8x384xf32>
    %15 = arith.addf %12, %14 : vector<8x384xf32>
    %cst_11 = arith.constant 0.000000e+00 : f32
    %16 = vector.broadcast %cst_11 : f32 to vector<8x384xf32>
    %17 = arith.maximumf %15, %16 : vector<8x384xf32>
    %18 = arith.truncf %17 : vector<8x384xf32> to vector<8x384xbf16>
    %c1_12 = arith.constant 1 : index
    %c0_13 = arith.constant 0 : index
    %c0_14 = arith.constant 0 : index
    %19 = vector.load %arg3[%c1_12, %c0_13, %c0_14] : memref<5x384x384xbf16, #tpu.memory_space<vmem>>, vector<1x384x384xbf16>
    %20 = vector.shape_cast %19 : vector<1x384x384xbf16> to vector<384x384xbf16>
    %cst_15 = arith.constant dense<0.000000e+00> : vector<8x384xf32>
    %21 = tpu.matmul %18, %20, %cst_15 {dimension_numbers = #tpu.dot_dimension_numbers<[1], [0], [0], [1], [0, 0, 1, 1], [], []>} : vector<8x384xbf16>, vector<384x384xbf16>, vector<8x384xf32> -> vector<8x384xf32>
    %c2 = arith.constant 2 : index
    %c0_16 = arith.constant 0 : index
    %22 = vector.load %arg4[%c2, %c0_16] : memref<8x384xf32, #tpu.memory_space<vmem>>, vector<1x384xf32>
    %23 = vector.broadcast %22 : vector<1x384xf32> to vector<8x384xf32>
    %24 = arith.addf %21, %23 : vector<8x384xf32>
    %25 = arith.addf %24, %8 : vector<8x384xf32>
    %cst_17 = arith.constant 0.000000e+00 : f32
    %26 = vector.broadcast %cst_17 : f32 to vector<8x384xf32>
    %27 = arith.maximumf %25, %26 : vector<8x384xf32>
    %28 = arith.truncf %27 : vector<8x384xf32> to vector<8x384xbf16>
    %c2_18 = arith.constant 2 : index
    %c0_19 = arith.constant 0 : index
    %c0_20 = arith.constant 0 : index
    %29 = vector.load %arg3[%c2_18, %c0_19, %c0_20] : memref<5x384x384xbf16, #tpu.memory_space<vmem>>, vector<1x384x384xbf16>
    %30 = vector.shape_cast %29 : vector<1x384x384xbf16> to vector<384x384xbf16>
    %cst_21 = arith.constant dense<0.000000e+00> : vector<8x384xf32>
    %31 = tpu.matmul %28, %30, %cst_21 {dimension_numbers = #tpu.dot_dimension_numbers<[1], [0], [0], [1], [0, 0, 1, 1], [], []>} : vector<8x384xbf16>, vector<384x384xbf16>, vector<8x384xf32> -> vector<8x384xf32>
    %c3 = arith.constant 3 : index
    %c0_22 = arith.constant 0 : index
    %32 = vector.load %arg4[%c3, %c0_22] : memref<8x384xf32, #tpu.memory_space<vmem>>, vector<1x384xf32>
    %33 = vector.broadcast %32 : vector<1x384xf32> to vector<8x384xf32>
    %34 = arith.addf %31, %33 : vector<8x384xf32>
    %cst_23 = arith.constant 0.000000e+00 : f32
    %35 = vector.broadcast %cst_23 : f32 to vector<8x384xf32>
    %36 = arith.maximumf %34, %35 : vector<8x384xf32>
    %37 = arith.truncf %36 : vector<8x384xf32> to vector<8x384xbf16>
    %c3_24 = arith.constant 3 : index
    %c0_25 = arith.constant 0 : index
    %c0_26 = arith.constant 0 : index
    %38 = vector.load %arg3[%c3_24, %c0_25, %c0_26] : memref<5x384x384xbf16, #tpu.memory_space<vmem>>, vector<1x384x384xbf16>
    %39 = vector.shape_cast %38 : vector<1x384x384xbf16> to vector<384x384xbf16>
    %cst_27 = arith.constant dense<0.000000e+00> : vector<8x384xf32>
    %40 = tpu.matmul %37, %39, %cst_27 {dimension_numbers = #tpu.dot_dimension_numbers<[1], [0], [0], [1], [0, 0, 1, 1], [], []>} : vector<8x384xbf16>, vector<384x384xbf16>, vector<8x384xf32> -> vector<8x384xf32>
    %c4 = arith.constant 4 : index
    %c0_28 = arith.constant 0 : index
    %41 = vector.load %arg4[%c4, %c0_28] : memref<8x384xf32, #tpu.memory_space<vmem>>, vector<1x384xf32>
    %42 = vector.broadcast %41 : vector<1x384xf32> to vector<8x384xf32>
    %43 = arith.addf %40, %42 : vector<8x384xf32>
    %44 = arith.addf %43, %27 : vector<8x384xf32>
    %cst_29 = arith.constant 0.000000e+00 : f32
    %45 = vector.broadcast %cst_29 : f32 to vector<8x384xf32>
    %46 = arith.maximumf %44, %45 : vector<8x384xf32>
    %47 = arith.truncf %46 : vector<8x384xf32> to vector<8x384xbf16>
    %c4_30 = arith.constant 4 : index
    %c0_31 = arith.constant 0 : index
    %c0_32 = arith.constant 0 : index
    %48 = vector.load %arg3[%c4_30, %c0_31, %c0_32] : memref<5x384x384xbf16, #tpu.memory_space<vmem>>, vector<1x384x384xbf16>
    %49 = vector.shape_cast %48 : vector<1x384x384xbf16> to vector<384x384xbf16>
    %cst_33 = arith.constant dense<0.000000e+00> : vector<8x384xf32>
    %50 = tpu.matmul %47, %49, %cst_33 {dimension_numbers = #tpu.dot_dimension_numbers<[1], [0], [0], [1], [0, 0, 1, 1], [], []>} : vector<8x384xbf16>, vector<384x384xbf16>, vector<8x384xf32> -> vector<8x384xf32>
    %c5 = arith.constant 5 : index
    %c0_34 = arith.constant 0 : index
    %51 = vector.load %arg4[%c5, %c0_34] : memref<8x384xf32, #tpu.memory_space<vmem>>, vector<1x384xf32>
    %52 = vector.broadcast %51 : vector<1x384xf32> to vector<8x384xf32>
    %53 = arith.addf %50, %52 : vector<8x384xf32>
    %cst_35 = arith.constant 0.000000e+00 : f32
    %54 = vector.broadcast %cst_35 : f32 to vector<8x384xf32>
    %55 = arith.maximumf %53, %54 : vector<8x384xf32>
    %56 = arith.truncf %55 : vector<8x384xf32> to vector<8x384xbf16>
    %c0_36 = arith.constant 0 : index
    %c0_37 = arith.constant 0 : index
    %57 = vector.load %arg5[%c0_36, %c0_37] : memref<384x128xbf16, #tpu.memory_space<vmem>>, vector<384x128xbf16>
    %cst_38 = arith.constant dense<0.000000e+00> : vector<8x128xf32>
    %58 = tpu.matmul %56, %57, %cst_38 {dimension_numbers = #tpu.dot_dimension_numbers<[1], [0], [0], [1], [0, 0, 1, 1], [], []>} : vector<8x384xbf16>, vector<384x128xbf16>, vector<8x128xf32> -> vector<8x128xf32>
    %c6 = arith.constant 6 : index
    %c0_39 = arith.constant 0 : index
    %59 = vector.load %arg4[%c6, %c0_39] : memref<8x384xf32, #tpu.memory_space<vmem>>, vector<1x128xf32>
    %60 = vector.broadcast %59 : vector<1x128xf32> to vector<8x128xf32>
    %61 = arith.addf %58, %60 : vector<8x128xf32>
    %c0_40 = arith.constant 0 : index
    %c0_41 = arith.constant 0 : index
    %62 = vector.load %arg6[%c0_40, %c0_41] : memref<8x128xf32, #tpu.memory_space<vmem>>, vector<8x128xf32>
    tpu.vector_store %arg6[%c0_40, %c0_41], %61 {strides = array<i32>} : memref<8x128xf32, #tpu.memory_space<vmem>>, vector<8x128xf32>,
    return
  }
  func.func @transform_0(%arg0: i32) -> (i32, i32) {
    %c0_i32 = arith.constant 0 : i32
    %c0_i32_0 = arith.constant 0 : i32
    return %arg0, %c0_i32 : i32, i32
  }
  func.func @transform_1(%arg0: i32) -> (i32, i32) {
    %c0_i32 = arith.constant 0 : i32
    %c0_i32_0 = arith.constant 0 : i32
    %c0_i32_1 = arith.constant 0 : i32
    return %c0_i32, %c0_i32_0 : i32, i32
  }
  func.func @transform_2(%arg0: i32) -> (i32, i32, i32) {
    %c0_i32 = arith.constant 0 : i32
    %c0_i32_0 = arith.constant 0 : i32
    %c0_i32_1 = arith.constant 0 : i32
    %c0_i32_2 = arith.constant 0 : i32
    return %c0_i32, %c0_i32_0, %c0_i32_1 : i32, i32, i32
  }
  func.func @transform_3(%arg0: i32) -> (i32, i32) {
    %c0_i32 = arith.constant 0 : i32
    %c0_i32_0 = arith.constant 0 : i32
    %c0_i32_1 = arith.constant 0 : i32
    return %c0_i32, %c0_i32_0 : i32, i32
  }
  func.func @transform_4(%arg0: i32) -> (i32, i32) {
    %c0_i32 = arith.constant 0 : i32
    %c0_i32_0 = arith.constant 0 : i32
    %c0_i32_1 = arith.constant 0 : i32
    return %c0_i32, %c0_i32_0 : i32, i32
  }
  func.func @transform_5(%arg0: i32) -> (i32, i32) {
    %c0_i32 = arith.constant 0 : i32
    %c0_i32_0 = arith.constant 0 : i32
    return %arg0, %c0_i32 : i32, i32
  }
}

</mosaic_0001>

<llo_original>
// kernel: resnet_forward.1
$region0: #{resnet_forward.1}
  #allocation0 [shape = 'u32[]', space=smem, size = 0x4, offset = 0x4, fixed_abs, tag = 'smem constant byte address 0x4 - core index']
  #allocation1 [shape = 'u32[144,128]{1,0:T(1,128)}', space=vmem, size = 0x12000, scoped, tag = 'internal scratch']
  %s0 = inlined_call_operand.vmem [shape: f32[8,128], index: 0, kind: input, shape index: {}]
  %s1 = inlined_call_operand.hbm [shape: bf16[128,384], index: 1, kind: input, shape index: {}]
  %s2 = inlined_call_operand.hbm [shape: bf16[5,384,384], index: 2, kind: input, shape index: {}]
  %s3 = inlined_call_operand.hbm [shape: f32[8,384], index: 3, kind: input, shape index: {}]
  %s4 = inlined_call_operand.hbm [shape: bf16[384,128], index: 4, kind: input, shape index: {}]
  %s5 = inlined_call_operand.vmem [shape: f32[8,128], index: 5, kind: output, shape index: {}]
  %s6 = sld [smem:[#allocation0]]
  $region46: #{resnet_forward.1} parent=0
    _
  %s8 = ssub.s32 1, %s6
  %s9 = scalar_select 0, %s8, %s6
  $region1: #{resnet_forward.1} parent=0
    #allocation2 [shape = 'u8[98304]{0}', space=vmem, size = 0x18000, scoped, tag = 'input window, operand 1, single buffered']
    #allocation3 [shape = 's32[1]{0}', space=sflag, size = 0x4, scoped, tag = 'scoped memory for resnet_forward.1']
    #allocation4 [shape = 'u8[1474560]{0}', space=vmem, size = 0x168000, scoped, tag = 'input window, operand 2, single buffered']
    #allocation5 [shape = 's32[1]{0}', space=sflag, size = 0x4, scoped, tag = 'scoped memory for resnet_forward.1']
    #allocation6 [shape = 'u8[12288]{0}', space=vmem, size = 0x3000, scoped, tag = 'input window, operand 3, single buffered']
    #allocation7 [shape = 'u8[98304]{0}', space=vmem, size = 0x18000, scoped, tag = 'input window, operand 4, single buffered']
    #allocation8 [shape = 's32[1]{0}', space=sflag, size = 0x4, scoped, tag = 'scoped memory for resnet_forward.1']
    %10 = vsyncpa [#allocation3], 0
    %11 = vsyncpa [#allocation5], 0
    %12 = vsyncpa [#allocation8], 0
    // Predicated region
    $region2: #{resnet_forward.1} parent=1 // pred_check
      _
    $region3: #{resnet_forward.1} parent=1 // pred_check_branch
      %14 = sbr.rel (0) target = $region5
    $region4: #{resnet_forward.1} parent=1 // pred_region
      _
    $region5: #{resnet_forward.1} parent=1 // pred_fallthru
      _
    // Predicated region
    $region6: #{resnet_forward.1} parent=1 // pred_check
      _
    $region7: #{resnet_forward.1} parent=1 // pred_check_branch
      %16 = sbr.rel (0) target = $region9
    $region8: #{resnet_forward.1} parent=1 // pred_region
      %s18 = ssub.s32 3072, 3072
      %19 = vsyncadd [#allocation3], %s18
      %s20 = sshll.u32 [#allocation2], 4
      %s21 = int_to_ptr.vmem [resolvable:$true] %s20
      %26 = dma.hbm_to_vmem [thread:$0]  %s1, 3072, %s21, [#allocation3], 192, 192, 12
    $region9: #{resnet_forward.1} parent=1 // pred_fallthru
      _
    // Predicated region
    $region10: #{resnet_forward.1} parent=1 // pred_check
      _
    $region11: #{resnet_forward.1} parent=1 // pred_check_branch
      %28 = sbr.rel (0) target = $region13
    $region12: #{resnet_forward.1} parent=1 // pred_region
      %s30 = ssub.s32 46080, 46080
      %31 = vsyncadd [#allocation5], %s30
      %s32 = sshll.u32 [#allocation4], 4
      %s33 = int_to_ptr.vmem [resolvable:$true] %s32
      %38 = dma.hbm_to_vmem [thread:$0]  %s2, 46080, %s33, [#allocation5], 192, 192, 12
    $region13: #{resnet_forward.1} parent=1 // pred_fallthru
      _
    // Predicated region
    $region14: #{resnet_forward.1} parent=1 // pred_check
      _
    $region15: #{resnet_forward.1} parent=1 // pred_check_branch
      %40 = sbr.rel (0) target = $region17
    $region16: #{resnet_forward.1} parent=1 // pred_region
      %s42 = ssub.s32 384, 384
      %43 = vsyncadd [#allocation5], %s42
      %s45 = sshll.u32 [#allocation6], 4
      %s46 = int_to_ptr.vmem [resolvable:$true] %s45
      %48 = dma.hbm_to_vmem [thread:$0]  %s3, 384, %s46, [#allocation5]
    $region17: #{resnet_forward.1} parent=1 // pred_fallthru
      _
    // Predicated region
    $region18: #{resnet_forward.1} parent=1 // pred_check
      _
    $region19: #{resnet_forward.1} parent=1 // pred_check_branch
      %50 = sbr.rel (0) target = $region21
    $region20: #{resnet_forward.1} parent=1 // pred_region
      %s52 = ssub.s32 3072, 3072
      %53 = vsyncadd [#allocation8], %s52
      %s54 = sshll.u32 [#allocation7], 4
      %s55 = int_to_ptr.vmem [resolvable:$true] %s54
      %60 = dma.hbm_to_vmem [thread:$0]  %s4, 3072, %s55, [#allocation8], 64, 64, 4
    $region21: #{resnet_forward.1} parent=1 // pred_fallthru
      _
    // Predicated region
    $region22: #{resnet_forward.1} parent=1 // pred_check
      _
    $region23: #{resnet_forward.1} parent=1 // pred_check_branch
      %62 = sbr.rel (0) target = $region25
    $region24: #{resnet_forward.1} parent=1 // pred_region
      %63 = dma.done [#allocation3], 3072
    $region25: #{resnet_forward.1} parent=1 // pred_fallthru
      _
    // Predicated region
    $region26: #{resnet_forward.1} parent=1 // pred_check
      _
    $region27: #{resnet_forward.1} parent=1 // pred_check_branch
      %65 = sbr.rel (0) target = $region29
    $region28: #{resnet_forward.1} parent=1 // pred_region
      %66 = dma.done [#allocation5], 46080
    $region29: #{resnet_forward.1} parent=1 // pred_fallthru
      _
    // Predicated region
    $region30: #{resnet_forward.1} parent=1 // pred_check
      _
    $region31: #{resnet_forward.1} parent=1 // pred_check_branch
      %68 = sbr.rel (0) target = $region33
    $region32: #{resnet_forward.1} parent=1 // pred_region
      %69 = dma.done [#allocation5], 384
    $region33: #{resnet_forward.1} parent=1 // pred_fallthru
      _
    // Predicated region
    $region34: #{resnet_forward.1} parent=1 // pred_check
      _
    $region35: #{resnet_forward.1} parent=1 // pred_check_branch
      %71 = sbr.rel (0) target = $region37
    $region36: #{resnet_forward.1} parent=1 // pred_region
      %72 = dma.done [#allocation8], 3072
    $region37: #{resnet_forward.1} parent=1 // pred_fallthru
      _
    %v74 = vld [vmem:[%s0] sm:$0xff]
    %v75 = vpack.c.bf16 %v74, %v74
    %v76 = vld [vmem:[#allocation2] sm:$0xff]
    %v77 = vld [vmem:[#allocation2 + $0x8] sm:$0xf]
    %v78 = vld [vmem:[#allocation2 + $0xc] sm:$0xff]
    %v79 = vld [vmem:[#allocation2 + $0x14] sm:$0xf]
    %v80 = vld [vmem:[#allocation2 + $0x18] sm:$0xff]
    %v81 = vld [vmem:[#allocation2 + $0x20] sm:$0xf]
    %v82 = vld [vmem:[#allocation2 + $0x24] sm:$0xff]
    %v83 = vld [vmem:[#allocation2 + $0x2c] sm:$0xf]
    %v84 = vld [vmem:[#allocation2 + $0x30] sm:$0xff]
    %v85 = vld [vmem:[#allocation2 + $0x38] sm:$0xf]
    %v86 = vld [vmem:[#allocation2 + $0x3c] sm:$0xff]
    %v87 = vld [vmem:[#allocation2 + $0x44] sm:$0xf]
    %v88 = vld [vmem:[#allocation2 + $0x48] sm:$0xff]
    %v89 = vld [vmem:[#allocation2 + $0x50] sm:$0xf]
    %v90 = vld [vmem:[#allocation2 + $0x54] sm:$0xff]
    %v91 = vld [vmem:[#allocation2 + $0x5c] sm:$0xf]
    %v92 = vld [vmem:[#allocation2 + $0x60] sm:$0xff]
    %v93 = vld [vmem:[#allocation2 + $0x68] sm:$0xf]
    %v94 = vld [vmem:[#allocation2 + $0x6c] sm:$0xff]
    %v95 = vld [vmem:[#allocation2 + $0x74] sm:$0xf]
    %v96 = vld [vmem:[#allocation2 + $0x78] sm:$0xff]
    %v97 = vld [vmem:[#allocation2 + $0x80] sm:$0xf]
    %v98 = vld [vmem:[#allocation2 + $0x84] sm:$0xff]
    %v99 = vld [vmem:[#allocation2 + $0x8c] sm:$0xf]
    %v100 = vld [vmem:[#allocation2 + $0x90] sm:$0xff]
    %v101 = vld [vmem:[#allocation2 + $0x98] sm:$0xf]
    %v102 = vld [vmem:[#allocation2 + $0x9c] sm:$0xff]
    %v103 = vld [vmem:[#allocation2 + $0xa4] sm:$0xf]
    %v104 = vld [vmem:[#allocation2 + $0xa8] sm:$0xff]
    %v105 = vld [vmem:[#allocation2 + $0xb0] sm:$0xf]
    %v106 = vld [vmem:[#allocation2 + $0xb4] sm:$0xff]
    %v107 = vld [vmem:[#allocation2 + $0xbc] sm:$0xf]
    %v108 = vld [vmem:[#allocation6] ss:$8 sm:$0x7]
    %v110 = vlaneseq
    %v111 = vshrl.u32 %v110, 7
    %v112 = vsub.s32 0, %v111
    %v113 = vrot.slane %v108, %v112
    %v114 = vlaneseq
    %v115 = vshrl.u32 %v114, 7
    %v116 = vsub.s32 1, %v115
    %v117 = vrot.slane %v108, %v116
    %v118 = vlaneseq
    %v119 = vshrl.u32 %v118, 7
    %v120 = vsub.s32 2, %v119
    %v121 = vrot.slane %v108, %v120
    %v157 = vunpack.c.l.b16 %v76
    %v158 = vunpack.c.h.b16 %v76
    %v159 = vunpack.c.l.b16 %v77
    %v160 = vunpack.c.l.b16 %v78
    %v161 = vunpack.c.h.b16 %v78
    %v162 = vunpack.c.l.b16 %v79
    %v163 = vunpack.c.l.b16 %v80
    %v164 = vunpack.c.h.b16 %v80
    %v165 = vunpack.c.l.b16 %v81
    %v166 = vunpack.c.l.b16 %v82
    %v167 = vunpack.c.h.b16 %v82
    %v168 = vunpack.c.l.b16 %v83
    %v169 = vunpack.c.l.b16 %v84
    %v170 = vunpack.c.h.b16 %v84
    %v171 = vunpack.c.l.b16 %v85
    %v172 = vunpack.c.l.b16 %v86
    %v173 = vunpack.c.h.b16 %v86
    %v174 = vunpack.c.l.b16 %v87
    %v175 = vunpack.c.l.b16 %v88
    %v176 = vunpack.c.h.b16 %v88
    %v177 = vunpack.c.l.b16 %v89
    %v178 = vunpack.c.l.b16 %v90
    %v179 = vunpack.c.h.b16 %v90
    %v180 = vunpack.c.l.b16 %v91
    %v181 = vunpack.c.l.b16 %v92
    %v182 = vunpack.c.h.b16 %v92
    %v183 = vunpack.c.l.b16 %v93
    %v184 = vunpack.c.l.b16 %v94
    %v185 = vunpack.c.h.b16 %v94
    %v186 = vunpack.c.l.b16 %v95
    %v187 = vunpack.c.l.b16 %v96
    %v188 = vunpack.c.h.b16 %v96
    %v189 = vunpack.c.l.b16 %v97
    %v190 = vunpack.c.l.b16 %v98
    %v191 = vunpack.c.h.b16 %v98
    %v192 = vunpack.c.l.b16 %v99
    %v193 = vunpack.c.l.b16 %v100
    %v194 = vunpack.c.h.b16 %v100
    %v195 = vunpack.c.l.b16 %v101
    %v196 = vunpack.c.l.b16 %v102
    %v197 = vunpack.c.h.b16 %v102
    %v198 = vunpack.c.l.b16 %v103
    %v199 = vunpack.c.l.b16 %v104
    %v200 = vunpack.c.h.b16 %v104
    %v201 = vunpack.c.l.b16 %v105
    %v202 = vunpack.c.l.b16 %v106
    %v203 = vunpack.c.h.b16 %v106
    %v204 = vunpack.c.l.b16 %v107
    %v205 = vpack.c.b16 %v160, %v157
    %v206 = vpack.c.b16 %v161, %v158
    %v207 = vpack.c.b16 %v162, %v159
    %v208 = vpack.c.b16 %v166, %v163
    %v209 = vpack.c.b16 %v167, %v164
    %v210 = vpack.c.b16 %v168, %v165
    %v211 = vpack.c.b16 %v172, %v169
    %v212 = vpack.c.b16 %v173, %v170
    %v213 = vpack.c.b16 %v174, %v171
    %v214 = vpack.c.b16 %v178, %v175
    %v215 = vpack.c.b16 %v179, %v176
    %v216 = vpack.c.b16 %v180, %v177
    %v217 = vpack.c.b16 %v184, %v181
    %v218 = vpack.c.b16 %v185, %v182
    %v219 = vpack.c.b16 %v186, %v183
    %v220 = vpack.c.b16 %v190, %v187
    %v221 = vpack.c.b16 %v191, %v188
    %v222 = vpack.c.b16 %v192, %v189
    %v223 = vpack.c.b16 %v196, %v193
    %v224 = vpack.c.b16 %v197, %v194
    %v225 = vpack.c.b16 %v198, %v195
    %v226 = vpack.c.b16 %v202, %v199
    %v227 = vpack.c.b16 %v203, %v200
    %v228 = vpack.c.b16 %v204, %v201
    %253 = vmatprep.subr.bf16.mxu0 %v206
    %254 = vmatpush1.bf16.msra.mxu0 %v205
    %255 = vmatprep.subr.bf16.mxu0 %v209
    %256 = vmatpush1.bf16.msra.mxu0 %v208
    %257 = vmatprep.subr.bf16.mxu0 %v212
    %258 = vmatpush1.bf16.msra.mxu0 %v211
    %259 = vmatprep.subr.bf16.mxu0 %v215
    %260 = vmatpush1.bf16.msra.mxu0 %v214
    %261 = vmatprep.subr.bf16.mxu0 %v218
    %262 = vmatpush1.bf16.msra.mxu0 %v217
    %263 = vmatprep.subr.bf16.mxu0 %v221
    %264 = vmatpush1.bf16.msra.mxu0 %v220
    %265 = vmatprep.subr.bf16.mxu0 %v224
    %266 = vmatpush1.bf16.msra.mxu0 %v223
    %267 = vmatprep.subr.bf16.mxu0 %v227
    %268 = vmatpush1.bf16.msra.mxu0 %v226
    %269 = vmatprep.subr.bf16.mxu0 0
    %270 = vmatpush1.bf16.msra.mxu0 0
    %271 = vmatprep.subr.bf16.mxu0 0
    %272 = vmatpush1.bf16.msra.mxu0 0
    %273 = vmatprep.subr.bf16.mxu0 0
    %274 = vmatpush1.bf16.msra.mxu0 0
    %275 = vmatprep.subr.bf16.mxu0 0
    %276 = vmatpush1.bf16.msra.mxu0 0
    %277 = vmatprep.subr.bf16.mxu0 0
    %278 = vmatpush1.bf16.msra.mxu0 0
    %279 = vmatprep.subr.bf16.mxu0 0
    %280 = vmatpush1.bf16.msra.mxu0 0
    %281 = vmatprep.subr.bf16.mxu0 0
    %282 = vmatpush1.bf16.msra.mxu0 0
    %283 = vmatprep.subr.bf16.mxu0 0
    %284 = vmatpush1.bf16.msra.mxu0 0
    %285 = vmatprep.mubr.bf16.mxu0 0
    %286 = vmatmul.mubr.bf16.gmra.mrb[0].mxu0 %v75
    %v287 = vpop.f32.mrb[0].mxu0
    %v288 = vadd.f32 %v113, %v287
    %v289 = vpop.f32.mrb[0].mxu0
    %v290 = vadd.f32 %v117, %v289
    %v291 = vpop.f32.mrb[0].mxu0
    %v292 = vpop.f32.mrb[0].mxu0
    %293 = vdwg.mxu0
    %294 = vmatprep.subr.bf16.mxu0 0
    %295 = vmatpush1.bf16.msra.mxu0 %v207
    %296 = vmatprep.subr.bf16.mxu0 0
    %297 = vmatpush1.bf16.msra.mxu0 %v210
    %298 = vmatprep.subr.bf16.mxu0 0
    %299 = vmatpush1.bf16.msra.mxu0 %v213
    %300 = vmatprep.subr.bf16.mxu0 0
    %301 = vmatpush1.bf16.msra.mxu0 %v216
    %302 = vmatprep.subr.bf16.mxu0 0
    %303 = vmatpush1.bf16.msra.mxu0 %v219
    %304 = vmatprep.subr.bf16.mxu0 0
    %305 = vmatpush1.bf16.msra.mxu0 %v222
    %306 = vmatprep.subr.bf16.mxu0 0
    %307 = vmatpush1.bf16.msra.mxu0 %v225
    %308 = vmatprep.subr.bf16.mxu0 0
    %309 = vmatpush1.bf16.msra.mxu0 %v228
    %310 = vmatprep.subr.bf16.mxu0 0
    %311 = vmatpush1.bf16.msra.mxu0 0
    %312 = vmatprep.subr.bf16.mxu0 0
    %313 = vmatpush1.bf16.msra.mxu0 0
    %314 = vmatprep.subr.bf16.mxu0 0
    %315 = vmatpush1.bf16.msra.mxu0 0
    %316 = vmatprep.subr.bf16.mxu0 0
    %317 = vmatpush1.bf16.msra.mxu0 0
    %318 = vmatprep.subr.bf16.mxu0 0
    %319 = vmatpush1.bf16.msra.mxu0 0
    %320 = vmatprep.subr.bf16.mxu0 0
    %321 = vmatpush1.bf16.msra.mxu0 0
    %322 = vmatprep.subr.bf16.mxu0 0
    %323 = vmatpush1.bf16.msra.mxu0 0
    %324 = vmatprep.subr.bf16.mxu0 0
    %325 = vmatpush1.bf16.msra.mxu0 0
    %326 = vmatprep.mubr.bf16.mxu0 0
    %327 = vmatmul.mubr.bf16.gmra.mrb[0].mxu0 %v75
    %v328 = vpop.f32.mrb[0].mxu0
    %v329 = vadd.f32 %v121, %v328
    %v330 = vpop.f32.mrb[0].mxu0
    %v331 = vpop.f32.mrb[0].mxu0
    %v332 = vpop.f32.mrb[0].mxu0
    %333 = vdwg.mxu0
    %v334 = vmax.f32 %v288, 0.0
    %v335 = vmax.f32 %v290, 0.0
    %v336 = vmax.f32 %v329, 0.0
    %v337 = vpack.c.bf16 %v334, %v334
    %v338 = vpack.c.bf16 %v335, %v335
    %v339 = vpack.c.bf16 %v336, %v336
    %v340 = vld [vmem:[#allocation4] sm:$0xff]
    %v341 = vld [vmem:[#allocation4 + $0x8] sm:$0xf]
    %v342 = vld [vmem:[#allocation4 + $0xc] sm:$0xff]
    %v343 = vld [vmem:[#allocation4 + $0x14] sm:$0xf]
    %v344 = vld [vmem:[#allocation4 + $0x18] sm:$0xff]
    %v345 = vld [vmem:[#allocation4 + $0x20] sm:$0xf]
    %v346 = vld [vmem:[#allocation4 + $0x24] sm:$0xff]
    %v347 = vld [vmem:[#allocation4 + $0x2c] sm:$0xf]
    %v348 = vld [vmem:[#allocation4 + $0x30] sm:$0xff]
    %v349 = vld [vmem:[#allocation4 + $0x38] sm:$0xf]
    %v350 = vld [vmem:[#allocation4 + $0x3c] sm:$0xff]
    %v351 = vld [vmem:[#allocation4 + $0x44] sm:$0xf]
    %v352 = vld [vmem:[#allocation4 + $0x48] sm:$0xff]
    %v353 = vld [vmem:[#allocation4 + $0x50] sm:$0xf]
    %v354 = vld [vmem:[#allocation4 + $0x54] sm:$0xff]
    %v355 = vld [vmem:[#allocation4 + $0x5c] sm:$0xf]
    %v356 = vld [vmem:[#allocation4 + $0x60] sm:$0xff]
    %v357 = vld [vmem:[#allocation4 + $0x68] sm:$0xf]
    %v358 = vld [vmem:[#allocation4 + $0x6c] sm:$0xff]
    %v359 = vld [vmem:[#allocation4 + $0x74] sm:$0xf]
    %v360 = vld [vmem:[#allocation4 + $0x78] sm:$0xff]
    %v361 = vld [vmem:[#allocation4 + $0x80] sm:$0xf]
    %v362 = vld [vmem:[#allocation4 + $0x84] sm:$0xff]
    %v363 = vld [vmem:[#allocation4 + $0x8c] sm:$0xf]
    %v364 = vld [vmem:[#allocation4 + $0x90] sm:$0xff]
    %v365 = vld [vmem:[#allocation4 + $0x98] sm:$0xf]
    %v366 = vld [vmem:[#allocation4 + $0x9c] sm:$0xff]
    %v367 = vld [vmem:[#allocation4 + $0xa4] sm:$0xf]
    %v368 = vld [vmem:[#allocation4 + $0xa8] sm:$0xff]
    %v369 = vld [vmem:[#allocation4 + $0xb0] sm:$0xf]
    %v370 = vld [vmem:[#allocation4 + $0xb4] sm:$0xff]
    %v371 = vld [vmem:[#allocation4 + $0xbc] sm:$0xf]
    %v372 = vld [vmem:[#allocation4 + $0xc0] sm:$0xff]
    %v373 = vld [vmem:[#allocation4 + $0xc8] sm:$0xf]
    %v374 = vld [vmem:[#allocation4 + $0xcc] sm:$0xff]
    %v375 = vld [vmem:[#allocation4 + $0xd4] sm:$0xf]
    %v376 = vld [vmem:[#allocation4 + $0xd8] sm:$0xff]
    %v377 = vld [vmem:[#allocation4 + $0xe0] sm:$0xf]
    %v378 = vld [vmem:[#allocation4 + $0xe4] sm:$0xff]
    %v379 = vld [vmem:[#allocation4 + $0xec] sm:$0xf]
    %v380 = vld [vmem:[#allocation4 + $0xf0] sm:$0xff]
    %v381 = vld [vmem:[#allocation4 + $0xf8] sm:$0xf]
    %v382 = vld [vmem:[#allocation4 + $0xfc] sm:$0xff]
    %v383 = vld [vmem:[#allocation4 + $0x104] sm:$0xf]
    %v384 = vld [vmem:[#allocation4 + $0x108] sm:$0xff]
    %v385 = vld [vmem:[#allocation4 + $0x110] sm:$0xf]
    %v386 = vld [vmem:[#allocation4 + $0x114] sm:$0xff]
    %v387 = vld [vmem:[#allocation4 + $0x11c] sm:$0xf]
    %v388 = vld [vmem:[#allocation4 + $0x120] sm:$0xff]
    %v389 = vld [vmem:[#allocation4 + $0x128] sm:$0xf]
    %v390 = vld [vmem:[#allocation4 + $0x12c] sm:$0xff]
    %v391 = vld [vmem:[#allocation4 + $0x134] sm:$0xf]
    %v392 = vld [vmem:[#allocation4 + $0x138] sm:$0xff]
    %v393 = vld [vmem:[#allocation4 + $0x140] sm:$0xf]
    %v394 = vld [vmem:[#allocation4 + $0x144] sm:$0xff]
    %v395 = vld [vmem:[#allocation4 + $0x14c] sm:$0xf]
    %v396 = vld [vmem:[#allocation4 + $0x150] sm:$0xff]
    %v397 = vld [vmem:[#allocation4 + $0x158] sm:$0xf]
    %v398 = vld [vmem:[#allocation4 + $0x15c] sm:$0xff]
    %v399 = vld [vmem:[#allocation4 + $0x164] sm:$0xf]
    %v400 = vld [vmem:[#allocation4 + $0x168] sm:$0xff]
    %v401 = vld [vmem:[#allocation4 + $0x170] sm:$0xf]
    %v402 = vld [vmem:[#allocation4 + $0x174] sm:$0xff]
    %v403 = vld [vmem:[#allocation4 + $0x17c] sm:$0xf]
    %v404 = vld [vmem:[#allocation4 + $0x180] sm:$0xff]
    %v405 = vld [vmem:[#allocation4 + $0x188] sm:$0xf]
    %v406 = vld [vmem:[#allocation4 + $0x18c] sm:$0xff]
    %v407 = vld [vmem:[#allocation4 + $0x194] sm:$0xf]
    %v408 = vld [vmem:[#allocation4 + $0x198] sm:$0xff]
    %v409 = vld [vmem:[#allocation4 + $0x1a0] sm:$0xf]
    %v410 = vld [vmem:[#allocation4 + $0x1a4] sm:$0xff]
    %v411 = vld [vmem:[#allocation4 + $0x1ac] sm:$0xf]
    %v412 = vld [vmem:[#allocation4 + $0x1b0] sm:$0xff]
    %v413 = vld [vmem:[#allocation4 + $0x1b8] sm:$0xf]
    %v414 = vld [vmem:[#allocation4 + $0x1bc] sm:$0xff]
    %v415 = vld [vmem:[#allocation4 + $0x1c4] sm:$0xf]
    %v416 = vld [vmem:[#allocation4 + $0x1c8] sm:$0xff]
    %v417 = vld [vmem:[#allocation4 + $0x1d0] sm:$0xf]
    %v418 = vld [vmem:[#allocation4 + $0x1d4] sm:$0xff]
    %v419 = vld [vmem:[#allocation4 + $0x1dc] sm:$0xf]
    %v420 = vld [vmem:[#allocation4 + $0x1e0] sm:$0xff]
    %v421 = vld [vmem:[#allocation4 + $0x1e8] sm:$0xf]
    %v422 = vld [vmem:[#allocation4 + $0x1ec] sm:$0xff]
    %v423 = vld [vmem:[#allocation4 + $0x1f4] sm:$0xf]
    %v424 = vld [vmem:[#allocation4 + $0x1f8] sm:$0xff]
    %v425 = vld [vmem:[#allocation4 + $0x200] sm:$0xf]
    %v426 = vld [vmem:[#allocation4 + $0x204] sm:$0xff]
    %v427 = vld [vmem:[#allocation4 + $0x20c] sm:$0xf]
    %v428 = vld [vmem:[#allocation4 + $0x210] sm:$0xff]
    %v429 = vld [vmem:[#allocation4 + $0x218] sm:$0xf]
    %v430 = vld [vmem:[#allocation4 + $0x21c] sm:$0xff]
    %v431 = vld [vmem:[#allocation4 + $0x224] sm:$0xf]
    %v432 = vld [vmem:[#allocation4 + $0x228] sm:$0xff]
    %v433 = vld [vmem:[#allocation4 + $0x230] sm:$0xf]
    %v434 = vld [vmem:[#allocation4 + $0x234] sm:$0xff]
    %v435 = vld [vmem:[#allocation4 + $0x23c] sm:$0xf]
    %s436 = scalar_lea.vmem [#allocation6], 1
    %v437 = vld [vmem:[%s436] ss:$8 sm:$0x7]
    %v439 = vlaneseq
    %v440 = vshrl.u32 %v439, 7
    %v441 = vsub.s32 0, %v440
    %v442 = vrot.slane %v437, %v441
    %v443 = vlaneseq
    %v444 = vshrl.u32 %v443, 7
    %v445 = vsub.s32 1, %v444
    %v446 = vrot.slane %v437, %v445
    %v447 = vlaneseq
    %v448 = vshrl.u32 %v447, 7
    %v449 = vsub.s32 2, %v448
    %v450 = vrot.slane %v437, %v449
    %v550 = vunpack.c.l.b16 %v340
    %v551 = vunpack.c.h.b16 %v340
    %v552 = vunpack.c.l.b16 %v341
    %v553 = vunpack.c.l.b16 %v342
    %v554 = vunpack.c.h.b16 %v342
    %v555 = vunpack.c.l.b16 %v343
    %v556 = vunpack.c.l.b16 %v344
    %v557 = vunpack.c.h.b16 %v344
    %v558 = vunpack.c.l.b16 %v345
    %v559 = vunpack.c.l.b16 %v346
    %v560 = vunpack.c.h.b16 %v346
    %v561 = vunpack.c.l.b16 %v347
    %v562 = vunpack.c.l.b16 %v348
    %v563 = vunpack.c.h.b16 %v348
    %v564 = vunpack.c.l.b16 %v349
    %v565 = vunpack.c.l.b16 %v350
    %v566 = vunpack.c.h.b16 %v350
    %v567 = vunpack.c.l.b16 %v351
    %v568 = vunpack.c.l.b16 %v352
    %v569 = vunpack.c.h.b16 %v352
    %v570 = vunpack.c.l.b16 %v353
    %v571 = vunpack.c.l.b16 %v354
    %v572 = vunpack.c.h.b16 %v354
    %v573 = vunpack.c.l.b16 %v355
    %v574 = vunpack.c.l.b16 %v356
    %v575 = vunpack.c.h.b16 %v356
    %v576 = vunpack.c.l.b16 %v357
    %v577 = vunpack.c.l.b16 %v358
    %v578 = vunpack.c.h.b16 %v358
    %v579 = vunpack.c.l.b16 %v359
    %v580 = vunpack.c.l.b16 %v360
    %v581 = vunpack.c.h.b16 %v360
    %v582 = vunpack.c.l.b16 %v361
    %v583 = vunpack.c.l.b16 %v362
    %v584 = vunpack.c.h.b16 %v362
    %v585 = vunpack.c.l.b16 %v363
    %v586 = vunpack.c.l.b16 %v364
    %v587 = vunpack.c.h.b16 %v364
    %v588 = vunpack.c.l.b16 %v365
    %v589 = vunpack.c.l.b16 %v366
    %v590 = vunpack.c.h.b16 %v366
    %v591 = vunpack.c.l.b16 %v367
    %v592 = vunpack.c.l.b16 %v368
    %v593 = vunpack.c.h.b16 %v368
    %v594 = vunpack.c.l.b16 %v369
    %v595 = vunpack.c.l.b16 %v370
    %v596 = vunpack.c.h.b16 %v370
    %v597 = vunpack.c.l.b16 %v371
    %v598 = vunpack.c.l.b16 %v372
    %v599 = vunpack.c.h.b16 %v372
    %v600 = vunpack.c.l.b16 %v373
    %v601 = vunpack.c.l.b16 %v374
    %v602 = vunpack.c.h.b16 %v374
    %v603 = vunpack.c.l.b16 %v375
    %v604 = vunpack.c.l.b16 %v376
    %v605 = vunpack.c.h.b16 %v376
    %v606 = vunpack.c.l.b16 %v377
    %v607 = vunpack.c.l.b16 %v378
    %v608 = vunpack.c.h.b16 %v378
    %v609 = vunpack.c.l.b16 %v379
    %v610 = vunpack.c.l.b16 %v380
    %v611 = vunpack.c.h.b16 %v380
    %v612 = vunpack.c.l.b16 %v381
    %v613 = vunpack.c.l.b16 %v382
    %v614 = vunpack.c.h.b16 %v382
    %v615 = vunpack.c.l.b16 %v383
    %v616 = vunpack.c.l.b16 %v384
    %v617 = vunpack.c.h.b16 %v384
    %v618 = vunpack.c.l.b16 %v385
    %v619 = vunpack.c.l.b16 %v386
    %v620 = vunpack.c.h.b16 %v386
    %v621 = vunpack.c.l.b16 %v387
    %v622 = vunpack.c.l.b16 %v388
    %v623 = vunpack.c.h.b16 %v388
    %v624 = vunpack.c.l.b16 %v389
    %v625 = vunpack.c.l.b16 %v390
    %v626 = vunpack.c.h.b16 %v390
    %v627 = vunpack.c.l.b16 %v391
    %v628 = vunpack.c.l.b16 %v392
    %v629 = vunpack.c.h.b16 %v392
    %v630 = vunpack.c.l.b16 %v393
    %v631 = vunpack.c.l.b16 %v394
    %v632 = vunpack.c.h.b16 %v394
    %v633 = vunpack.c.l.b16 %v395
    %v634 = vunpack.c.l.b16 %v396
    %v635 = vunpack.c.h.b16 %v396
    %v636 = vunpack.c.l.b16 %v397
    %v637 = vunpack.c.l.b16 %v398
    %v638 = vunpack.c.h.b16 %v398
    %v639 = vunpack.c.l.b16 %v399
    %v640 = vunpack.c.l.b16 %v400
    %v641 = vunpack.c.h.b16 %v400
    %v642 = vunpack.c.l.b16 %v401
    %v643 = vunpack.c.l.b16 %v402
    %v644 = vunpack.c.h.b16 %v402
    %v645 = vunpack.c.l.b16 %v403
    %v646 = vunpack.c.l.b16 %v404
    %v647 = vunpack.c.h.b16 %v404
    %v648 = vunpack.c.l.b16 %v405
    %v649 = vunpack.c.l.b16 %v406
    %v650 = vunpack.c.h.b16 %v406
    %v651 = vunpack.c.l.b16 %v407
    %v652 = vunpack.c.l.b16 %v408
    %v653 = vunpack.c.h.b16 %v408
    %v654 = vunpack.c.l.b16 %v409
    %v655 = vunpack.c.l.b16 %v410
    %v656 = vunpack.c.h.b16 %v410
    %v657 = vunpack.c.l.b16 %v411
    %v658 = vunpack.c.l.b16 %v412
    %v659 = vunpack.c.h.b16 %v412
    %v660 = vunpack.c.l.b16 %v413
    %v661 = vunpack.c.l.b16 %v414
    %v662 = vunpack.c.h.b16 %v414
    %v663 = vunpack.c.l.b16 %v415
    %v664 = vunpack.c.l.b16 %v416
    %v665 = vunpack.c.h.b16 %v416
    %v666 = vunpack.c.l.b16 %v417
    %v667 = vunpack.c.l.b16 %v418
    %v668 = vunpack.c.h.b16 %v418
    %v669 = vunpack.c.l.b16 %v419
    %v670 = vunpack.c.l.b16 %v420
    %v671 = vunpack.c.h.b16 %v420
    %v672 = vunpack.c.l.b16 %v421
    %v673 = vunpack.c.l.b16 %v422
    %v674 = vunpack.c.h.b16 %v422
    %v675 = vunpack.c.l.b16 %v423
    %v676 = vunpack.c.l.b16 %v424
    %v677 = vunpack.c.h.b16 %v424
    %v678 = vunpack.c.l.b16 %v425
    %v679 = vunpack.c.l.b16 %v426
    %v680 = vunpack.c.h.b16 %v426
    %v681 = vunpack.c.l.b16 %v427
    %v682 = vunpack.c.l.b16 %v428
    %v683 = vunpack.c.h.b16 %v428
    %v684 = vunpack.c.l.b16 %v429
    %v685 = vunpack.c.l.b16 %v430
    %v686 = vunpack.c.h.b16 %v430
    %v687 = vunpack.c.l.b16 %v431
    %v688 = vunpack.c.l.b16 %v432
    %v689 = vunpack.c.h.b16 %v432
    %v690 = vunpack.c.l.b16 %v433
    %v691 = vunpack.c.l.b16 %v434
    %v692 = vunpack.c.h.b16 %v434
    %v693 = vunpack.c.l.b16 %v435
    %v694 = vpack.c.b16 %v553, %v550
    %v695 = vpack.c.b16 %v554, %v551
    %v696 = vpack.c.b16 %v555, %v552
    %v697 = vpack.c.b16 %v559, %v556
    %v698 = vpack.c.b16 %v560, %v557
    %v699 = vpack.c.b16 %v561, %v558
    %v700 = vpack.c.b16 %v565, %v562
    %v701 = vpack.c.b16 %v566, %v563
    %v702 = vpack.c.b16 %v567, %v564
    %v703 = vpack.c.b16 %v571, %v568
    %v704 = vpack.c.b16 %v572, %v569
    %v705 = vpack.c.b16 %v573, %v570
    %v706 = vpack.c.b16 %v577, %v574
    %v707 = vpack.c.b16 %v578, %v575
    %v708 = vpack.c.b16 %v579, %v576
    %v709 = vpack.c.b16 %v583, %v580
    %v710 = vpack.c.b16 %v584, %v581
    %v711 = vpack.c.b16 %v585, %v582
    %v712 = vpack.c.b16 %v589, %v586
    %v713 = vpack.c.b16 %v590, %v587
    %v714 = vpack.c.b16 %v591, %v588
    %v715 = vpack.c.b16 %v595, %v592
    %v716 = vpack.c.b16 %v596, %v593
    %v717 = vpack.c.b16 %v597, %v594
    %v718 = vpack.c.b16 %v601, %v598
    %v719 = vpack.c.b16 %v602, %v599
    %v720 = vpack.c.b16 %v603, %v600
    %v721 = vpack.c.b16 %v607, %v604
    %v722 = vpack.c.b16 %v608, %v605
    %v723 = vpack.c.b16 %v609, %v606
    %v724 = vpack.c.b16 %v613, %v610
    %v725 = vpack.c.b16 %v614, %v611
    %v726 = vpack.c.b16 %v615, %v612
    %v727 = vpack.c.b16 %v619, %v616
    %v728 = vpack.c.b16 %v620, %v617
    %v729 = vpack.c.b16 %v621, %v618
    %v730 = vpack.c.b16 %v625, %v622
    %v731 = vpack.c.b16 %v626, %v623
    %v732 = vpack.c.b16 %v627, %v624
    %v733 = vpack.c.b16 %v631, %v628
    %v734 = vpack.c.b16 %v632, %v629
    %v735 = vpack.c.b16 %v633, %v630
    %v736 = vpack.c.b16 %v637, %v634
    %v737 = vpack.c.b16 %v638, %v635
    %v738 = vpack.c.b16 %v639, %v636
    %v739 = vpack.c.b16 %v643, %v640
    %v740 = vpack.c.b16 %v644, %v641
    %v741 = vpack.c.b16 %v645, %v642
    %v742 = vpack.c.b16 %v649, %v646
    %v743 = vpack.c.b16 %v650, %v647
    %v744 = vpack.c.b16 %v651, %v648
    %v745 = vpack.c.b16 %v655, %v652
    %v746 = vpack.c.b16 %v656, %v653
    %v747 = vpack.c.b16 %v657, %v654
    %v748 = vpack.c.b16 %v661, %v658
    %v749 = vpack.c.b16 %v662, %v659
    %v750 = vpack.c.b16 %v663, %v660
    %v751 = vpack.c.b16 %v667, %v664
    %v752 = vpack.c.b16 %v668, %v665
    %v753 = vpack.c.b16 %v669, %v666
    %v754 = vpack.c.b16 %v673, %v670
    %v755 = vpack.c.b16 %v674, %v671
    %v756 = vpack.c.b16 %v675, %v672
    %v757 = vpack.c.b16 %v679, %v676
    %v758 = vpack.c.b16 %v680, %v677
    %v759 = vpack.c.b16 %v681, %v678
    %v760 = vpack.c.b16 %v685, %v682
    %v761 = vpack.c.b16 %v686, %v683
    %v762 = vpack.c.b16 %v687, %v684
    %v763 = vpack.c.b16 %v691, %v688
    %v764 = vpack.c.b16 %v692, %v689
    %v765 = vpack.c.b16 %v693, %v690
    %838 = vmatprep.subr.bf16.mxu0 %v695
    %839 = vmatpush1.bf16.msra.mxu0 %v694
    %840 = vmatprep.subr.bf16.mxu0 %v698
    %841 = vmatpush1.bf16.msra.mxu0 %v697
    %842 = vmatprep.subr.bf16.mxu0 %v701
    %843 = vmatpush1.bf16.msra.mxu0 %v700
    %844 = vmatprep.subr.bf16.mxu0 %v704
    %845 = vmatpush1.bf16.msra.mxu0 %v703
    %846 = vmatprep.subr.bf16.mxu0 %v707
    %847 = vmatpush1.bf16.msra.mxu0 %v706
    %848 = vmatprep.subr.bf16.mxu0 %v710
    %849 = vmatpush1.bf16.msra.mxu0 %v709
    %850 = vmatprep.subr.bf16.mxu0 %v713
    %851 = vmatpush1.bf16.msra.mxu0 %v712
    %852 = vmatprep.subr.bf16.mxu0 %v716
    %853 = vmatpush1.bf16.msra.mxu0 %v715
    %854 = vmatprep.subr.bf16.mxu0 %v719
    %855 = vmatpush1.bf16.msra.mxu0 %v718
    %856 = vmatprep.subr.bf16.mxu0 %v722
    %857 = vmatpush1.bf16.msra.mxu0 %v721
    %858 = vmatprep.subr.bf16.mxu0 %v725
    %859 = vmatpush1.bf16.msra.mxu0 %v724
    %860 = vmatprep.subr.bf16.mxu0 %v728
    %861 = vmatpush1.bf16.msra.mxu0 %v727
    %862 = vmatprep.subr.bf16.mxu0 %v731
    %863 = vmatpush1.bf16.msra.mxu0 %v730
    %864 = vmatprep.subr.bf16.mxu0 %v734
    %865 = vmatpush1.bf16.msra.mxu0 %v733
    %866 = vmatprep.subr.bf16.mxu0 %v737
    %867 = vmatpush1.bf16.msra.mxu0 %v736
    %868 = vmatprep.subr.bf16.mxu0 %v740
    %869 = vmatpush1.bf16.msra.mxu0 %v739
    %870 = vmatprep.mubr.bf16.mxu0 %v338
    %871 = vmatmul.mubr.bf16.gmra.mrb[0].mxu0 %v337
    %v872 = vpop.f32.mrb[0].mxu0
    %v873 = vadd.f32 %v442, %v872
    %v874 = vpop.f32.mrb[0].mxu0
    %v875 = vadd.f32 %v446, %v874
    %v876 = vpop.f32.mrb[0].mxu0
    %v877 = vpop.f32.mrb[0].mxu0
    %878 = vdwg.mxu0
    %879 = vmatprep.subr.bf16.mxu0 %v743
    %880 = vmatpush1.bf16.msra.mxu0 %v742
    %881 = vmatprep.subr.bf16.mxu0 %v746
    %882 = vmatpush1.bf16.msra.mxu0 %v745
    %883 = vmatprep.subr.bf16.mxu0 %v749
    %884 = vmatpush1.bf16.msra.mxu0 %v748
    %885 = vmatprep.subr.bf16.mxu0 %v752
    %886 = vmatpush1.bf16.msra.mxu0 %v751
    %887 = vmatprep.subr.bf16.mxu0 %v755
    %888 = vmatpush1.bf16.msra.mxu0 %v754
    %889 = vmatprep.subr.bf16.mxu0 %v758
    %890 = vmatpush1.bf16.msra.mxu0 %v757
    %891 = vmatprep.subr.bf16.mxu0 %v761
    %892 = vmatpush1.bf16.msra.mxu0 %v760
    %893 = vmatprep.subr.bf16.mxu0 %v764
    %894 = vmatpush1.bf16.msra.mxu0 %v763
    %895 = vmatprep.subr.bf16.mxu0 0
    %896 = vmatpush1.bf16.msra.mxu0 0
    %897 = vmatprep.subr.bf16.mxu0 0
    %898 = vmatpush1.bf16.msra.mxu0 0
    %899 = vmatprep.subr.bf16.mxu0 0
    %900 = vmatpush1.bf16.msra.mxu0 0
    %901 = vmatprep.subr.bf16.mxu0 0
    %902 = vmatpush1.bf16.msra.mxu0 0
    %903 = vmatprep.subr.bf16.mxu0 0
    %904 = vmatpush1.bf16.msra.mxu0 0
    %905 = vmatprep.subr.bf16.mxu0 0
    %906 = vmatpush1.bf16.msra.mxu0 0
    %907 = vmatprep.subr.bf16.mxu0 0
    %908 = vmatpush1.bf16.msra.mxu0 0
    %909 = vmatprep.subr.bf16.mxu0 0
    %910 = vmatpush1.bf16.msra.mxu0 0
    %911 = vmatprep.mubr.bf16.mxu0 0
    %912 = vmatmul.mubr.bf16.gmra.mrb[0].mxu0 %v339
    %v913 = vpop.f32.mrb[0].mxu0
    %v914 = vadd.f32 %v873, %v913
    %v915 = vpop.f32.mrb[0].mxu0
    %v916 = vadd.f32 %v875, %v915
    %v917 = vpop.f32.mrb[0].mxu0
    %v918 = vpop.f32.mrb[0].mxu0
    %919 = vdwg.mxu0
    %920 = vmatprep.subr.bf16.mxu0 0
    %921 = vmatpush1.bf16.msra.mxu0 %v696
    %922 = vmatprep.subr.bf16.mxu0 0
    %923 = vmatpush1.bf16.msra.mxu0 %v699
    %924 = vmatprep.subr.bf16.mxu0 0
    %925 = vmatpush1.bf16.msra.mxu0 %v702
    %926 = vmatprep.subr.bf16.mxu0 0
    %927 = vmatpush1.bf16.msra.mxu0 %v705
    %928 = vmatprep.subr.bf16.mxu0 0
    %929 = vmatpush1.bf16.msra.mxu0 %v708
    %930 = vmatprep.subr.bf16.mxu0 0
    %931 = vmatpush1.bf16.msra.mxu0 %v711
    %932 = vmatprep.subr.bf16.mxu0 0
    %933 = vmatpush1.bf16.msra.mxu0 %v714
    %934 = vmatprep.subr.bf16.mxu0 0
    %935 = vmatpush1.bf16.msra.mxu0 %v717
    %936 = vmatprep.subr.bf16.mxu0 0
    %937 = vmatpush1.bf16.msra.mxu0 %v720
    %938 = vmatprep.subr.bf16.mxu0 0
    %939 = vmatpush1.bf16.msra.mxu0 %v723
    %940 = vmatprep.subr.bf16.mxu0 0
    %941 = vmatpush1.bf16.msra.mxu0 %v726
    %942 = vmatprep.subr.bf16.mxu0 0
    %943 = vmatpush1.bf16.msra.mxu0 %v729
    %944 = vmatprep.subr.bf16.mxu0 0
    %945 = vmatpush1.bf16.msra.mxu0 %v732
    %946 = vmatprep.subr.bf16.mxu0 0
    %947 = vmatpush1.bf16.msra.mxu0 %v735
    %948 = vmatprep.subr.bf16.mxu0 0
    %949 = vmatpush1.bf16.msra.mxu0 %v738
    %950 = vmatprep.subr.bf16.mxu0 0
    %951 = vmatpush1.bf16.msra.mxu0 %v741
    %952 = vmatprep.mubr.bf16.mxu0 %v338
    %953 = vmatmul.mubr.bf16.gmra.mrb[0].mxu0 %v337
    %v954 = vpop.f32.mrb[0].mxu0
    %v955 = vadd.f32 %v450, %v954
    %v956 = vpop.f32.mrb[0].mxu0
    %v957 = vpop.f32.mrb[0].mxu0
    %v958 = vpop.f32.mrb[0].mxu0
    %959 = vdwg.mxu0
    %960 = vmatprep.subr.bf16.mxu0 0
    %961 = vmatpush1.bf16.msra.mxu0 %v744
    %962 = vmatprep.subr.bf16.mxu0 0
    %963 = vmatpush1.bf16.msra.mxu0 %v747
    %964 = vmatprep.subr.bf16.mxu0 0
    %965 = vmatpush1.bf16.msra.mxu0 %v750
    %966 = vmatprep.subr.bf16.mxu0 0
    %967 = vmatpush1.bf16.msra.mxu0 %v753
    %968 = vmatprep.subr.bf16.mxu0 0
    %969 = vmatpush1.bf16.msra.mxu0 %v756
    %970 = vmatprep.subr.bf16.mxu0 0
    %971 = vmatpush1.bf16.msra.mxu0 %v759
    %972 = vmatprep.subr.bf16.mxu0 0
    %973 = vmatpush1.bf16.msra.mxu0 %v762
    %974 = vmatprep.subr.bf16.mxu0 0
    %975 = vmatpush1.bf16.msra.mxu0 %v765
    %976 = vmatprep.subr.bf16.mxu0 0
    %977 = vmatpush1.bf16.msra.mxu0 0
    %978 = vmatprep.subr.bf16.mxu0 0
    %979 = vmatpush1.bf16.msra.mxu0 0
    %980 = vmatprep.subr.bf16.mxu0 0
    %981 = vmatpush1.bf16.msra.mxu0 0
    %982 = vmatprep.subr.bf16.mxu0 0
    %983 = vmatpush1.bf16.msra.mxu0 0
    %984 = vmatprep.subr.bf16.mxu0 0
    %985 = vmatpush1.bf16.msra.mxu0 0
    %986 = vmatprep.subr.bf16.mxu0 0
    %987 = vmatpush1.bf16.msra.mxu0 0
    %988 = vmatprep.subr.bf16.mxu0 0
    %989 = vmatpush1.bf16.msra.mxu0 0
    %990 = vmatprep.subr.bf16.mxu0 0
    %991 = vmatpush1.bf16.msra.mxu0 0
    %992 = vmatprep.mubr.bf16.mxu0 0
    %993 = vmatmul.mubr.bf16.gmra.mrb[0].mxu0 %v339
    %v994 = vpop.f32.mrb[0].mxu0
    %v995 = vadd.f32 %v955, %v994
    %v996 = vpop.f32.mrb[0].mxu0
    %v997 = vpop.f32.mrb[0].mxu0
    %v998 = vpop.f32.mrb[0].mxu0
    %999 = vdwg.mxu0
    %v1000 = vmax.f32 %v914, 0.0
    %v1001 = vmax.f32 %v916, 0.0
    %v1002 = vmax.f32 %v995, 0.0
    %v1003 = vpack.c.bf16 %v1000, %v1000
    %v1004 = vpack.c.bf16 %v1001, %v1001
    %v1005 = vpack.c.bf16 %v1002, %v1002
    %s1006 = scalar_lea.vmem [#allocation4], 576
    %v1007 = vld [vmem:[%s1006] sm:$0xff]
    %v1008 = vld [vmem:[%s1006 + $0x8] sm:$0xf]
    %v1009 = vld [vmem:[%s1006 + $0xc] sm:$0xff]
    %v1010 = vld [vmem:[%s1006 + $0x14] sm:$0xf]
    %v1011 = vld [vmem:[%s1006 + $0x18] sm:$0xff]
    %v1012 = vld [vmem:[%s1006 + $0x20] sm:$0xf]
    %v1013 = vld [vmem:[%s1006 + $0x24] sm:$0xff]
    %v1014 = vld [vmem:[%s1006 + $0x2c] sm:$0xf]
    %v1015 = vld [vmem:[%s1006 + $0x30] sm:$0xff]
    %v1016 = vld [vmem:[%s1006 + $0x38] sm:$0xf]
    %v1017 = vld [vmem:[%s1006 + $0x3c] sm:$0xff]
    %v1018 = vld [vmem:[%s1006 + $0x44] sm:$0xf]
    %v1019 = vld [vmem:[%s1006 + $0x48] sm:$0xff]
    %v1020 = vld [vmem:[%s1006 + $0x50] sm:$0xf]
    %v1021 = vld [vmem:[%s1006 + $0x54] sm:$0xff]
    %v1022 = vld [vmem:[%s1006 + $0x5c] sm:$0xf]
    %v1023 = vld [vmem:[%s1006 + $0x60] sm:$0xff]
    %v1024 = vld [vmem:[%s1006 + $0x68] sm:$0xf]
    %v1025 = vld [vmem:[%s1006 + $0x6c] sm:$0xff]
    %v1026 = vld [vmem:[%s1006 + $0x74] sm:$0xf]
    %v1027 = vld [vmem:[%s1006 + $0x78] sm:$0xff]
    %v1028 = vld [vmem:[%s1006 + $0x80] sm:$0xf]
    %v1029 = vld [vmem:[%s1006 + $0x84] sm:$0xff]
    %v1030 = vld [vmem:[%s1006 + $0x8c] sm:$0xf]
    %v1031 = vld [vmem:[%s1006 + $0x90] sm:$0xff]
    %v1032 = vld [vmem:[%s1006 + $0x98] sm:$0xf]
    %v1033 = vld [vmem:[%s1006 + $0x9c] sm:$0xff]
    %v1034 = vld [vmem:[%s1006 + $0xa4] sm:$0xf]
    %v1035 = vld [vmem:[%s1006 + $0xa8] sm:$0xff]
    %v1036 = vld [vmem:[%s1006 + $0xb0] sm:$0xf]
    %v1037 = vld [vmem:[%s1006 + $0xb4] sm:$0xff]
    %v1038 = vld [vmem:[%s1006 + $0xbc] sm:$0xf]
    %v1039 = vld [vmem:[%s1006 + $0xc0] sm:$0xff]
    %v1040 = vld [vmem:[%s1006 + $0xc8] sm:$0xf]
    %v1041 = vld [vmem:[%s1006 + $0xcc] sm:$0xff]
    %v1042 = vld [vmem:[%s1006 + $0xd4] sm:$0xf]
    %v1043 = vld [vmem:[%s1006 + $0xd8] sm:$0xff]
    %v1044 = vld [vmem:[%s1006 + $0xe0] sm:$0xf]
    %v1045 = vld [vmem:[%s1006 + $0xe4] sm:$0xff]
    %v1046 = vld [vmem:[%s1006 + $0xec] sm:$0xf]
    %v1047 = vld [vmem:[%s1006 + $0xf0] sm:$0xff]
    %v1048 = vld [vmem:[%s1006 + $0xf8] sm:$0xf]
    %v1049 = vld [vmem:[%s1006 + $0xfc] sm:$0xff]
    %v1050 = vld [vmem:[%s1006 + $0x104] sm:$0xf]
    %v1051 = vld [vmem:[%s1006 + $0x108] sm:$0xff]
    %v1052 = vld [vmem:[%s1006 + $0x110] sm:$0xf]
    %v1053 = vld [vmem:[%s1006 + $0x114] sm:$0xff]
    %v1054 = vld [vmem:[%s1006 + $0x11c] sm:$0xf]
    %v1055 = vld [vmem:[%s1006 + $0x120] sm:$0xff]
    %v1056 = vld [vmem:[%s1006 + $0x128] sm:$0xf]
    %v1057 = vld [vmem:[%s1006 + $0x12c] sm:$0xff]
    %v1058 = vld [vmem:[%s1006 + $0x134] sm:$0xf]
    %v1059 = vld [vmem:[%s1006 + $0x138] sm:$0xff]
    %v1060 = vld [vmem:[%s1006 + $0x140] sm:$0xf]
    %v1061 = vld [vmem:[%s1006 + $0x144] sm:$0xff]
    %v1062 = vld [vmem:[%s1006 + $0x14c] sm:$0xf]
    %v1063 = vld [vmem:[%s1006 + $0x150] sm:$0xff]
    %v1064 = vld [vmem:[%s1006 + $0x158] sm:$0xf]
    %v1065 = vld [vmem:[%s1006 + $0x15c] sm:$0xff]
    %v1066 = vld [vmem:[%s1006 + $0x164] sm:$0xf]
    %v1067 = vld [vmem:[%s1006 + $0x168] sm:$0xff]
    %v1068 = vld [vmem:[%s1006 + $0x170] sm:$0xf]
    %v1069 = vld [vmem:[%s1006 + $0x174] sm:$0xff]
    %v1070 = vld [vmem:[%s1006 + $0x17c] sm:$0xf]
    %v1071 = vld [vmem:[%s1006 + $0x180] sm:$0xff]
    %v1072 = vld [vmem:[%s1006 + $0x188] sm:$0xf]
    %v1073 = vld [vmem:[%s1006 + $0x18c] sm:$0xff]
    %v1074 = vld [vmem:[%s1006 + $0x194] sm:$0xf]
    %v1075 = vld [vmem:[%s1006 + $0x198] sm:$0xff]
    %v1076 = vld [vmem:[%s1006 + $0x1a0] sm:$0xf]
    %v1077 = vld [vmem:[%s1006 + $0x1a4] sm:$0xff]
    %v1078 = vld [vmem:[%s1006 + $0x1ac] sm:$0xf]
    %v1079 = vld [vmem:[%s1006 + $0x1b0] sm:$0xff]
    %v1080 = vld [vmem:[%s1006 + $0x1b8] sm:$0xf]
    %v1081 = vld [vmem:[%s1006 + $0x1bc] sm:$0xff]
    %v1082 = vld [vmem:[%s1006 + $0x1c4] sm:$0xf]
    %v1083 = vld [vmem:[%s1006 + $0x1c8] sm:$0xff]
    %v1084 = vld [vmem:[%s1006 + $0x1d0] sm:$0xf]
    %v1085 = vld [vmem:[%s1006 + $0x1d4] sm:$0xff]
    %v1086 = vld [vmem:[%s1006 + $0x1dc] sm:$0xf]
    %v1087 = vld [vmem:[%s1006 + $0x1e0] sm:$0xff]
    %v1088 = vld [vmem:[%s1006 + $0x1e8] sm:$0xf]
    %v1089 = vld [vmem:[%s1006 + $0x1ec] sm:$0xff]
    %v1090 = vld [vmem:[%s1006 + $0x1f4] sm:$0xf]
    %v1091 = vld [vmem:[%s1006 + $0x1f8] sm:$0xff]
    %v1092 = vld [vmem:[%s1006 + $0x200] sm:$0xf]
    %v1093 = vld [vmem:[%s1006 + $0x204] sm:$0xff]
    %v1094 = vld [vmem:[%s1006 + $0x20c] sm:$0xf]
    %v1095 = vld [vmem:[%s1006 + $0x210] sm:$0xff]
    %v1096 = vld [vmem:[%s1006 + $0x218] sm:$0xf]
    %v1097 = vld [vmem:[%s1006 + $0x21c] sm:$0xff]
    %v1098 = vld [vmem:[%s1006 + $0x224] sm:$0xf]
    %v1099 = vld [vmem:[%s1006 + $0x228] sm:$0xff]
    %v1100 = vld [vmem:[%s1006 + $0x230] sm:$0xf]
    %v1101 = vld [vmem:[%s1006 + $0x234] sm:$0xff]
    %v1102 = vld [vmem:[%s1006 + $0x23c] sm:$0xf]
    %s1103 = scalar_lea.vmem [#allocation6], 2
    %v1104 = vld [vmem:[%s1103] ss:$8 sm:$0x7]
    %v1106 = vlaneseq
    %v1107 = vshrl.u32 %v1106, 7
    %v1108 = vsub.s32 0, %v1107
    %v1109 = vrot.slane %v1104, %v1108
    %v1110 = vlaneseq
    %v1111 = vshrl.u32 %v1110, 7
    %v1112 = vsub.s32 1, %v1111
    %v1113 = vrot.slane %v1104, %v1112
    %v1114 = vlaneseq
    %v1115 = vshrl.u32 %v1114, 7
    %v1116 = vsub.s32 2, %v1115
    %v1117 = vrot.slane %v1104, %v1116
    %v1217 = vunpack.c.l.b16 %v1007
    %v1218 = vunpack.c.h.b16 %v1007
    %v1219 = vunpack.c.l.b16 %v1008
    %v1220 = vunpack.c.l.b16 %v1009
    %v1221 = vunpack.c.h.b16 %v1009
    %v1222 = vunpack.c.l.b16 %v1010
    %v1223 = vunpack.c.l.b16 %v1011
    %v1224 = vunpack.c.h.b16 %v1011
    %v1225 = vunpack.c.l.b16 %v1012
    %v1226 = vunpack.c.l.b16 %v1013
    %v1227 = vunpack.c.h.b16 %v1013
    %v1228 = vunpack.c.l.b16 %v1014
    %v1229 = vunpack.c.l.b16 %v1015
    %v1230 = vunpack.c.h.b16 %v1015
    %v1231 = vunpack.c.l.b16 %v1016
    %v1232 = vunpack.c.l.b16 %v1017
    %v1233 = vunpack.c.h.b16 %v1017
    %v1234 = vunpack.c.l.b16 %v1018
    %v1235 = vunpack.c.l.b16 %v1019
    %v1236 = vunpack.c.h.b16 %v1019
    %v1237 = vunpack.c.l.b16 %v1020
    %v1238 = vunpack.c.l.b16 %v1021
    %v1239 = vunpack.c.h.b16 %v1021
    %v1240 = vunpack.c.l.b16 %v1022
    %v1241 = vunpack.c.l.b16 %v1023
    %v1242 = vunpack.c.h.b16 %v1023
    %v1243 = vunpack.c.l.b16 %v1024
    %v1244 = vunpack.c.l.b16 %v1025
    %v1245 = vunpack.c.h.b16 %v1025
    %v1246 = vunpack.c.l.b16 %v1026
    %v1247 = vunpack.c.l.b16 %v1027
    %v1248 = vunpack.c.h.b16 %v1027
    %v1249 = vunpack.c.l.b16 %v1028
    %v1250 = vunpack.c.l.b16 %v1029
    %v1251 = vunpack.c.h.b16 %v1029
    %v1252 = vunpack.c.l.b16 %v1030
    %v1253 = vunpack.c.l.b16 %v1031
    %v1254 = vunpack.c.h.b16 %v1031
    %v1255 = vunpack.c.l.b16 %v1032
    %v1256 = vunpack.c.l.b16 %v1033
    %v1257 = vunpack.c.h.b16 %v1033
    %v1258 = vunpack.c.l.b16 %v1034
    %v1259 = vunpack.c.l.b16 %v1035
    %v1260 = vunpack.c.h.b16 %v1035
    %v1261 = vunpack.c.l.b16 %v1036
    %v1262 = vunpack.c.l.b16 %v1037
    %v1263 = vunpack.c.h.b16 %v1037
    %v1264 = vunpack.c.l.b16 %v1038
    %v1265 = vunpack.c.l.b16 %v1039
    %v1266 = vunpack.c.h.b16 %v1039
    %v1267 = vunpack.c.l.b16 %v1040
    %v1268 = vunpack.c.l.b16 %v1041
    %v1269 = vunpack.c.h.b16 %v1041
    %v1270 = vunpack.c.l.b16 %v1042
    %v1271 = vunpack.c.l.b16 %v1043
    %v1272 = vunpack.c.h.b16 %v1043
    %v1273 = vunpack.c.l.b16 %v1044
    %v1274 = vunpack.c.l.b16 %v1045
    %v1275 = vunpack.c.h.b16 %v1045
    %v1276 = vunpack.c.l.b16 %v1046
    %v1277 = vunpack.c.l.b16 %v1047
    %v1278 = vunpack.c.h.b16 %v1047
    %v1279 = vunpack.c.l.b16 %v1048
    %v1280 = vunpack.c.l.b16 %v1049
    %v1281 = vunpack.c.h.b16 %v1049
    %v1282 = vunpack.c.l.b16 %v1050
    %v1283 = vunpack.c.l.b16 %v1051
    %v1284 = vunpack.c.h.b16 %v1051
    %v1285 = vunpack.c.l.b16 %v1052
    %v1286 = vunpack.c.l.b16 %v1053
    %v1287 = vunpack.c.h.b16 %v1053
    %v1288 = vunpack.c.l.b16 %v1054
    %v1289 = vunpack.c.l.b16 %v1055
    %v1290 = vunpack.c.h.b16 %v1055
    %v1291 = vunpack.c.l.b16 %v1056
    %v1292 = vunpack.c.l.b16 %v1057
    %v1293 = vunpack.c.h.b16 %v1057
    %v1294 = vunpack.c.l.b16 %v1058
    %v1295 = vunpack.c.l.b16 %v1059
    %v1296 = vunpack.c.h.b16 %v1059
    %v1297 = vunpack.c.l.b16 %v1060
    %v1298 = vunpack.c.l.b16 %v1061
    %v1299 = vunpack.c.h.b16 %v1061
    %v1300 = vunpack.c.l.b16 %v1062
    %v1301 = vunpack.c.l.b16 %v1063
    %v1302 = vunpack.c.h.b16 %v1063
    %v1303 = vunpack.c.l.b16 %v1064
    %v1304 = vunpack.c.l.b16 %v1065
    %v1305 = vunpack.c.h.b16 %v1065
    %v1306 = vunpack.c.l.b16 %v1066
    %v1307 = vunpack.c.l.b16 %v1067
    %v1308 = vunpack.c.h.b16 %v1067
    %v1309 = vunpack.c.l.b16 %v1068
    %v1310 = vunpack.c.l.b16 %v1069
    %v1311 = vunpack.c.h.b16 %v1069
    %v1312 = vunpack.c.l.b16 %v1070
    %v1313 = vunpack.c.l.b16 %v1071
    %v1314 = vunpack.c.h.b16 %v1071
    %v1315 = vunpack.c.l.b16 %v1072
    %v1316 = vunpack.c.l.b16 %v1073
    %v1317 = vunpack.c.h.b16 %v1073
    %v1318 = vunpack.c.l.b16 %v1074
    %v1319 = vunpack.c.l.b16 %v1075
    %v1320 = vunpack.c.h.b16 %v1075
    %v1321 = vunpack.c.l.b16 %v1076
    %v1322 = vunpack.c.l.b16 %v1077
    %v1323 = vunpack.c.h.b16 %v1077
    %v1324 = vunpack.c.l.b16 %v1078
    %v1325 = vunpack.c.l.b16 %v1079
    %v1326 = vunpack.c.h.b16 %v1079
    %v1327 = vunpack.c.l.b16 %v1080
    %v1328 = vunpack.c.l.b16 %v1081
    %v1329 = vunpack.c.h.b16 %v1081
    %v1330 = vunpack.c.l.b16 %v1082
    %v1331 = vunpack.c.l.b16 %v1083
    %v1332 = vunpack.c.h.b16 %v1083
    %v1333 = vunpack.c.l.b16 %v1084
    %v1334 = vunpack.c.l.b16 %v1085
    %v1335 = vunpack.c.h.b16 %v1085
    %v1336 = vunpack.c.l.b16 %v1086
    %v1337 = vunpack.c.l.b16 %v1087
    %v1338 = vunpack.c.h.b16 %v1087
    %v1339 = vunpack.c.l.b16 %v1088
    %v1340 = vunpack.c.l.b16 %v1089
    %v1341 = vunpack.c.h.b16 %v1089
    %v1342 = vunpack.c.l.b16 %v1090
    %v1343 = vunpack.c.l.b16 %v1091
    %v1344 = vunpack.c.h.b16 %v1091
    %v1345 = vunpack.c.l.b16 %v1092
    %v1346 = vunpack.c.l.b16 %v1093
    %v1347 = vunpack.c.h.b16 %v1093
    %v1348 = vunpack.c.l.b16 %v1094
    %v1349 = vunpack.c.l.b16 %v1095
    %v1350 = vunpack.c.h.b16 %v1095
    %v1351 = vunpack.c.l.b16 %v1096
    %v1352 = vunpack.c.l.b16 %v1097
    %v1353 = vunpack.c.h.b16 %v1097
    %v1354 = vunpack.c.l.b16 %v1098
    %v1355 = vunpack.c.l.b16 %v1099
    %v1356 = vunpack.c.h.b16 %v1099
    %v1357 = vunpack.c.l.b16 %v1100
    %v1358 = vunpack.c.l.b16 %v1101
    %v1359 = vunpack.c.h.b16 %v1101
    %v1360 = vunpack.c.l.b16 %v1102
    %v1361 = vpack.c.b16 %v1220, %v1217
    %v1362 = vpack.c.b16 %v1221, %v1218
    %v1363 = vpack.c.b16 %v1222, %v1219
    %v1364 = vpack.c.b16 %v1226, %v1223
    %v1365 = vpack.c.b16 %v1227, %v1224
    %v1366 = vpack.c.b16 %v1228, %v1225
    %v1367 = vpack.c.b16 %v1232, %v1229
    %v1368 = vpack.c.b16 %v1233, %v1230
    %v1369 = vpack.c.b16 %v1234, %v1231
    %v1370 = vpack.c.b16 %v1238, %v1235
    %v1371 = vpack.c.b16 %v1239, %v1236
    %v1372 = vpack.c.b16 %v1240, %v1237
    %v1373 = vpack.c.b16 %v1244, %v1241
    %v1374 = vpack.c.b16 %v1245, %v1242
    %v1375 = vpack.c.b16 %v1246, %v1243
    %v1376 = vpack.c.b16 %v1250, %v1247
    %v1377 = vpack.c.b16 %v1251, %v1248
    %v1378 = vpack.c.b16 %v1252, %v1249
    %v1379 = vpack.c.b16 %v1256, %v1253
    %v1380 = vpack.c.b16 %v1257, %v1254
    %v1381 = vpack.c.b16 %v1258, %v1255
    %v1382 = vpack.c.b16 %v1262, %v1259
    %v1383 = vpack.c.b16 %v1263, %v1260
    %v1384 = vpack.c.b16 %v1264, %v1261
    %v1385 = vpack.c.b16 %v1268, %v1265
    %v1386 = vpack.c.b16 %v1269, %v1266
    %v1387 = vpack.c.b16 %v1270, %v1267
    %v1388 = vpack.c.b16 %v1274, %v1271
    %v1389 = vpack.c.b16 %v1275, %v1272
    %v1390 = vpack.c.b16 %v1276, %v1273
    %v1391 = vpack.c.b16 %v1280, %v1277
    %v1392 = vpack.c.b16 %v1281, %v1278
    %v1393 = vpack.c.b16 %v1282, %v1279
    %v1394 = vpack.c.b16 %v1286, %v1283
    %v1395 = vpack.c.b16 %v1287, %v1284
    %v1396 = vpack.c.b16 %v1288, %v1285
    %v1397 = vpack.c.b16 %v1292, %v1289
    %v1398 = vpack.c.b16 %v1293, %v1290
    %v1399 = vpack.c.b16 %v1294, %v1291
    %v1400 = vpack.c.b16 %v1298, %v1295
    %v1401 = vpack.c.b16 %v1299, %v1296
    %v1402 = vpack.c.b16 %v1300, %v1297
    %v1403 = vpack.c.b16 %v1304, %v1301
    %v1404 = vpack.c.b16 %v1305, %v1302
    %v1405 = vpack.c.b16 %v1306, %v1303
    %v1406 = vpack.c.b16 %v1310, %v1307
    %v1407 = vpack.c.b16 %v1311, %v1308
    %v1408 = vpack.c.b16 %v1312, %v1309
    %v1409 = vpack.c.b16 %v1316, %v1313
    %v1410 = vpack.c.b16 %v1317, %v1314
    %v1411 = vpack.c.b16 %v1318, %v1315
    %v1412 = vpack.c.b16 %v1322, %v1319
    %v1413 = vpack.c.b16 %v1323, %v1320
    %v1414 = vpack.c.b16 %v1324, %v1321
    %v1415 = vpack.c.b16 %v1328, %v1325
    %v1416 = vpack.c.b16 %v1329, %v1326
    %v1417 = vpack.c.b16 %v1330, %v1327
    %v1418 = vpack.c.b16 %v1334, %v1331
    %v1419 = vpack.c.b16 %v1335, %v1332
    %v1420 = vpack.c.b16 %v1336, %v1333
    %v1421 = vpack.c.b16 %v1340, %v1337
    %v1422 = vpack.c.b16 %v1341, %v1338
    %v1423 = vpack.c.b16 %v1342, %v1339
    %v1424 = vpack.c.b16 %v1346, %v1343
    %v1425 = vpack.c.b16 %v1347, %v1344
    %v1426 = vpack.c.b16 %v1348, %v1345
    %v1427 = vpack.c.b16 %v1352, %v1349
    %v1428 = vpack.c.b16 %v1353, %v1350
    %v1429 = vpack.c.b16 %v1354, %v1351
    %v1430 = vpack.c.b16 %v1358, %v1355
    %v1431 = vpack.c.b16 %v1359, %v1356
    %v1432 = vpack.c.b16 %v1360, %v1357
    %1505 = vmatprep.subr.bf16.mxu0 %v1362
    %1506 = vmatpush1.bf16.msra.mxu0 %v1361
    %1507 = vmatprep.subr.bf16.mxu0 %v1365
    %1508 = vmatpush1.bf16.msra.mxu0 %v1364
    %1509 = vmatprep.subr.bf16.mxu0 %v1368
    %1510 = vmatpush1.bf16.msra.mxu0 %v1367
    %1511 = vmatprep.subr.bf16.mxu0 %v1371
    %1512 = vmatpush1.bf16.msra.mxu0 %v1370
    %1513 = vmatprep.subr.bf16.mxu0 %v1374
    %1514 = vmatpush1.bf16.msra.mxu0 %v1373
    %1515 = vmatprep.subr.bf16.mxu0 %v1377
    %1516 = vmatpush1.bf16.msra.mxu0 %v1376
    %1517 = vmatprep.subr.bf16.mxu0 %v1380
    %1518 = vmatpush1.bf16.msra.mxu0 %v1379
    %1519 = vmatprep.subr.bf16.mxu0 %v1383
    %1520 = vmatpush1.bf16.msra.mxu0 %v1382
    %1521 = vmatprep.subr.bf16.mxu0 %v1386
    %1522 = vmatpush1.bf16.msra.mxu0 %v1385
    %1523 = vmatprep.subr.bf16.mxu0 %v1389
    %1524 = vmatpush1.bf16.msra.mxu0 %v1388
    %1525 = vmatprep.subr.bf16.mxu0 %v1392
    %1526 = vmatpush1.bf16.msra.mxu0 %v1391
    %1527 = vmatprep.subr.bf16.mxu0 %v1395
    %1528 = vmatpush1.bf16.msra.mxu0 %v1394
    %1529 = vmatprep.subr.bf16.mxu0 %v1398
    %1530 = vmatpush1.bf16.msra.mxu0 %v1397
    %1531 = vmatprep.subr.bf16.mxu0 %v1401
    %1532 = vmatpush1.bf16.msra.mxu0 %v1400
    %1533 = vmatprep.subr.bf16.mxu0 %v1404
    %1534 = vmatpush1.bf16.msra.mxu0 %v1403
    %1535 = vmatprep.subr.bf16.mxu0 %v1407
    %1536 = vmatpush1.bf16.msra.mxu0 %v1406
    %1537 = vmatprep.mubr.bf16.mxu0 %v1004
    %1538 = vmatmul.mubr.bf16.gmra.mrb[0].mxu0 %v1003
    %v1539 = vpop.f32.mrb[0].mxu0
    %v1540 = vadd.f32 %v1109, %v1539
    %v1541 = vpop.f32.mrb[0].mxu0
    %v1542 = vadd.f32 %v1113, %v1541
    %v1543 = vpop.f32.mrb[0].mxu0
    %v1544 = vpop.f32.mrb[0].mxu0
    %1545 = vdwg.mxu0
    %1546 = vmatprep.subr.bf16.mxu0 %v1410
    %1547 = vmatpush1.bf16.msra.mxu0 %v1409
    %1548 = vmatprep.subr.bf16.mxu0 %v1413
    %1549 = vmatpush1.bf16.msra.mxu0 %v1412
    %1550 = vmatprep.subr.bf16.mxu0 %v1416
    %1551 = vmatpush1.bf16.msra.mxu0 %v1415
    %1552 = vmatprep.subr.bf16.mxu0 %v1419
    %1553 = vmatpush1.bf16.msra.mxu0 %v1418
    %1554 = vmatprep.subr.bf16.mxu0 %v1422
    %1555 = vmatpush1.bf16.msra.mxu0 %v1421
    %1556 = vmatprep.subr.bf16.mxu0 %v1425
    %1557 = vmatpush1.bf16.msra.mxu0 %v1424
    %1558 = vmatprep.subr.bf16.mxu0 %v1428
    %1559 = vmatpush1.bf16.msra.mxu0 %v1427
    %1560 = vmatprep.subr.bf16.mxu0 %v1431
    %1561 = vmatpush1.bf16.msra.mxu0 %v1430
    %1562 = vmatprep.subr.bf16.mxu0 0
    %1563 = vmatpush1.bf16.msra.mxu0 0
    %1564 = vmatprep.subr.bf16.mxu0 0
    %1565 = vmatpush1.bf16.msra.mxu0 0
    %1566 = vmatprep.subr.bf16.mxu0 0
    %1567 = vmatpush1.bf16.msra.mxu0 0
    %1568 = vmatprep.subr.bf16.mxu0 0
    %1569 = vmatpush1.bf16.msra.mxu0 0
    %1570 = vmatprep.subr.bf16.mxu0 0
    %1571 = vmatpush1.bf16.msra.mxu0 0
    %1572 = vmatprep.subr.bf16.mxu0 0
    %1573 = vmatpush1.bf16.msra.mxu0 0
    %1574 = vmatprep.subr.bf16.mxu0 0
    %1575 = vmatpush1.bf16.msra.mxu0 0
    %1576 = vmatprep.subr.bf16.mxu0 0
    %1577 = vmatpush1.bf16.msra.mxu0 0
    %1578 = vmatprep.mubr.bf16.mxu0 0
    %1579 = vmatmul.mubr.bf16.gmra.mrb[0].mxu0 %v1005
    %v1580 = vpop.f32.mrb[0].mxu0
    %v1581 = vadd.f32 %v1540, %v1580
    %v1582 = vpop.f32.mrb[0].mxu0
    %v1583 = vadd.f32 %v1542, %v1582
    %v1584 = vpop.f32.mrb[0].mxu0
    %v1585 = vpop.f32.mrb[0].mxu0
    %1586 = vdwg.mxu0
    %1587 = vmatprep.subr.bf16.mxu0 0
    %1588 = vmatpush1.bf16.msra.mxu0 %v1363
    %1589 = vmatprep.subr.bf16.mxu0 0
    %1590 = vmatpush1.bf16.msra.mxu0 %v1366
    %1591 = vmatprep.subr.bf16.mxu0 0
    %1592 = vmatpush1.bf16.msra.mxu0 %v1369
    %1593 = vmatprep.subr.bf16.mxu0 0
    %1594 = vmatpush1.bf16.msra.mxu0 %v1372
    %1595 = vmatprep.subr.bf16.mxu0 0
    %1596 = vmatpush1.bf16.msra.mxu0 %v1375
    %1597 = vmatprep.subr.bf16.mxu0 0
    %1598 = vmatpush1.bf16.msra.mxu0 %v1378
    %1599 = vmatprep.subr.bf16.mxu0 0
    %1600 = vmatpush1.bf16.msra.mxu0 %v1381
    %1601 = vmatprep.subr.bf16.mxu0 0
    %1602 = vmatpush1.bf16.msra.mxu0 %v1384
    %1603 = vmatprep.subr.bf16.mxu0 0
    %1604 = vmatpush1.bf16.msra.mxu0 %v1387
    %1605 = vmatprep.subr.bf16.mxu0 0
    %1606 = vmatpush1.bf16.msra.mxu0 %v1390
    %1607 = vmatprep.subr.bf16.mxu0 0
    %1608 = vmatpush1.bf16.msra.mxu0 %v1393
    %1609 = vmatprep.subr.bf16.mxu0 0
    %1610 = vmatpush1.bf16.msra.mxu0 %v1396
    %1611 = vmatprep.subr.bf16.mxu0 0
    %1612 = vmatpush1.bf16.msra.mxu0 %v1399
    %1613 = vmatprep.subr.bf16.mxu0 0
    %1614 = vmatpush1.bf16.msra.mxu0 %v1402
    %1615 = vmatprep.subr.bf16.mxu0 0
    %1616 = vmatpush1.bf16.msra.mxu0 %v1405
    %1617 = vmatprep.subr.bf16.mxu0 0
    %1618 = vmatpush1.bf16.msra.mxu0 %v1408
    %1619 = vmatprep.mubr.bf16.mxu0 %v1004
    %1620 = vmatmul.mubr.bf16.gmra.mrb[0].mxu0 %v1003
    %v1621 = vpop.f32.mrb[0].mxu0
    %v1622 = vadd.f32 %v1117, %v1621
    %v1623 = vpop.f32.mrb[0].mxu0
    %v1624 = vpop.f32.mrb[0].mxu0
    %v1625 = vpop.f32.mrb[0].mxu0
    %1626 = vdwg.mxu0
    %1627 = vmatprep.subr.bf16.mxu0 0
    %1628 = vmatpush1.bf16.msra.mxu0 %v1411
    %1629 = vmatprep.subr.bf16.mxu0 0
    %1630 = vmatpush1.bf16.msra.mxu0 %v1414
    %1631 = vmatprep.subr.bf16.mxu0 0
    %1632 = vmatpush1.bf16.msra.mxu0 %v1417
    %1633 = vmatprep.subr.bf16.mxu0 0
    %1634 = vmatpush1.bf16.msra.mxu0 %v1420
    %1635 = vmatprep.subr.bf16.mxu0 0
    %1636 = vmatpush1.bf16.msra.mxu0 %v1423
    %1637 = vmatprep.subr.bf16.mxu0 0
    %1638 = vmatpush1.bf16.msra.mxu0 %v1426
    %1639 = vmatprep.subr.bf16.mxu0 0
    %1640 = vmatpush1.bf16.msra.mxu0 %v1429
    %1641 = vmatprep.subr.bf16.mxu0 0
    %1642 = vmatpush1.bf16.msra.mxu0 %v1432
    %1643 = vmatprep.subr.bf16.mxu0 0
    %1644 = vmatpush1.bf16.msra.mxu0 0
    %1645 = vmatprep.subr.bf16.mxu0 0
    %1646 = vmatpush1.bf16.msra.mxu0 0
    %1647 = vmatprep.subr.bf16.mxu0 0
    %1648 = vmatpush1.bf16.msra.mxu0 0
    %1649 = vmatprep.subr.bf16.mxu0 0
    %1650 = vmatpush1.bf16.msra.mxu0 0
    %1651 = vmatprep.subr.bf16.mxu0 0
    %1652 = vmatpush1.bf16.msra.mxu0 0
    %1653 = vmatprep.subr.bf16.mxu0 0
    %1654 = vmatpush1.bf16.msra.mxu0 0
    %1655 = vmatprep.subr.bf16.mxu0 0
    %1656 = vmatpush1.bf16.msra.mxu0 0
    %1657 = vmatprep.subr.bf16.mxu0 0
    %1658 = vmatpush1.bf16.msra.mxu0 0
    %1659 = vmatprep.mubr.bf16.mxu0 0
    %1660 = vmatmul.mubr.bf16.gmra.mrb[0].mxu0 %v1005
    %v1661 = vpop.f32.mrb[0].mxu0
    %v1662 = vadd.f32 %v1622, %v1661
    %v1663 = vpop.f32.mrb[0].mxu0
    %v1664 = vpop.f32.mrb[0].mxu0
    %v1665 = vpop.f32.mrb[0].mxu0
    %1666 = vdwg.mxu0
    %v1667 = vadd.f32 %v1581, %v334
    %v1668 = vadd.f32 %v1583, %v335
    %v1669 = vadd.f32 %v1662, %v336
    %v1670 = vmax.f32 %v1667, 0.0
    %v1671 = vmax.f32 %v1668, 0.0
    %v1672 = vmax.f32 %v1669, 0.0
    %v1673 = vpack.c.bf16 %v1670, %v1670
    %v1674 = vpack.c.bf16 %v1671, %v1671
    %v1675 = vpack.c.bf16 %v1672, %v1672
    %s1676 = scalar_lea.vmem [#allocation4], 1152
    %v1677 = vld [vmem:[%s1676] sm:$0xff]
    %v1678 = vld [vmem:[%s1676 + $0x8] sm:$0xf]
    %v1679 = vld [vmem:[%s1676 + $0xc] sm:$0xff]
    %v1680 = vld [vmem:[%s1676 + $0x14] sm:$0xf]
    %v1681 = vld [vmem:[%s1676 + $0x18] sm:$0xff]
    %v1682 = vld [vmem:[%s1676 + $0x20] sm:$0xf]
    %v1683 = vld [vmem:[%s1676 + $0x24] sm:$0xff]
    %v1684 = vld [vmem:[%s1676 + $0x2c] sm:$0xf]
    %v1685 = vld [vmem:[%s1676 + $0x30] sm:$0xff]
    %v1686 = vld [vmem:[%s1676 + $0x38] sm:$0xf]
    %v1687 = vld [vmem:[%s1676 + $0x3c] sm:$0xff]
    %v1688 = vld [vmem:[%s1676 + $0x44] sm:$0xf]
    %v1689 = vld [vmem:[%s1676 + $0x48] sm:$0xff]
    %v1690 = vld [vmem:[%s1676 + $0x50] sm:$0xf]
    %v1691 = vld [vmem:[%s1676 + $0x54] sm:$0xff]
    %v1692 = vld [vmem:[%s1676 + $0x5c] sm:$0xf]
    %v1693 = vld [vmem:[%s1676 + $0x60] sm:$0xff]
    %v1694 = vld [vmem:[%s1676 + $0x68] sm:$0xf]
    %v1695 = vld [vmem:[%s1676 + $0x6c] sm:$0xff]
    %v1696 = vld [vmem:[%s1676 + $0x74] sm:$0xf]
    %v1697 = vld [vmem:[%s1676 + $0x78] sm:$0xff]
    %v1698 = vld [vmem:[%s1676 + $0x80] sm:$0xf]
    %v1699 = vld [vmem:[%s1676 + $0x84] sm:$0xff]
    %v1700 = vld [vmem:[%s1676 + $0x8c] sm:$0xf]
    %v1701 = vld [vmem:[%s1676 + $0x90] sm:$0xff]
    %v1702 = vld [vmem:[%s1676 + $0x98] sm:$0xf]
    %v1703 = vld [vmem:[%s1676 + $0x9c] sm:$0xff]
    %v1704 = vld [vmem:[%s1676 + $0xa4] sm:$0xf]
    %v1705 = vld [vmem:[%s1676 + $0xa8] sm:$0xff]
    %v1706 = vld [vmem:[%s1676 + $0xb0] sm:$0xf]
    %v1707 = vld [vmem:[%s1676 + $0xb4] sm:$0xff]
    %v1708 = vld [vmem:[%s1676 + $0xbc] sm:$0xf]
    %v1709 = vld [vmem:[%s1676 + $0xc0] sm:$0xff]
    %v1710 = vld [vmem:[%s1676 + $0xc8] sm:$0xf]
    %v1711 = vld [vmem:[%s1676 + $0xcc] sm:$0xff]
    %v1712 = vld [vmem:[%s1676 + $0xd4] sm:$0xf]
    %v1713 = vld [vmem:[%s1676 + $0xd8] sm:$0xff]
    %v1714 = vld [vmem:[%s1676 + $0xe0] sm:$0xf]
    %v1715 = vld [vmem:[%s1676 + $0xe4] sm:$0xff]
    %v1716 = vld [vmem:[%s1676 + $0xec] sm:$0xf]
    %v1717 = vld [vmem:[%s1676 + $0xf0] sm:$0xff]
    %v1718 = vld [vmem:[%s1676 + $0xf8] sm:$0xf]
    %v1719 = vld [vmem:[%s1676 + $0xfc] sm:$0xff]
    %v1720 = vld [vmem:[%s1676 + $0x104] sm:$0xf]
    %v1721 = vld [vmem:[%s1676 + $0x108] sm:$0xff]
    %v1722 = vld [vmem:[%s1676 + $0x110] sm:$0xf]
    %v1723 = vld [vmem:[%s1676 + $0x114] sm:$0xff]
    %v1724 = vld [vmem:[%s1676 + $0x11c] sm:$0xf]
    %v1725 = vld [vmem:[%s1676 + $0x120] sm:$0xff]
    %v1726 = vld [vmem:[%s1676 + $0x128] sm:$0xf]
    %v1727 = vld [vmem:[%s1676 + $0x12c] sm:$0xff]
    %v1728 = vld [vmem:[%s1676 + $0x134] sm:$0xf]
    %v1729 = vld [vmem:[%s1676 + $0x138] sm:$0xff]
    %v1730 = vld [vmem:[%s1676 + $0x140] sm:$0xf]
    %v1731 = vld [vmem:[%s1676 + $0x144] sm:$0xff]
    %v1732 = vld [vmem:[%s1676 + $0x14c] sm:$0xf]
    %v1733 = vld [vmem:[%s1676 + $0x150] sm:$0xff]
    %v1734 = vld [vmem:[%s1676 + $0x158] sm:$0xf]
    %v1735 = vld [vmem:[%s1676 + $0x15c] sm:$0xff]
    %v1736 = vld [vmem:[%s1676 + $0x164] sm:$0xf]
    %v1737 = vld [vmem:[%s1676 + $0x168] sm:$0xff]
    %v1738 = vld [vmem:[%s1676 + $0x170] sm:$0xf]
    %v1739 = vld [vmem:[%s1676 + $0x174] sm:$0xff]
    %v1740 = vld [vmem:[%s1676 + $0x17c] sm:$0xf]
    %v1741 = vld [vmem:[%s1676 + $0x180] sm:$0xff]
    %v1742 = vld [vmem:[%s1676 + $0x188] sm:$0xf]
    %v1743 = vld [vmem:[%s1676 + $0x18c] sm:$0xff]
    %v1744 = vld [vmem:[%s1676 + $0x194] sm:$0xf]
    %v1745 = vld [vmem:[%s1676 + $0x198] sm:$0xff]
    %v1746 = vld [vmem:[%s1676 + $0x1a0] sm:$0xf]
    %v1747 = vld [vmem:[%s1676 + $0x1a4] sm:$0xff]
    %v1748 = vld [vmem:[%s1676 + $0x1ac] sm:$0xf]
    %v1749 = vld [vmem:[%s1676 + $0x1b0] sm:$0xff]
    %v1750 = vld [vmem:[%s1676 + $0x1b8] sm:$0xf]
    %v1751 = vld [vmem:[%s1676 + $0x1bc] sm:$0xff]
    %v1752 = vld [vmem:[%s1676 + $0x1c4] sm:$0xf]
    %v1753 = vld [vmem:[%s1676 + $0x1c8] sm:$0xff]
    %v1754 = vld [vmem:[%s1676 + $0x1d0] sm:$0xf]
    %v1755 = vld [vmem:[%s1676 + $0x1d4] sm:$0xff]
    %v1756 = vld [vmem:[%s1676 + $0x1dc] sm:$0xf]
    %v1757 = vld [vmem:[%s1676 + $0x1e0] sm:$0xff]
    %v1758 = vld [vmem:[%s1676 + $0x1e8] sm:$0xf]
    %v1759 = vld [vmem:[%s1676 + $0x1ec] sm:$0xff]
    %v1760 = vld [vmem:[%s1676 + $0x1f4] sm:$0xf]
    %v1761 = vld [vmem:[%s1676 + $0x1f8] sm:$0xff]
    %v1762 = vld [vmem:[%s1676 + $0x200] sm:$0xf]
    %v1763 = vld [vmem:[%s1676 + $0x204] sm:$0xff]
    %v1764 = vld [vmem:[%s1676 + $0x20c] sm:$0xf]
    %v1765 = vld [vmem:[%s1676 + $0x210] sm:$0xff]
    %v1766 = vld [vmem:[%s1676 + $0x218] sm:$0xf]
    %v1767 = vld [vmem:[%s1676 + $0x21c] sm:$0xff]
    %v1768 = vld [vmem:[%s1676 + $0x224] sm:$0xf]
    %v1769 = vld [vmem:[%s1676 + $0x228] sm:$0xff]
    %v1770 = vld [vmem:[%s1676 + $0x230] sm:$0xf]
    %v1771 = vld [vmem:[%s1676 + $0x234] sm:$0xff]
    %v1772 = vld [vmem:[%s1676 + $0x23c] sm:$0xf]
    %s1773 = scalar_lea.vmem [#allocation6], 3
    %v1774 = vld [vmem:[%s1773] ss:$8 sm:$0x7]
    %v1776 = vlaneseq
    %v1777 = vshrl.u32 %v1776, 7
    %v1778 = vsub.s32 0, %v1777
    %v1779 = vrot.slane %v1774, %v1778
    %v1780 = vlaneseq
    %v1781 = vshrl.u32 %v1780, 7
    %v1782 = vsub.s32 1, %v1781
    %v1783 = vrot.slane %v1774, %v1782
    %v1784 = vlaneseq
    %v1785 = vshrl.u32 %v1784, 7
    %v1786 = vsub.s32 2, %v1785
    %v1787 = vrot.slane %v1774, %v1786
    %v1887 = vunpack.c.l.b16 %v1677
    %v1888 = vunpack.c.h.b16 %v1677
    %v1889 = vunpack.c.l.b16 %v1678
    %v1890 = vunpack.c.l.b16 %v1679
    %v1891 = vunpack.c.h.b16 %v1679
    %v1892 = vunpack.c.l.b16 %v1680
    %v1893 = vunpack.c.l.b16 %v1681
    %v1894 = vunpack.c.h.b16 %v1681
    %v1895 = vunpack.c.l.b16 %v1682
    %v1896 = vunpack.c.l.b16 %v1683
    %v1897 = vunpack.c.h.b16 %v1683
    %v1898 = vunpack.c.l.b16 %v1684
    %v1899 = vunpack.c.l.b16 %v1685
    %v1900 = vunpack.c.h.b16 %v1685
    %v1901 = vunpack.c.l.b16 %v1686
    %v1902 = vunpack.c.l.b16 %v1687
    %v1903 = vunpack.c.h.b16 %v1687
    %v1904 = vunpack.c.l.b16 %v1688
    %v1905 = vunpack.c.l.b16 %v1689
    %v1906 = vunpack.c.h.b16 %v1689
    %v1907 = vunpack.c.l.b16 %v1690
    %v1908 = vunpack.c.l.b16 %v1691
    %v1909 = vunpack.c.h.b16 %v1691
    %v1910 = vunpack.c.l.b16 %v1692
    %v1911 = vunpack.c.l.b16 %v1693
    %v1912 = vunpack.c.h.b16 %v1693
    %v1913 = vunpack.c.l.b16 %v1694
    %v1914 = vunpack.c.l.b16 %v1695
    %v1915 = vunpack.c.h.b16 %v1695
    %v1916 = vunpack.c.l.b16 %v1696
    %v1917 = vunpack.c.l.b16 %v1697
    %v1918 = vunpack.c.h.b16 %v1697
    %v1919 = vunpack.c.l.b16 %v1698
    %v1920 = vunpack.c.l.b16 %v1699
    %v1921 = vunpack.c.h.b16 %v1699
    %v1922 = vunpack.c.l.b16 %v1700
    %v1923 = vunpack.c.l.b16 %v1701
    %v1924 = vunpack.c.h.b16 %v1701
    %v1925 = vunpack.c.l.b16 %v1702
    %v1926 = vunpack.c.l.b16 %v1703
    %v1927 = vunpack.c.h.b16 %v1703
    %v1928 = vunpack.c.l.b16 %v1704
    %v1929 = vunpack.c.l.b16 %v1705
    %v1930 = vunpack.c.h.b16 %v1705
    %v1931 = vunpack.c.l.b16 %v1706
    %v1932 = vunpack.c.l.b16 %v1707
    %v1933 = vunpack.c.h.b16 %v1707
    %v1934 = vunpack.c.l.b16 %v1708
    %v1935 = vunpack.c.l.b16 %v1709
    %v1936 = vunpack.c.h.b16 %v1709
    %v1937 = vunpack.c.l.b16 %v1710
    %v1938 = vunpack.c.l.b16 %v1711
    %v1939 = vunpack.c.h.b16 %v1711
    %v1940 = vunpack.c.l.b16 %v1712
    %v1941 = vunpack.c.l.b16 %v1713
    %v1942 = vunpack.c.h.b16 %v1713
    %v1943 = vunpack.c.l.b16 %v1714
    %v1944 = vunpack.c.l.b16 %v1715
    %v1945 = vunpack.c.h.b16 %v1715
    %v1946 = vunpack.c.l.b16 %v1716
    %v1947 = vunpack.c.l.b16 %v1717
    %v1948 = vunpack.c.h.b16 %v1717
    %v1949 = vunpack.c.l.b16 %v1718
    %v1950 = vunpack.c.l.b16 %v1719
    %v1951 = vunpack.c.h.b16 %v1719
    %v1952 = vunpack.c.l.b16 %v1720
    %v1953 = vunpack.c.l.b16 %v1721
    %v1954 = vunpack.c.h.b16 %v1721
    %v1955 = vunpack.c.l.b16 %v1722
    %v1956 = vunpack.c.l.b16 %v1723
    %v1957 = vunpack.c.h.b16 %v1723
    %v1958 = vunpack.c.l.b16 %v1724
    %v1959 = vunpack.c.l.b16 %v1725
    %v1960 = vunpack.c.h.b16 %v1725
    %v1961 = vunpack.c.l.b16 %v1726
    %v1962 = vunpack.c.l.b16 %v1727
    %v1963 = vunpack.c.h.b16 %v1727
    %v1964 = vunpack.c.l.b16 %v1728
    %v1965 = vunpack.c.l.b16 %v1729
    %v1966 = vunpack.c.h.b16 %v1729
    %v1967 = vunpack.c.l.b16 %v1730
    %v1968 = vunpack.c.l.b16 %v1731
    %v1969 = vunpack.c.h.b16 %v1731
    %v1970 = vunpack.c.l.b16 %v1732
    %v1971 = vunpack.c.l.b16 %v1733
    %v1972 = vunpack.c.h.b16 %v1733
    %v1973 = vunpack.c.l.b16 %v1734
    %v1974 = vunpack.c.l.b16 %v1735
    %v1975 = vunpack.c.h.b16 %v1735
    %v1976 = vunpack.c.l.b16 %v1736
    %v1977 = vunpack.c.l.b16 %v1737
    %v1978 = vunpack.c.h.b16 %v1737
    %v1979 = vunpack.c.l.b16 %v1738
    %v1980 = vunpack.c.l.b16 %v1739
    %v1981 = vunpack.c.h.b16 %v1739
    %v1982 = vunpack.c.l.b16 %v1740
    %v1983 = vunpack.c.l.b16 %v1741
    %v1984 = vunpack.c.h.b16 %v1741
    %v1985 = vunpack.c.l.b16 %v1742
    %v1986 = vunpack.c.l.b16 %v1743
    %v1987 = vunpack.c.h.b16 %v1743
    %v1988 = vunpack.c.l.b16 %v1744
    %v1989 = vunpack.c.l.b16 %v1745
    %v1990 = vunpack.c.h.b16 %v1745
    %v1991 = vunpack.c.l.b16 %v1746
    %v1992 = vunpack.c.l.b16 %v1747
    %v1993 = vunpack.c.h.b16 %v1747
    %v1994 = vunpack.c.l.b16 %v1748
    %v1995 = vunpack.c.l.b16 %v1749
    %v1996 = vunpack.c.h.b16 %v1749
    %v1997 = vunpack.c.l.b16 %v1750
    %v1998 = vunpack.c.l.b16 %v1751
    %v1999 = vunpack.c.h.b16 %v1751
    %v2000 = vunpack.c.l.b16 %v1752
    %v2001 = vunpack.c.l.b16 %v1753
    %v2002 = vunpack.c.h.b16 %v1753
    %v2003 = vunpack.c.l.b16 %v1754
    %v2004 = vunpack.c.l.b16 %v1755
    %v2005 = vunpack.c.h.b16 %v1755
    %v2006 = vunpack.c.l.b16 %v1756
    %v2007 = vunpack.c.l.b16 %v1757
    %v2008 = vunpack.c.h.b16 %v1757
    %v2009 = vunpack.c.l.b16 %v1758
    %v2010 = vunpack.c.l.b16 %v1759
    %v2011 = vunpack.c.h.b16 %v1759
    %v2012 = vunpack.c.l.b16 %v1760
    %v2013 = vunpack.c.l.b16 %v1761
    %v2014 = vunpack.c.h.b16 %v1761
    %v2015 = vunpack.c.l.b16 %v1762
    %v2016 = vunpack.c.l.b16 %v1763
    %v2017 = vunpack.c.h.b16 %v1763
    %v2018 = vunpack.c.l.b16 %v1764
    %v2019 = vunpack.c.l.b16 %v1765
    %v2020 = vunpack.c.h.b16 %v1765
    %v2021 = vunpack.c.l.b16 %v1766
    %v2022 = vunpack.c.l.b16 %v1767
    %v2023 = vunpack.c.h.b16 %v1767
    %v2024 = vunpack.c.l.b16 %v1768
    %v2025 = vunpack.c.l.b16 %v1769
    %v2026 = vunpack.c.h.b16 %v1769
    %v2027 = vunpack.c.l.b16 %v1770
    %v2028 = vunpack.c.l.b16 %v1771
    %v2029 = vunpack.c.h.b16 %v1771
    %v2030 = vunpack.c.l.b16 %v1772
    %v2031 = vpack.c.b16 %v1890, %v1887
    %v2032 = vpack.c.b16 %v1891, %v1888
    %v2033 = vpack.c.b16 %v1892, %v1889
    %v2034 = vpack.c.b16 %v1896, %v1893
    %v2035 = vpack.c.b16 %v1897, %v1894
    %v2036 = vpack.c.b16 %v1898, %v1895
    %v2037 = vpack.c.b16 %v1902, %v1899
    %v2038 = vpack.c.b16 %v1903, %v1900
    %v2039 = vpack.c.b16 %v1904, %v1901
    %v2040 = vpack.c.b16 %v1908, %v1905
    %v2041 = vpack.c.b16 %v1909, %v1906
    %v2042 = vpack.c.b16 %v1910, %v1907
    %v2043 = vpack.c.b16 %v1914, %v1911
    %v2044 = vpack.c.b16 %v1915, %v1912
    %v2045 = vpack.c.b16 %v1916, %v1913
    %v2046 = vpack.c.b16 %v1920, %v1917
    %v2047 = vpack.c.b16 %v1921, %v1918
    %v2048 = vpack.c.b16 %v1922, %v1919
    %v2049 = vpack.c.b16 %v1926, %v1923
    %v2050 = vpack.c.b16 %v1927, %v1924
    %v2051 = vpack.c.b16 %v1928, %v1925
    %v2052 = vpack.c.b16 %v1932, %v1929
    %v2053 = vpack.c.b16 %v1933, %v1930
    %v2054 = vpack.c.b16 %v1934, %v1931
    %v2055 = vpack.c.b16 %v1938, %v1935
    %v2056 = vpack.c.b16 %v1939, %v1936
    %v2057 = vpack.c.b16 %v1940, %v1937
    %v2058 = vpack.c.b16 %v1944, %v1941
    %v2059 = vpack.c.b16 %v1945, %v1942
    %v2060 = vpack.c.b16 %v1946, %v1943
    %v2061 = vpack.c.b16 %v1950, %v1947
    %v2062 = vpack.c.b16 %v1951, %v1948
    %v2063 = vpack.c.b16 %v1952, %v1949
    %v2064 = vpack.c.b16 %v1956, %v1953
    %v2065 = vpack.c.b16 %v1957, %v1954
    %v2066 = vpack.c.b16 %v1958, %v1955
    %v2067 = vpack.c.b16 %v1962, %v1959
    %v2068 = vpack.c.b16 %v1963, %v1960
    %v2069 = vpack.c.b16 %v1964, %v1961
    %v2070 = vpack.c.b16 %v1968, %v1965
    %v2071 = vpack.c.b16 %v1969, %v1966
    %v2072 = vpack.c.b16 %v1970, %v1967
    %v2073 = vpack.c.b16 %v1974, %v1971
    %v2074 = vpack.c.b16 %v1975, %v1972
    %v2075 = vpack.c.b16 %v1976, %v1973
    %v2076 = vpack.c.b16 %v1980, %v1977
    %v2077 = vpack.c.b16 %v1981, %v1978
    %v2078 = vpack.c.b16 %v1982, %v1979
    %v2079 = vpack.c.b16 %v1986, %v1983
    %v2080 = vpack.c.b16 %v1987, %v1984
    %v2081 = vpack.c.b16 %v1988, %v1985
    %v2082 = vpack.c.b16 %v1992, %v1989
    %v2083 = vpack.c.b16 %v1993, %v1990
    %v2084 = vpack.c.b16 %v1994, %v1991
    %v2085 = vpack.c.b16 %v1998, %v1995
    %v2086 = vpack.c.b16 %v1999, %v1996
    %v2087 = vpack.c.b16 %v2000, %v1997
    %v2088 = vpack.c.b16 %v2004, %v2001
    %v2089 = vpack.c.b16 %v2005, %v2002
    %v2090 = vpack.c.b16 %v2006, %v2003
    %v2091 = vpack.c.b16 %v2010, %v2007
    %v2092 = vpack.c.b16 %v2011, %v2008
    %v2093 = vpack.c.b16 %v2012, %v2009
    %v2094 = vpack.c.b16 %v2016, %v2013
    %v2095 = vpack.c.b16 %v2017, %v2014
    %v2096 = vpack.c.b16 %v2018, %v2015
    %v2097 = vpack.c.b16 %v2022, %v2019
    %v2098 = vpack.c.b16 %v2023, %v2020
    %v2099 = vpack.c.b16 %v2024, %v2021
    %v2100 = vpack.c.b16 %v2028, %v2025
    %v2101 = vpack.c.b16 %v2029, %v2026
    %v2102 = vpack.c.b16 %v2030, %v2027
    %2175 = vmatprep.subr.bf16.mxu0 %v2032
    %2176 = vmatpush1.bf16.msra.mxu0 %v2031
    %2177 = vmatprep.subr.bf16.mxu0 %v2035
    %2178 = vmatpush1.bf16.msra.mxu0 %v2034
    %2179 = vmatprep.subr.bf16.mxu0 %v2038
    %2180 = vmatpush1.bf16.msra.mxu0 %v2037
    %2181 = vmatprep.subr.bf16.mxu0 %v2041
    %2182 = vmatpush1.bf16.msra.mxu0 %v2040
    %2183 = vmatprep.subr.bf16.mxu0 %v2044
    %2184 = vmatpush1.bf16.msra.mxu0 %v2043
    %2185 = vmatprep.subr.bf16.mxu0 %v2047
    %2186 = vmatpush1.bf16.msra.mxu0 %v2046
    %2187 = vmatprep.subr.bf16.mxu0 %v2050
    %2188 = vmatpush1.bf16.msra.mxu0 %v2049
    %2189 = vmatprep.subr.bf16.mxu0 %v2053
    %2190 = vmatpush1.bf16.msra.mxu0 %v2052
    %2191 = vmatprep.subr.bf16.mxu0 %v2056
    %2192 = vmatpush1.bf16.msra.mxu0 %v2055
    %2193 = vmatprep.subr.bf16.mxu0 %v2059
    %2194 = vmatpush1.bf16.msra.mxu0 %v2058
    %2195 = vmatprep.subr.bf16.mxu0 %v2062
    %2196 = vmatpush1.bf16.msra.mxu0 %v2061
    %2197 = vmatprep.subr.bf16.mxu0 %v2065
    %2198 = vmatpush1.bf16.msra.mxu0 %v2064
    %2199 = vmatprep.subr.bf16.mxu0 %v2068
    %2200 = vmatpush1.bf16.msra.mxu0 %v2067
    %2201 = vmatprep.subr.bf16.mxu0 %v2071
    %2202 = vmatpush1.bf16.msra.mxu0 %v2070
    %2203 = vmatprep.subr.bf16.mxu0 %v2074
    %2204 = vmatpush1.bf16.msra.mxu0 %v2073
    %2205 = vmatprep.subr.bf16.mxu0 %v2077
    %2206 = vmatpush1.bf16.msra.mxu0 %v2076
    %2207 = vmatprep.mubr.bf16.mxu0 %v1674
    %2208 = vmatmul.mubr.bf16.gmra.mrb[0].mxu0 %v1673
    %v2209 = vpop.f32.mrb[0].mxu0
    %v2210 = vadd.f32 %v1779, %v2209
    %v2211 = vpop.f32.mrb[0].mxu0
    %v2212 = vadd.f32 %v1783, %v2211
    %v2213 = vpop.f32.mrb[0].mxu0
    %v2214 = vpop.f32.mrb[0].mxu0
    %2215 = vdwg.mxu0
    %2216 = vmatprep.subr.bf16.mxu0 %v2080
    %2217 = vmatpush1.bf16.msra.mxu0 %v2079
    %2218 = vmatprep.subr.bf16.mxu0 %v2083
    %2219 = vmatpush1.bf16.msra.mxu0 %v2082
    %2220 = vmatprep.subr.bf16.mxu0 %v2086
    %2221 = vmatpush1.bf16.msra.mxu0 %v2085
    %2222 = vmatprep.subr.bf16.mxu0 %v2089
    %2223 = vmatpush1.bf16.msra.mxu0 %v2088
    %2224 = vmatprep.subr.bf16.mxu0 %v2092
    %2225 = vmatpush1.bf16.msra.mxu0 %v2091
    %2226 = vmatprep.subr.bf16.mxu0 %v2095
    %2227 = vmatpush1.bf16.msra.mxu0 %v2094
    %2228 = vmatprep.subr.bf16.mxu0 %v2098
    %2229 = vmatpush1.bf16.msra.mxu0 %v2097
    %2230 = vmatprep.subr.bf16.mxu0 %v2101
    %2231 = vmatpush1.bf16.msra.mxu0 %v2100
    %2232 = vmatprep.subr.bf16.mxu0 0
    %2233 = vmatpush1.bf16.msra.mxu0 0
    %2234 = vmatprep.subr.bf16.mxu0 0
    %2235 = vmatpush1.bf16.msra.mxu0 0
    %2236 = vmatprep.subr.bf16.mxu0 0
    %2237 = vmatpush1.bf16.msra.mxu0 0
    %2238 = vmatprep.subr.bf16.mxu0 0
    %2239 = vmatpush1.bf16.msra.mxu0 0
    %2240 = vmatprep.subr.bf16.mxu0 0
    %2241 = vmatpush1.bf16.msra.mxu0 0
    %2242 = vmatprep.subr.bf16.mxu0 0
    %2243 = vmatpush1.bf16.msra.mxu0 0
    %2244 = vmatprep.subr.bf16.mxu0 0
    %2245 = vmatpush1.bf16.msra.mxu0 0
    %2246 = vmatprep.subr.bf16.mxu0 0
    %2247 = vmatpush1.bf16.msra.mxu0 0
    %2248 = vmatprep.mubr.bf16.mxu0 0
    %2249 = vmatmul.mubr.bf16.gmra.mrb[0].mxu0 %v1675
    %v2250 = vpop.f32.mrb[0].mxu0
    %v2251 = vadd.f32 %v2210, %v2250
    %v2252 = vpop.f32.mrb[0].mxu0
    %v2253 = vadd.f32 %v2212, %v2252
    %v2254 = vpop.f32.mrb[0].mxu0
    %v2255 = vpop.f32.mrb[0].mxu0
    %2256 = vdwg.mxu0
    %2257 = vmatprep.subr.bf16.mxu0 0
    %2258 = vmatpush1.bf16.msra.mxu0 %v2033
    %2259 = vmatprep.subr.bf16.mxu0 0
    %2260 = vmatpush1.bf16.msra.mxu0 %v2036
    %2261 = vmatprep.subr.bf16.mxu0 0
    %2262 = vmatpush1.bf16.msra.mxu0 %v2039
    %2263 = vmatprep.subr.bf16.mxu0 0
    %2264 = vmatpush1.bf16.msra.mxu0 %v2042
    %2265 = vmatprep.subr.bf16.mxu0 0
    %2266 = vmatpush1.bf16.msra.mxu0 %v2045
    %2267 = vmatprep.subr.bf16.mxu0 0
    %2268 = vmatpush1.bf16.msra.mxu0 %v2048
    %2269 = vmatprep.subr.bf16.mxu0 0
    %2270 = vmatpush1.bf16.msra.mxu0 %v2051
    %2271 = vmatprep.subr.bf16.mxu0 0
    %2272 = vmatpush1.bf16.msra.mxu0 %v2054
    %2273 = vmatprep.subr.bf16.mxu0 0
    %2274 = vmatpush1.bf16.msra.mxu0 %v2057
    %2275 = vmatprep.subr.bf16.mxu0 0
    %2276 = vmatpush1.bf16.msra.mxu0 %v2060
    %2277 = vmatprep.subr.bf16.mxu0 0
    %2278 = vmatpush1.bf16.msra.mxu0 %v2063
    %2279 = vmatprep.subr.bf16.mxu0 0
    %2280 = vmatpush1.bf16.msra.mxu0 %v2066
    %2281 = vmatprep.subr.bf16.mxu0 0
    %2282 = vmatpush1.bf16.msra.mxu0 %v2069
    %2283 = vmatprep.subr.bf16.mxu0 0
    %2284 = vmatpush1.bf16.msra.mxu0 %v2072
    %2285 = vmatprep.subr.bf16.mxu0 0
    %2286 = vmatpush1.bf16.msra.mxu0 %v2075
    %2287 = vmatprep.subr.bf16.mxu0 0
    %2288 = vmatpush1.bf16.msra.mxu0 %v2078
    %2289 = vmatprep.mubr.bf16.mxu0 %v1674
    %2290 = vmatmul.mubr.bf16.gmra.mrb[0].mxu0 %v1673
    %v2291 = vpop.f32.mrb[0].mxu0
    %v2292 = vadd.f32 %v1787, %v2291
    %v2293 = vpop.f32.mrb[0].mxu0
    %v2294 = vpop.f32.mrb[0].mxu0
    %v2295 = vpop.f32.mrb[0].mxu0
    %2296 = vdwg.mxu0
    %2297 = vmatprep.subr.bf16.mxu0 0
    %2298 = vmatpush1.bf16.msra.mxu0 %v2081
    %2299 = vmatprep.subr.bf16.mxu0 0
    %2300 = vmatpush1.bf16.msra.mxu0 %v2084
    %2301 = vmatprep.subr.bf16.mxu0 0
    %2302 = vmatpush1.bf16.msra.mxu0 %v2087
    %2303 = vmatprep.subr.bf16.mxu0 0
    %2304 = vmatpush1.bf16.msra.mxu0 %v2090
    %2305 = vmatprep.subr.bf16.mxu0 0
    %2306 = vmatpush1.bf16.msra.mxu0 %v2093
    %2307 = vmatprep.subr.bf16.mxu0 0
    %2308 = vmatpush1.bf16.msra.mxu0 %v2096
    %2309 = vmatprep.subr.bf16.mxu0 0
    %2310 = vmatpush1.bf16.msra.mxu0 %v2099
    %2311 = vmatprep.subr.bf16.mxu0 0
    %2312 = vmatpush1.bf16.msra.mxu0 %v2102
    %2313 = vmatprep.subr.bf16.mxu0 0
    %2314 = vmatpush1.bf16.msra.mxu0 0
    %2315 = vmatprep.subr.bf16.mxu0 0
    %2316 = vmatpush1.bf16.msra.mxu0 0
    %2317 = vmatprep.subr.bf16.mxu0 0
    %2318 = vmatpush1.bf16.msra.mxu0 0
    %2319 = vmatprep.subr.bf16.mxu0 0
    %2320 = vmatpush1.bf16.msra.mxu0 0
    %2321 = vmatprep.subr.bf16.mxu0 0
    %2322 = vmatpush1.bf16.msra.mxu0 0
    %2323 = vmatprep.subr.bf16.mxu0 0
    %2324 = vmatpush1.bf16.msra.mxu0 0
    %2325 = vmatprep.subr.bf16.mxu0 0
    %2326 = vmatpush1.bf16.msra.mxu0 0
    %2327 = vmatprep.subr.bf16.mxu0 0
    %2328 = vmatpush1.bf16.msra.mxu0 0
    %2329 = vmatprep.mubr.bf16.mxu0 0
    %2330 = vmatmul.mubr.bf16.gmra.mrb[0].mxu0 %v1675
    %v2331 = vpop.f32.mrb[0].mxu0
    %v2332 = vadd.f32 %v2292, %v2331
    %v2333 = vpop.f32.mrb[0].mxu0
    %v2334 = vpop.f32.mrb[0].mxu0
    %v2335 = vpop.f32.mrb[0].mxu0
    %2336 = vdwg.mxu0
    %v2337 = vmax.f32 %v2251, 0.0
    %v2338 = vmax.f32 %v2253, 0.0
    %v2339 = vmax.f32 %v2332, 0.0
    %v2340 = vpack.c.bf16 %v2337, %v2337
    %v2341 = vpack.c.bf16 %v2338, %v2338
    %v2342 = vpack.c.bf16 %v2339, %v2339
    %s2343 = scalar_lea.vmem [#allocation4], 1728
    %v2344 = vld [vmem:[%s2343] sm:$0xff]
    %v2345 = vld [vmem:[%s2343 + $0x8] sm:$0xf]
    %v2346 = vld [vmem:[%s2343 + $0xc] sm:$0xff]
    %v2347 = vld [vmem:[%s2343 + $0x14] sm:$0xf]
    %v2348 = vld [vmem:[%s2343 + $0x18] sm:$0xff]
    %v2349 = vld [vmem:[%s2343 + $0x20] sm:$0xf]
    %v2350 = vld [vmem:[%s2343 + $0x24] sm:$0xff]
    %v2351 = vld [vmem:[%s2343 + $0x2c] sm:$0xf]
    %v2352 = vld [vmem:[%s2343 + $0x30] sm:$0xff]
    %v2353 = vld [vmem:[%s2343 + $0x38] sm:$0xf]
    %v2354 = vld [vmem:[%s2343 + $0x3c] sm:$0xff]
    %v2355 = vld [vmem:[%s2343 + $0x44] sm:$0xf]
    %v2356 = vld [vmem:[%s2343 + $0x48] sm:$0xff]
    %v2357 = vld [vmem:[%s2343 + $0x50] sm:$0xf]
    %v2358 = vld [vmem:[%s2343 + $0x54] sm:$0xff]
    %v2359 = vld [vmem:[%s2343 + $0x5c] sm:$0xf]
    %v2360 = vld [vmem:[%s2343 + $0x60] sm:$0xff]
    %v2361 = vld [vmem:[%s2343 + $0x68] sm:$0xf]
    %v2362 = vld [vmem:[%s2343 + $0x6c] sm:$0xff]
    %v2363 = vld [vmem:[%s2343 + $0x74] sm:$0xf]
    %v2364 = vld [vmem:[%s2343 + $0x78] sm:$0xff]
    %v2365 = vld [vmem:[%s2343 + $0x80] sm:$0xf]
    %v2366 = vld [vmem:[%s2343 + $0x84] sm:$0xff]
    %v2367 = vld [vmem:[%s2343 + $0x8c] sm:$0xf]
    %v2368 = vld [vmem:[%s2343 + $0x90] sm:$0xff]
    %v2369 = vld [vmem:[%s2343 + $0x98] sm:$0xf]
    %v2370 = vld [vmem:[%s2343 + $0x9c] sm:$0xff]
    %v2371 = vld [vmem:[%s2343 + $0xa4] sm:$0xf]
    %v2372 = vld [vmem:[%s2343 + $0xa8] sm:$0xff]
    %v2373 = vld [vmem:[%s2343 + $0xb0] sm:$0xf]
    %v2374 = vld [vmem:[%s2343 + $0xb4] sm:$0xff]
    %v2375 = vld [vmem:[%s2343 + $0xbc] sm:$0xf]
    %v2376 = vld [vmem:[%s2343 + $0xc0] sm:$0xff]
    %v2377 = vld [vmem:[%s2343 + $0xc8] sm:$0xf]
    %v2378 = vld [vmem:[%s2343 + $0xcc] sm:$0xff]
    %v2379 = vld [vmem:[%s2343 + $0xd4] sm:$0xf]
    %v2380 = vld [vmem:[%s2343 + $0xd8] sm:$0xff]
    %v2381 = vld [vmem:[%s2343 + $0xe0] sm:$0xf]
    %v2382 = vld [vmem:[%s2343 + $0xe4] sm:$0xff]
    %v2383 = vld [vmem:[%s2343 + $0xec] sm:$0xf]
    %v2384 = vld [vmem:[%s2343 + $0xf0] sm:$0xff]
    %v2385 = vld [vmem:[%s2343 + $0xf8] sm:$0xf]
    %v2386 = vld [vmem:[%s2343 + $0xfc] sm:$0xff]
    %v2387 = vld [vmem:[%s2343 + $0x104] sm:$0xf]
    %v2388 = vld [vmem:[%s2343 + $0x108] sm:$0xff]
    %v2389 = vld [vmem:[%s2343 + $0x110] sm:$0xf]
    %v2390 = vld [vmem:[%s2343 + $0x114] sm:$0xff]
    %v2391 = vld [vmem:[%s2343 + $0x11c] sm:$0xf]
    %v2392 = vld [vmem:[%s2343 + $0x120] sm:$0xff]
    %v2393 = vld [vmem:[%s2343 + $0x128] sm:$0xf]
    %v2394 = vld [vmem:[%s2343 + $0x12c] sm:$0xff]
    %v2395 = vld [vmem:[%s2343 + $0x134] sm:$0xf]
    %v2396 = vld [vmem:[%s2343 + $0x138] sm:$0xff]
    %v2397 = vld [vmem:[%s2343 + $0x140] sm:$0xf]
    %v2398 = vld [vmem:[%s2343 + $0x144] sm:$0xff]
    %v2399 = vld [vmem:[%s2343 + $0x14c] sm:$0xf]
    %v2400 = vld [vmem:[%s2343 + $0x150] sm:$0xff]
    %v2401 = vld [vmem:[%s2343 + $0x158] sm:$0xf]
    %v2402 = vld [vmem:[%s2343 + $0x15c] sm:$0xff]
    %v2403 = vld [vmem:[%s2343 + $0x164] sm:$0xf]
    %v2404 = vld [vmem:[%s2343 + $0x168] sm:$0xff]
    %v2405 = vld [vmem:[%s2343 + $0x170] sm:$0xf]
    %v2406 = vld [vmem:[%s2343 + $0x174] sm:$0xff]
    %v2407 = vld [vmem:[%s2343 + $0x17c] sm:$0xf]
    %v2408 = vld [vmem:[%s2343 + $0x180] sm:$0xff]
    %v2409 = vld [vmem:[%s2343 + $0x188] sm:$0xf]
    %v2410 = vld [vmem:[%s2343 + $0x18c] sm:$0xff]
    %v2411 = vld [vmem:[%s2343 + $0x194] sm:$0xf]
    %v2412 = vld [vmem:[%s2343 + $0x198] sm:$0xff]
    %v2413 = vld [vmem:[%s2343 + $0x1a0] sm:$0xf]
    %v2414 = vld [vmem:[%s2343 + $0x1a4] sm:$0xff]
    %v2415 = vld [vmem:[%s2343 + $0x1ac] sm:$0xf]
    %v2416 = vld [vmem:[%s2343 + $0x1b0] sm:$0xff]
    %v2417 = vld [vmem:[%s2343 + $0x1b8] sm:$0xf]
    %v2418 = vld [vmem:[%s2343 + $0x1bc] sm:$0xff]
    %v2419 = vld [vmem:[%s2343 + $0x1c4] sm:$0xf]
    %v2420 = vld [vmem:[%s2343 + $0x1c8] sm:$0xff]
    %v2421 = vld [vmem:[%s2343 + $0x1d0] sm:$0xf]
    %v2422 = vld [vmem:[%s2343 + $0x1d4] sm:$0xff]
    %v2423 = vld [vmem:[%s2343 + $0x1dc] sm:$0xf]
    %v2424 = vld [vmem:[%s2343 + $0x1e0] sm:$0xff]
    %v2425 = vld [vmem:[%s2343 + $0x1e8] sm:$0xf]
    %v2426 = vld [vmem:[%s2343 + $0x1ec] sm:$0xff]
    %v2427 = vld [vmem:[%s2343 + $0x1f4] sm:$0xf]
    %v2428 = vld [vmem:[%s2343 + $0x1f8] sm:$0xff]
    %v2429 = vld [vmem:[%s2343 + $0x200] sm:$0xf]
    %v2430 = vld [vmem:[%s2343 + $0x204] sm:$0xff]
    %v2431 = vld [vmem:[%s2343 + $0x20c] sm:$0xf]
    %v2432 = vld [vmem:[%s2343 + $0x210] sm:$0xff]
    %v2433 = vld [vmem:[%s2343 + $0x218] sm:$0xf]
    %v2434 = vld [vmem:[%s2343 + $0x21c] sm:$0xff]
    %v2435 = vld [vmem:[%s2343 + $0x224] sm:$0xf]
    %v2436 = vld [vmem:[%s2343 + $0x228] sm:$0xff]
    %v2437 = vld [vmem:[%s2343 + $0x230] sm:$0xf]
    %v2438 = vld [vmem:[%s2343 + $0x234] sm:$0xff]
    %v2439 = vld [vmem:[%s2343 + $0x23c] sm:$0xf]
    %s2440 = scalar_lea.vmem [#allocation6], 4
    %v2441 = vld [vmem:[%s2440] ss:$8 sm:$0x7]
    %v2443 = vlaneseq
    %v2444 = vshrl.u32 %v2443, 7
    %v2445 = vsub.s32 0, %v2444
    %v2446 = vrot.slane %v2441, %v2445
    %v2447 = vlaneseq
    %v2448 = vshrl.u32 %v2447, 7
    %v2449 = vsub.s32 1, %v2448
    %v2450 = vrot.slane %v2441, %v2449
    %v2451 = vlaneseq
    %v2452 = vshrl.u32 %v2451, 7
    %v2453 = vsub.s32 2, %v2452
    %v2454 = vrot.slane %v2441, %v2453
    %v2554 = vunpack.c.l.b16 %v2344
    %v2555 = vunpack.c.h.b16 %v2344
    %v2556 = vunpack.c.l.b16 %v2345
    %v2557 = vunpack.c.l.b16 %v2346
    %v2558 = vunpack.c.h.b16 %v2346
    %v2559 = vunpack.c.l.b16 %v2347
    %v2560 = vunpack.c.l.b16 %v2348
    %v2561 = vunpack.c.h.b16 %v2348
    %v2562 = vunpack.c.l.b16 %v2349
    %v2563 = vunpack.c.l.b16 %v2350
    %v2564 = vunpack.c.h.b16 %v2350
    %v2565 = vunpack.c.l.b16 %v2351
    %v2566 = vunpack.c.l.b16 %v2352
    %v2567 = vunpack.c.h.b16 %v2352
    %v2568 = vunpack.c.l.b16 %v2353
    %v2569 = vunpack.c.l.b16 %v2354
    %v2570 = vunpack.c.h.b16 %v2354
    %v2571 = vunpack.c.l.b16 %v2355
    %v2572 = vunpack.c.l.b16 %v2356
    %v2573 = vunpack.c.h.b16 %v2356
    %v2574 = vunpack.c.l.b16 %v2357
    %v2575 = vunpack.c.l.b16 %v2358
    %v2576 = vunpack.c.h.b16 %v2358
    %v2577 = vunpack.c.l.b16 %v2359
    %v2578 = vunpack.c.l.b16 %v2360
    %v2579 = vunpack.c.h.b16 %v2360
    %v2580 = vunpack.c.l.b16 %v2361
    %v2581 = vunpack.c.l.b16 %v2362
    %v2582 = vunpack.c.h.b16 %v2362
    %v2583 = vunpack.c.l.b16 %v2363
    %v2584 = vunpack.c.l.b16 %v2364
    %v2585 = vunpack.c.h.b16 %v2364
    %v2586 = vunpack.c.l.b16 %v2365
    %v2587 = vunpack.c.l.b16 %v2366
    %v2588 = vunpack.c.h.b16 %v2366
    %v2589 = vunpack.c.l.b16 %v2367
    %v2590 = vunpack.c.l.b16 %v2368
    %v2591 = vunpack.c.h.b16 %v2368
    %v2592 = vunpack.c.l.b16 %v2369
    %v2593 = vunpack.c.l.b16 %v2370
    %v2594 = vunpack.c.h.b16 %v2370
    %v2595 = vunpack.c.l.b16 %v2371
    %v2596 = vunpack.c.l.b16 %v2372
    %v2597 = vunpack.c.h.b16 %v2372
    %v2598 = vunpack.c.l.b16 %v2373
    %v2599 = vunpack.c.l.b16 %v2374
    %v2600 = vunpack.c.h.b16 %v2374
    %v2601 = vunpack.c.l.b16 %v2375
    %v2602 = vunpack.c.l.b16 %v2376
    %v2603 = vunpack.c.h.b16 %v2376
    %v2604 = vunpack.c.l.b16 %v2377
    %v2605 = vunpack.c.l.b16 %v2378
    %v2606 = vunpack.c.h.b16 %v2378
    %v2607 = vunpack.c.l.b16 %v2379
    %v2608 = vunpack.c.l.b16 %v2380
    %v2609 = vunpack.c.h.b16 %v2380
    %v2610 = vunpack.c.l.b16 %v2381
    %v2611 = vunpack.c.l.b16 %v2382
    %v2612 = vunpack.c.h.b16 %v2382
    %v2613 = vunpack.c.l.b16 %v2383
    %v2614 = vunpack.c.l.b16 %v2384
    %v2615 = vunpack.c.h.b16 %v2384
    %v2616 = vunpack.c.l.b16 %v2385
    %v2617 = vunpack.c.l.b16 %v2386
    %v2618 = vunpack.c.h.b16 %v2386
    %v2619 = vunpack.c.l.b16 %v2387
    %v2620 = vunpack.c.l.b16 %v2388
    %v2621 = vunpack.c.h.b16 %v2388
    %v2622 = vunpack.c.l.b16 %v2389
    %v2623 = vunpack.c.l.b16 %v2390
    %v2624 = vunpack.c.h.b16 %v2390
    %v2625 = vunpack.c.l.b16 %v2391
    %v2626 = vunpack.c.l.b16 %v2392
    %v2627 = vunpack.c.h.b16 %v2392
    %v2628 = vunpack.c.l.b16 %v2393
    %v2629 = vunpack.c.l.b16 %v2394
    %v2630 = vunpack.c.h.b16 %v2394
    %v2631 = vunpack.c.l.b16 %v2395
    %v2632 = vunpack.c.l.b16 %v2396
    %v2633 = vunpack.c.h.b16 %v2396
    %v2634 = vunpack.c.l.b16 %v2397
    %v2635 = vunpack.c.l.b16 %v2398
    %v2636 = vunpack.c.h.b16 %v2398
    %v2637 = vunpack.c.l.b16 %v2399
    %v2638 = vunpack.c.l.b16 %v2400
    %v2639 = vunpack.c.h.b16 %v2400
    %v2640 = vunpack.c.l.b16 %v2401
    %v2641 = vunpack.c.l.b16 %v2402
    %v2642 = vunpack.c.h.b16 %v2402
    %v2643 = vunpack.c.l.b16 %v2403
    %v2644 = vunpack.c.l.b16 %v2404
    %v2645 = vunpack.c.h.b16 %v2404
    %v2646 = vunpack.c.l.b16 %v2405
    %v2647 = vunpack.c.l.b16 %v2406
    %v2648 = vunpack.c.h.b16 %v2406
    %v2649 = vunpack.c.l.b16 %v2407
    %v2650 = vunpack.c.l.b16 %v2408
    %v2651 = vunpack.c.h.b16 %v2408
    %v2652 = vunpack.c.l.b16 %v2409
    %v2653 = vunpack.c.l.b16 %v2410
    %v2654 = vunpack.c.h.b16 %v2410
    %v2655 = vunpack.c.l.b16 %v2411
    %v2656 = vunpack.c.l.b16 %v2412
    %v2657 = vunpack.c.h.b16 %v2412
    %v2658 = vunpack.c.l.b16 %v2413
    %v2659 = vunpack.c.l.b16 %v2414
    %v2660 = vunpack.c.h.b16 %v2414
    %v2661 = vunpack.c.l.b16 %v2415
    %v2662 = vunpack.c.l.b16 %v2416
    %v2663 = vunpack.c.h.b16 %v2416
    %v2664 = vunpack.c.l.b16 %v2417
    %v2665 = vunpack.c.l.b16 %v2418
    %v2666 = vunpack.c.h.b16 %v2418
    %v2667 = vunpack.c.l.b16 %v2419
    %v2668 = vunpack.c.l.b16 %v2420
    %v2669 = vunpack.c.h.b16 %v2420
    %v2670 = vunpack.c.l.b16 %v2421
    %v2671 = vunpack.c.l.b16 %v2422
    %v2672 = vunpack.c.h.b16 %v2422
    %v2673 = vunpack.c.l.b16 %v2423
    %v2674 = vunpack.c.l.b16 %v2424
    %v2675 = vunpack.c.h.b16 %v2424
    %v2676 = vunpack.c.l.b16 %v2425
    %v2677 = vunpack.c.l.b16 %v2426
    %v2678 = vunpack.c.h.b16 %v2426
    %v2679 = vunpack.c.l.b16 %v2427
    %v2680 = vunpack.c.l.b16 %v2428
    %v2681 = vunpack.c.h.b16 %v2428
    %v2682 = vunpack.c.l.b16 %v2429
    %v2683 = vunpack.c.l.b16 %v2430
    %v2684 = vunpack.c.h.b16 %v2430
    %v2685 = vunpack.c.l.b16 %v2431
    %v2686 = vunpack.c.l.b16 %v2432
    %v2687 = vunpack.c.h.b16 %v2432
    %v2688 = vunpack.c.l.b16 %v2433
    %v2689 = vunpack.c.l.b16 %v2434
    %v2690 = vunpack.c.h.b16 %v2434
    %v2691 = vunpack.c.l.b16 %v2435
    %v2692 = vunpack.c.l.b16 %v2436
    %v2693 = vunpack.c.h.b16 %v2436
    %v2694 = vunpack.c.l.b16 %v2437
    %v2695 = vunpack.c.l.b16 %v2438
    %v2696 = vunpack.c.h.b16 %v2438
    %v2697 = vunpack.c.l.b16 %v2439
    %v2698 = vpack.c.b16 %v2557, %v2554
    %v2699 = vpack.c.b16 %v2558, %v2555
    %v2700 = vpack.c.b16 %v2559, %v2556
    %v2701 = vpack.c.b16 %v2563, %v2560
    %v2702 = vpack.c.b16 %v2564, %v2561
    %v2703 = vpack.c.b16 %v2565, %v2562
    %v2704 = vpack.c.b16 %v2569, %v2566
    %v2705 = vpack.c.b16 %v2570, %v2567
    %v2706 = vpack.c.b16 %v2571, %v2568
    %v2707 = vpack.c.b16 %v2575, %v2572
    %v2708 = vpack.c.b16 %v2576, %v2573
    %v2709 = vpack.c.b16 %v2577, %v2574
    %v2710 = vpack.c.b16 %v2581, %v2578
    %v2711 = vpack.c.b16 %v2582, %v2579
    %v2712 = vpack.c.b16 %v2583, %v2580
    %v2713 = vpack.c.b16 %v2587, %v2584
    %v2714 = vpack.c.b16 %v2588, %v2585
    %v2715 = vpack.c.b16 %v2589, %v2586
    %v2716 = vpack.c.b16 %v2593, %v2590
    %v2717 = vpack.c.b16 %v2594, %v2591
    %v2718 = vpack.c.b16 %v2595, %v2592
    %v2719 = vpack.c.b16 %v2599, %v2596
    %v2720 = vpack.c.b16 %v2600, %v2597
    %v2721 = vpack.c.b16 %v2601, %v2598
    %v2722 = vpack.c.b16 %v2605, %v2602
    %v2723 = vpack.c.b16 %v2606, %v2603
    %v2724 = vpack.c.b16 %v2607, %v2604
    %v2725 = vpack.c.b16 %v2611, %v2608
    %v2726 = vpack.c.b16 %v2612, %v2609
    %v2727 = vpack.c.b16 %v2613, %v2610
    %v2728 = vpack.c.b16 %v2617, %v2614
    %v2729 = vpack.c.b16 %v2618, %v2615
    %v2730 = vpack.c.b16 %v2619, %v2616
    %v2731 = vpack.c.b16 %v2623, %v2620
    %v2732 = vpack.c.b16 %v2624, %v2621
    %v2733 = vpack.c.b16 %v2625, %v2622
    %v2734 = vpack.c.b16 %v2629, %v2626
    %v2735 = vpack.c.b16 %v2630, %v2627
    %v2736 = vpack.c.b16 %v2631, %v2628
    %v2737 = vpack.c.b16 %v2635, %v2632
    %v2738 = vpack.c.b16 %v2636, %v2633
    %v2739 = vpack.c.b16 %v2637, %v2634
    %v2740 = vpack.c.b16 %v2641, %v2638
    %v2741 = vpack.c.b16 %v2642, %v2639
    %v2742 = vpack.c.b16 %v2643, %v2640
    %v2743 = vpack.c.b16 %v2647, %v2644
    %v2744 = vpack.c.b16 %v2648, %v2645
    %v2745 = vpack.c.b16 %v2649, %v2646
    %v2746 = vpack.c.b16 %v2653, %v2650
    %v2747 = vpack.c.b16 %v2654, %v2651
    %v2748 = vpack.c.b16 %v2655, %v2652
    %v2749 = vpack.c.b16 %v2659, %v2656
    %v2750 = vpack.c.b16 %v2660, %v2657
    %v2751 = vpack.c.b16 %v2661, %v2658
    %v2752 = vpack.c.b16 %v2665, %v2662
    %v2753 = vpack.c.b16 %v2666, %v2663
    %v2754 = vpack.c.b16 %v2667, %v2664
    %v2755 = vpack.c.b16 %v2671, %v2668
    %v2756 = vpack.c.b16 %v2672, %v2669
    %v2757 = vpack.c.b16 %v2673, %v2670
    %v2758 = vpack.c.b16 %v2677, %v2674
    %v2759 = vpack.c.b16 %v2678, %v2675
    %v2760 = vpack.c.b16 %v2679, %v2676
    %v2761 = vpack.c.b16 %v2683, %v2680
    %v2762 = vpack.c.b16 %v2684, %v2681
    %v2763 = vpack.c.b16 %v2685, %v2682
    %v2764 = vpack.c.b16 %v2689, %v2686
    %v2765 = vpack.c.b16 %v2690, %v2687
    %v2766 = vpack.c.b16 %v2691, %v2688
    %v2767 = vpack.c.b16 %v2695, %v2692
    %v2768 = vpack.c.b16 %v2696, %v2693
    %v2769 = vpack.c.b16 %v2697, %v2694
    %2842 = vmatprep.subr.bf16.mxu0 %v2699
    %2843 = vmatpush1.bf16.msra.mxu0 %v2698
    %2844 = vmatprep.subr.bf16.mxu0 %v2702
    %2845 = vmatpush1.bf16.msra.mxu0 %v2701
    %2846 = vmatprep.subr.bf16.mxu0 %v2705
    %2847 = vmatpush1.bf16.msra.mxu0 %v2704
    %2848 = vmatprep.subr.bf16.mxu0 %v2708
    %2849 = vmatpush1.bf16.msra.mxu0 %v2707
    %2850 = vmatprep.subr.bf16.mxu0 %v2711
    %2851 = vmatpush1.bf16.msra.mxu0 %v2710
    %2852 = vmatprep.subr.bf16.mxu0 %v2714
    %2853 = vmatpush1.bf16.msra.mxu0 %v2713
    %2854 = vmatprep.subr.bf16.mxu0 %v2717
    %2855 = vmatpush1.bf16.msra.mxu0 %v2716
    %2856 = vmatprep.subr.bf16.mxu0 %v2720
    %2857 = vmatpush1.bf16.msra.mxu0 %v2719
    %2858 = vmatprep.subr.bf16.mxu0 %v2723
    %2859 = vmatpush1.bf16.msra.mxu0 %v2722
    %2860 = vmatprep.subr.bf16.mxu0 %v2726
    %2861 = vmatpush1.bf16.msra.mxu0 %v2725
    %2862 = vmatprep.subr.bf16.mxu0 %v2729
    %2863 = vmatpush1.bf16.msra.mxu0 %v2728
    %2864 = vmatprep.subr.bf16.mxu0 %v2732
    %2865 = vmatpush1.bf16.msra.mxu0 %v2731
    %2866 = vmatprep.subr.bf16.mxu0 %v2735
    %2867 = vmatpush1.bf16.msra.mxu0 %v2734
    %2868 = vmatprep.subr.bf16.mxu0 %v2738
    %2869 = vmatpush1.bf16.msra.mxu0 %v2737
    %2870 = vmatprep.subr.bf16.mxu0 %v2741
    %2871 = vmatpush1.bf16.msra.mxu0 %v2740
    %2872 = vmatprep.subr.bf16.mxu0 %v2744
    %2873 = vmatpush1.bf16.msra.mxu0 %v2743
    %2874 = vmatprep.mubr.bf16.mxu0 %v2341
    %2875 = vmatmul.mubr.bf16.gmra.mrb[0].mxu0 %v2340
    %v2876 = vpop.f32.mrb[0].mxu0
    %v2877 = vadd.f32 %v2446, %v2876
    %v2878 = vpop.f32.mrb[0].mxu0
    %v2879 = vadd.f32 %v2450, %v2878
    %v2880 = vpop.f32.mrb[0].mxu0
    %v2881 = vpop.f32.mrb[0].mxu0
    %2882 = vdwg.mxu0
    %2883 = vmatprep.subr.bf16.mxu0 %v2747
    %2884 = vmatpush1.bf16.msra.mxu0 %v2746
    %2885 = vmatprep.subr.bf16.mxu0 %v2750
    %2886 = vmatpush1.bf16.msra.mxu0 %v2749
    %2887 = vmatprep.subr.bf16.mxu0 %v2753
    %2888 = vmatpush1.bf16.msra.mxu0 %v2752
    %2889 = vmatprep.subr.bf16.mxu0 %v2756
    %2890 = vmatpush1.bf16.msra.mxu0 %v2755
    %2891 = vmatprep.subr.bf16.mxu0 %v2759
    %2892 = vmatpush1.bf16.msra.mxu0 %v2758
    %2893 = vmatprep.subr.bf16.mxu0 %v2762
    %2894 = vmatpush1.bf16.msra.mxu0 %v2761
    %2895 = vmatprep.subr.bf16.mxu0 %v2765
    %2896 = vmatpush1.bf16.msra.mxu0 %v2764
    %2897 = vmatprep.subr.bf16.mxu0 %v2768
    %2898 = vmatpush1.bf16.msra.mxu0 %v2767
    %2899 = vmatprep.subr.bf16.mxu0 0
    %2900 = vmatpush1.bf16.msra.mxu0 0
    %2901 = vmatprep.subr.bf16.mxu0 0
    %2902 = vmatpush1.bf16.msra.mxu0 0
    %2903 = vmatprep.subr.bf16.mxu0 0
    %2904 = vmatpush1.bf16.msra.mxu0 0
    %2905 = vmatprep.subr.bf16.mxu0 0
    %2906 = vmatpush1.bf16.msra.mxu0 0
    %2907 = vmatprep.subr.bf16.mxu0 0
    %2908 = vmatpush1.bf16.msra.mxu0 0
    %2909 = vmatprep.subr.bf16.mxu0 0
    %2910 = vmatpush1.bf16.msra.mxu0 0
    %2911 = vmatprep.subr.bf16.mxu0 0
    %2912 = vmatpush1.bf16.msra.mxu0 0
    %2913 = vmatprep.subr.bf16.mxu0 0
    %2914 = vmatpush1.bf16.msra.mxu0 0
    %2915 = vmatprep.mubr.bf16.mxu0 0
    %2916 = vmatmul.mubr.bf16.gmra.mrb[0].mxu0 %v2342
    %v2917 = vpop.f32.mrb[0].mxu0
    %v2918 = vadd.f32 %v2877, %v2917
    %v2919 = vpop.f32.mrb[0].mxu0
    %v2920 = vadd.f32 %v2879, %v2919
    %v2921 = vpop.f32.mrb[0].mxu0
    %v2922 = vpop.f32.mrb[0].mxu0
    %2923 = vdwg.mxu0
    %2924 = vmatprep.subr.bf16.mxu0 0
    %2925 = vmatpush1.bf16.msra.mxu0 %v2700
    %2926 = vmatprep.subr.bf16.mxu0 0
    %2927 = vmatpush1.bf16.msra.mxu0 %v2703
    %2928 = vmatprep.subr.bf16.mxu0 0
    %2929 = vmatpush1.bf16.msra.mxu0 %v2706
    %2930 = vmatprep.subr.bf16.mxu0 0
    %2931 = vmatpush1.bf16.msra.mxu0 %v2709
    %2932 = vmatprep.subr.bf16.mxu0 0
    %2933 = vmatpush1.bf16.msra.mxu0 %v2712
    %2934 = vmatprep.subr.bf16.mxu0 0
    %2935 = vmatpush1.bf16.msra.mxu0 %v2715
    %2936 = vmatprep.subr.bf16.mxu0 0
    %2937 = vmatpush1.bf16.msra.mxu0 %v2718
    %2938 = vmatprep.subr.bf16.mxu0 0
    %2939 = vmatpush1.bf16.msra.mxu0 %v2721
    %2940 = vmatprep.subr.bf16.mxu0 0
    %2941 = vmatpush1.bf16.msra.mxu0 %v2724
    %2942 = vmatprep.subr.bf16.mxu0 0
    %2943 = vmatpush1.bf16.msra.mxu0 %v2727
    %2944 = vmatprep.subr.bf16.mxu0 0
    %2945 = vmatpush1.bf16.msra.mxu0 %v2730
    %2946 = vmatprep.subr.bf16.mxu0 0
    %2947 = vmatpush1.bf16.msra.mxu0 %v2733
    %2948 = vmatprep.subr.bf16.mxu0 0
    %2949 = vmatpush1.bf16.msra.mxu0 %v2736
    %2950 = vmatprep.subr.bf16.mxu0 0
    %2951 = vmatpush1.bf16.msra.mxu0 %v2739
    %2952 = vmatprep.subr.bf16.mxu0 0
    %2953 = vmatpush1.bf16.msra.mxu0 %v2742
    %2954 = vmatprep.subr.bf16.mxu0 0
    %2955 = vmatpush1.bf16.msra.mxu0 %v2745
    %2956 = vmatprep.mubr.bf16.mxu0 %v2341
    %2957 = vmatmul.mubr.bf16.gmra.mrb[0].mxu0 %v2340
    %v2958 = vpop.f32.mrb[0].mxu0
    %v2959 = vadd.f32 %v2454, %v2958
    %v2960 = vpop.f32.mrb[0].mxu0
    %v2961 = vpop.f32.mrb[0].mxu0
    %v2962 = vpop.f32.mrb[0].mxu0
    %2963 = vdwg.mxu0
    %2964 = vmatprep.subr.bf16.mxu0 0
    %2965 = vmatpush1.bf16.msra.mxu0 %v2748
    %2966 = vmatprep.subr.bf16.mxu0 0
    %2967 = vmatpush1.bf16.msra.mxu0 %v2751
    %2968 = vmatprep.subr.bf16.mxu0 0
    %2969 = vmatpush1.bf16.msra.mxu0 %v2754
    %2970 = vmatprep.subr.bf16.mxu0 0
    %2971 = vmatpush1.bf16.msra.mxu0 %v2757
    %2972 = vmatprep.subr.bf16.mxu0 0
    %2973 = vmatpush1.bf16.msra.mxu0 %v2760
    %2974 = vmatprep.subr.bf16.mxu0 0
    %2975 = vmatpush1.bf16.msra.mxu0 %v2763
    %2976 = vmatprep.subr.bf16.mxu0 0
    %2977 = vmatpush1.bf16.msra.mxu0 %v2766
    %2978 = vmatprep.subr.bf16.mxu0 0
    %2979 = vmatpush1.bf16.msra.mxu0 %v2769
    %2980 = vmatprep.subr.bf16.mxu0 0
    %2981 = vmatpush1.bf16.msra.mxu0 0
    %2982 = vmatprep.subr.bf16.mxu0 0
    %2983 = vmatpush1.bf16.msra.mxu0 0
    %2984 = vmatprep.subr.bf16.mxu0 0
    %2985 = vmatpush1.bf16.msra.mxu0 0
    %2986 = vmatprep.subr.bf16.mxu0 0
    %2987 = vmatpush1.bf16.msra.mxu0 0
    %2988 = vmatprep.subr.bf16.mxu0 0
    %2989 = vmatpush1.bf16.msra.mxu0 0
    %2990 = vmatprep.subr.bf16.mxu0 0
    %2991 = vmatpush1.bf16.msra.mxu0 0
    %2992 = vmatprep.subr.bf16.mxu0 0
    %2993 = vmatpush1.bf16.msra.mxu0 0
    %2994 = vmatprep.subr.bf16.mxu0 0
    %2995 = vmatpush1.bf16.msra.mxu0 0
    %2996 = vmatprep.mubr.bf16.mxu0 0
    %2997 = vmatmul.mubr.bf16.gmra.mrb[0].mxu0 %v2342
    %v2998 = vpop.f32.mrb[0].mxu0
    %v2999 = vadd.f32 %v2959, %v2998
    %v3000 = vpop.f32.mrb[0].mxu0
    %v3001 = vpop.f32.mrb[0].mxu0
    %v3002 = vpop.f32.mrb[0].mxu0
    %3003 = vdwg.mxu0
    %v3004 = vadd.f32 %v2918, %v1670
    %v3005 = vadd.f32 %v2920, %v1671
    %v3006 = vadd.f32 %v2999, %v1672
    %v3007 = vmax.f32 %v3004, 0.0
    %v3008 = vmax.f32 %v3005, 0.0
    %v3009 = vmax.f32 %v3006, 0.0
    %v3010 = vpack.c.bf16 %v3007, %v3007
    %v3011 = vpack.c.bf16 %v3008, %v3008
    %v3012 = vpack.c.bf16 %v3009, %v3009
    %s3013 = scalar_lea.vmem [#allocation4], 2304
    %v3014 = vld [vmem:[%s3013] sm:$0xff]
    %v3015 = vld [vmem:[%s3013 + $0x8] sm:$0xf]
    %v3016 = vld [vmem:[%s3013 + $0xc] sm:$0xff]
    %v3017 = vld [vmem:[%s3013 + $0x14] sm:$0xf]
    %v3018 = vld [vmem:[%s3013 + $0x18] sm:$0xff]
    %v3019 = vld [vmem:[%s3013 + $0x20] sm:$0xf]
    %v3020 = vld [vmem:[%s3013 + $0x24] sm:$0xff]
    %v3021 = vld [vmem:[%s3013 + $0x2c] sm:$0xf]
    %v3022 = vld [vmem:[%s3013 + $0x30] sm:$0xff]
    %v3023 = vld [vmem:[%s3013 + $0x38] sm:$0xf]
    %v3024 = vld [vmem:[%s3013 + $0x3c] sm:$0xff]
    %v3025 = vld [vmem:[%s3013 + $0x44] sm:$0xf]
    %v3026 = vld [vmem:[%s3013 + $0x48] sm:$0xff]
    %v3027 = vld [vmem:[%s3013 + $0x50] sm:$0xf]
    %v3028 = vld [vmem:[%s3013 + $0x54] sm:$0xff]
    %v3029 = vld [vmem:[%s3013 + $0x5c] sm:$0xf]
    %v3030 = vld [vmem:[%s3013 + $0x60] sm:$0xff]
    %v3031 = vld [vmem:[%s3013 + $0x68] sm:$0xf]
    %v3032 = vld [vmem:[%s3013 + $0x6c] sm:$0xff]
    %v3033 = vld [vmem:[%s3013 + $0x74] sm:$0xf]
    %v3034 = vld [vmem:[%s3013 + $0x78] sm:$0xff]
    %v3035 = vld [vmem:[%s3013 + $0x80] sm:$0xf]
    %v3036 = vld [vmem:[%s3013 + $0x84] sm:$0xff]
    %v3037 = vld [vmem:[%s3013 + $0x8c] sm:$0xf]
    %v3038 = vld [vmem:[%s3013 + $0x90] sm:$0xff]
    %v3039 = vld [vmem:[%s3013 + $0x98] sm:$0xf]
    %v3040 = vld [vmem:[%s3013 + $0x9c] sm:$0xff]
    %v3041 = vld [vmem:[%s3013 + $0xa4] sm:$0xf]
    %v3042 = vld [vmem:[%s3013 + $0xa8] sm:$0xff]
    %v3043 = vld [vmem:[%s3013 + $0xb0] sm:$0xf]
    %v3044 = vld [vmem:[%s3013 + $0xb4] sm:$0xff]
    %v3045 = vld [vmem:[%s3013 + $0xbc] sm:$0xf]
    %v3046 = vld [vmem:[%s3013 + $0xc0] sm:$0xff]
    %v3047 = vld [vmem:[%s3013 + $0xc8] sm:$0xf]
    %v3048 = vld [vmem:[%s3013 + $0xcc] sm:$0xff]
    %v3049 = vld [vmem:[%s3013 + $0xd4] sm:$0xf]
    %v3050 = vld [vmem:[%s3013 + $0xd8] sm:$0xff]
    %v3051 = vld [vmem:[%s3013 + $0xe0] sm:$0xf]
    %v3052 = vld [vmem:[%s3013 + $0xe4] sm:$0xff]
    %v3053 = vld [vmem:[%s3013 + $0xec] sm:$0xf]
    %v3054 = vld [vmem:[%s3013 + $0xf0] sm:$0xff]
    %v3055 = vld [vmem:[%s3013 + $0xf8] sm:$0xf]
    %v3056 = vld [vmem:[%s3013 + $0xfc] sm:$0xff]
    %v3057 = vld [vmem:[%s3013 + $0x104] sm:$0xf]
    %v3058 = vld [vmem:[%s3013 + $0x108] sm:$0xff]
    %v3059 = vld [vmem:[%s3013 + $0x110] sm:$0xf]
    %v3060 = vld [vmem:[%s3013 + $0x114] sm:$0xff]
    %v3061 = vld [vmem:[%s3013 + $0x11c] sm:$0xf]
    %v3062 = vld [vmem:[%s3013 + $0x120] sm:$0xff]
    %v3063 = vld [vmem:[%s3013 + $0x128] sm:$0xf]
    %v3064 = vld [vmem:[%s3013 + $0x12c] sm:$0xff]
    %v3065 = vld [vmem:[%s3013 + $0x134] sm:$0xf]
    %v3066 = vld [vmem:[%s3013 + $0x138] sm:$0xff]
    %v3067 = vld [vmem:[%s3013 + $0x140] sm:$0xf]
    %v3068 = vld [vmem:[%s3013 + $0x144] sm:$0xff]
    %v3069 = vld [vmem:[%s3013 + $0x14c] sm:$0xf]
    %v3070 = vld [vmem:[%s3013 + $0x150] sm:$0xff]
    %v3071 = vld [vmem:[%s3013 + $0x158] sm:$0xf]
    %v3072 = vld [vmem:[%s3013 + $0x15c] sm:$0xff]
    %v3073 = vld [vmem:[%s3013 + $0x164] sm:$0xf]
    %v3074 = vld [vmem:[%s3013 + $0x168] sm:$0xff]
    %v3075 = vld [vmem:[%s3013 + $0x170] sm:$0xf]
    %v3076 = vld [vmem:[%s3013 + $0x174] sm:$0xff]
    %v3077 = vld [vmem:[%s3013 + $0x17c] sm:$0xf]
    %v3078 = vld [vmem:[%s3013 + $0x180] sm:$0xff]
    %v3079 = vld [vmem:[%s3013 + $0x188] sm:$0xf]
    %v3080 = vld [vmem:[%s3013 + $0x18c] sm:$0xff]
    %v3081 = vld [vmem:[%s3013 + $0x194] sm:$0xf]
    %v3082 = vld [vmem:[%s3013 + $0x198] sm:$0xff]
    %v3083 = vld [vmem:[%s3013 + $0x1a0] sm:$0xf]
    %v3084 = vld [vmem:[%s3013 + $0x1a4] sm:$0xff]
    %v3085 = vld [vmem:[%s3013 + $0x1ac] sm:$0xf]
    %v3086 = vld [vmem:[%s3013 + $0x1b0] sm:$0xff]
    %v3087 = vld [vmem:[%s3013 + $0x1b8] sm:$0xf]
    %v3088 = vld [vmem:[%s3013 + $0x1bc] sm:$0xff]
    %v3089 = vld [vmem:[%s3013 + $0x1c4] sm:$0xf]
    %v3090 = vld [vmem:[%s3013 + $0x1c8] sm:$0xff]
    %v3091 = vld [vmem:[%s3013 + $0x1d0] sm:$0xf]
    %v3092 = vld [vmem:[%s3013 + $0x1d4] sm:$0xff]
    %v3093 = vld [vmem:[%s3013 + $0x1dc] sm:$0xf]
    %v3094 = vld [vmem:[%s3013 + $0x1e0] sm:$0xff]
    %v3095 = vld [vmem:[%s3013 + $0x1e8] sm:$0xf]
    %v3096 = vld [vmem:[%s3013 + $0x1ec] sm:$0xff]
    %v3097 = vld [vmem:[%s3013 + $0x1f4] sm:$0xf]
    %v3098 = vld [vmem:[%s3013 + $0x1f8] sm:$0xff]
    %v3099 = vld [vmem:[%s3013 + $0x200] sm:$0xf]
    %v3100 = vld [vmem:[%s3013 + $0x204] sm:$0xff]
    %v3101 = vld [vmem:[%s3013 + $0x20c] sm:$0xf]
    %v3102 = vld [vmem:[%s3013 + $0x210] sm:$0xff]
    %v3103 = vld [vmem:[%s3013 + $0x218] sm:$0xf]
    %v3104 = vld [vmem:[%s3013 + $0x21c] sm:$0xff]
    %v3105 = vld [vmem:[%s3013 + $0x224] sm:$0xf]
    %v3106 = vld [vmem:[%s3013 + $0x228] sm:$0xff]
    %v3107 = vld [vmem:[%s3013 + $0x230] sm:$0xf]
    %v3108 = vld [vmem:[%s3013 + $0x234] sm:$0xff]
    %v3109 = vld [vmem:[%s3013 + $0x23c] sm:$0xf]
    %s3110 = scalar_lea.vmem [#allocation6], 5
    %v3111 = vld [vmem:[%s3110] ss:$8 sm:$0x7]
    %v3113 = vlaneseq
    %v3114 = vshrl.u32 %v3113, 7
    %v3115 = vsub.s32 0, %v3114
    %v3116 = vrot.slane %v3111, %v3115
    %v3117 = vlaneseq
    %v3118 = vshrl.u32 %v3117, 7
    %v3119 = vsub.s32 1, %v3118
    %v3120 = vrot.slane %v3111, %v3119
    %v3121 = vlaneseq
    %v3122 = vshrl.u32 %v3121, 7
    %v3123 = vsub.s32 2, %v3122
    %v3124 = vrot.slane %v3111, %v3123
    %v3224 = vunpack.c.l.b16 %v3014
    %v3225 = vunpack.c.h.b16 %v3014
    %v3226 = vunpack.c.l.b16 %v3015
    %v3227 = vunpack.c.l.b16 %v3016
    %v3228 = vunpack.c.h.b16 %v3016
    %v3229 = vunpack.c.l.b16 %v3017
    %v3230 = vunpack.c.l.b16 %v3018
    %v3231 = vunpack.c.h.b16 %v3018
    %v3232 = vunpack.c.l.b16 %v3019
    %v3233 = vunpack.c.l.b16 %v3020
    %v3234 = vunpack.c.h.b16 %v3020
    %v3235 = vunpack.c.l.b16 %v3021
    %v3236 = vunpack.c.l.b16 %v3022
    %v3237 = vunpack.c.h.b16 %v3022
    %v3238 = vunpack.c.l.b16 %v3023
    %v3239 = vunpack.c.l.b16 %v3024
    %v3240 = vunpack.c.h.b16 %v3024
    %v3241 = vunpack.c.l.b16 %v3025
    %v3242 = vunpack.c.l.b16 %v3026
    %v3243 = vunpack.c.h.b16 %v3026
    %v3244 = vunpack.c.l.b16 %v3027
    %v3245 = vunpack.c.l.b16 %v3028
    %v3246 = vunpack.c.h.b16 %v3028
    %v3247 = vunpack.c.l.b16 %v3029
    %v3248 = vunpack.c.l.b16 %v3030
    %v3249 = vunpack.c.h.b16 %v3030
    %v3250 = vunpack.c.l.b16 %v3031
    %v3251 = vunpack.c.l.b16 %v3032
    %v3252 = vunpack.c.h.b16 %v3032
    %v3253 = vunpack.c.l.b16 %v3033
    %v3254 = vunpack.c.l.b16 %v3034
    %v3255 = vunpack.c.h.b16 %v3034
    %v3256 = vunpack.c.l.b16 %v3035
    %v3257 = vunpack.c.l.b16 %v3036
    %v3258 = vunpack.c.h.b16 %v3036
    %v3259 = vunpack.c.l.b16 %v3037
    %v3260 = vunpack.c.l.b16 %v3038
    %v3261 = vunpack.c.h.b16 %v3038
    %v3262 = vunpack.c.l.b16 %v3039
    %v3263 = vunpack.c.l.b16 %v3040
    %v3264 = vunpack.c.h.b16 %v3040
    %v3265 = vunpack.c.l.b16 %v3041
    %v3266 = vunpack.c.l.b16 %v3042
    %v3267 = vunpack.c.h.b16 %v3042
    %v3268 = vunpack.c.l.b16 %v3043
    %v3269 = vunpack.c.l.b16 %v3044
    %v3270 = vunpack.c.h.b16 %v3044
    %v3271 = vunpack.c.l.b16 %v3045
    %v3272 = vunpack.c.l.b16 %v3046
    %v3273 = vunpack.c.h.b16 %v3046
    %v3274 = vunpack.c.l.b16 %v3047
    %v3275 = vunpack.c.l.b16 %v3048
    %v3276 = vunpack.c.h.b16 %v3048
    %v3277 = vunpack.c.l.b16 %v3049
    %v3278 = vunpack.c.l.b16 %v3050
    %v3279 = vunpack.c.h.b16 %v3050
    %v3280 = vunpack.c.l.b16 %v3051
    %v3281 = vunpack.c.l.b16 %v3052
    %v3282 = vunpack.c.h.b16 %v3052
    %v3283 = vunpack.c.l.b16 %v3053
    %v3284 = vunpack.c.l.b16 %v3054
    %v3285 = vunpack.c.h.b16 %v3054
    %v3286 = vunpack.c.l.b16 %v3055
    %v3287 = vunpack.c.l.b16 %v3056
    %v3288 = vunpack.c.h.b16 %v3056
    %v3289 = vunpack.c.l.b16 %v3057
    %v3290 = vunpack.c.l.b16 %v3058
    %v3291 = vunpack.c.h.b16 %v3058
    %v3292 = vunpack.c.l.b16 %v3059
    %v3293 = vunpack.c.l.b16 %v3060
    %v3294 = vunpack.c.h.b16 %v3060
    %v3295 = vunpack.c.l.b16 %v3061
    %v3296 = vunpack.c.l.b16 %v3062
    %v3297 = vunpack.c.h.b16 %v3062
    %v3298 = vunpack.c.l.b16 %v3063
    %v3299 = vunpack.c.l.b16 %v3064
    %v3300 = vunpack.c.h.b16 %v3064
    %v3301 = vunpack.c.l.b16 %v3065
    %v3302 = vunpack.c.l.b16 %v3066
    %v3303 = vunpack.c.h.b16 %v3066
    %v3304 = vunpack.c.l.b16 %v3067
    %v3305 = vunpack.c.l.b16 %v3068
    %v3306 = vunpack.c.h.b16 %v3068
    %v3307 = vunpack.c.l.b16 %v3069
    %v3308 = vunpack.c.l.b16 %v3070
    %v3309 = vunpack.c.h.b16 %v3070
    %v3310 = vunpack.c.l.b16 %v3071
    %v3311 = vunpack.c.l.b16 %v3072
    %v3312 = vunpack.c.h.b16 %v3072
    %v3313 = vunpack.c.l.b16 %v3073
    %v3314 = vunpack.c.l.b16 %v3074
    %v3315 = vunpack.c.h.b16 %v3074
    %v3316 = vunpack.c.l.b16 %v3075
    %v3317 = vunpack.c.l.b16 %v3076
    %v3318 = vunpack.c.h.b16 %v3076
    %v3319 = vunpack.c.l.b16 %v3077
    %v3320 = vunpack.c.l.b16 %v3078
    %v3321 = vunpack.c.h.b16 %v3078
    %v3322 = vunpack.c.l.b16 %v3079
    %v3323 = vunpack.c.l.b16 %v3080
    %v3324 = vunpack.c.h.b16 %v3080
    %v3325 = vunpack.c.l.b16 %v3081
    %v3326 = vunpack.c.l.b16 %v3082
    %v3327 = vunpack.c.h.b16 %v3082
    %v3328 = vunpack.c.l.b16 %v3083
    %v3329 = vunpack.c.l.b16 %v3084
    %v3330 = vunpack.c.h.b16 %v3084
    %v3331 = vunpack.c.l.b16 %v3085
    %v3332 = vunpack.c.l.b16 %v3086
    %v3333 = vunpack.c.h.b16 %v3086
    %v3334 = vunpack.c.l.b16 %v3087
    %v3335 = vunpack.c.l.b16 %v3088
    %v3336 = vunpack.c.h.b16 %v3088
    %v3337 = vunpack.c.l.b16 %v3089
    %v3338 = vunpack.c.l.b16 %v3090
    %v3339 = vunpack.c.h.b16 %v3090
    %v3340 = vunpack.c.l.b16 %v3091
    %v3341 = vunpack.c.l.b16 %v3092
    %v3342 = vunpack.c.h.b16 %v3092
    %v3343 = vunpack.c.l.b16 %v3093
    %v3344 = vunpack.c.l.b16 %v3094
    %v3345 = vunpack.c.h.b16 %v3094
    %v3346 = vunpack.c.l.b16 %v3095
    %v3347 = vunpack.c.l.b16 %v3096
    %v3348 = vunpack.c.h.b16 %v3096
    %v3349 = vunpack.c.l.b16 %v3097
    %v3350 = vunpack.c.l.b16 %v3098
    %v3351 = vunpack.c.h.b16 %v3098
    %v3352 = vunpack.c.l.b16 %v3099
    %v3353 = vunpack.c.l.b16 %v3100
    %v3354 = vunpack.c.h.b16 %v3100
    %v3355 = vunpack.c.l.b16 %v3101
    %v3356 = vunpack.c.l.b16 %v3102
    %v3357 = vunpack.c.h.b16 %v3102
    %v3358 = vunpack.c.l.b16 %v3103
    %v3359 = vunpack.c.l.b16 %v3104
    %v3360 = vunpack.c.h.b16 %v3104
    %v3361 = vunpack.c.l.b16 %v3105
    %v3362 = vunpack.c.l.b16 %v3106
    %v3363 = vunpack.c.h.b16 %v3106
    %v3364 = vunpack.c.l.b16 %v3107
    %v3365 = vunpack.c.l.b16 %v3108
    %v3366 = vunpack.c.h.b16 %v3108
    %v3367 = vunpack.c.l.b16 %v3109
    %v3368 = vpack.c.b16 %v3227, %v3224
    %v3369 = vpack.c.b16 %v3228, %v3225
    %v3370 = vpack.c.b16 %v3229, %v3226
    %v3371 = vpack.c.b16 %v3233, %v3230
    %v3372 = vpack.c.b16 %v3234, %v3231
    %v3373 = vpack.c.b16 %v3235, %v3232
    %v3374 = vpack.c.b16 %v3239, %v3236
    %v3375 = vpack.c.b16 %v3240, %v3237
    %v3376 = vpack.c.b16 %v3241, %v3238
    %v3377 = vpack.c.b16 %v3245, %v3242
    %v3378 = vpack.c.b16 %v3246, %v3243
    %v3379 = vpack.c.b16 %v3247, %v3244
    %v3380 = vpack.c.b16 %v3251, %v3248
    %v3381 = vpack.c.b16 %v3252, %v3249
    %v3382 = vpack.c.b16 %v3253, %v3250
    %v3383 = vpack.c.b16 %v3257, %v3254
    %v3384 = vpack.c.b16 %v3258, %v3255
    %v3385 = vpack.c.b16 %v3259, %v3256
    %v3386 = vpack.c.b16 %v3263, %v3260
    %v3387 = vpack.c.b16 %v3264, %v3261
    %v3388 = vpack.c.b16 %v3265, %v3262
    %v3389 = vpack.c.b16 %v3269, %v3266
    %v3390 = vpack.c.b16 %v3270, %v3267
    %v3391 = vpack.c.b16 %v3271, %v3268
    %v3392 = vpack.c.b16 %v3275, %v3272
    %v3393 = vpack.c.b16 %v3276, %v3273
    %v3394 = vpack.c.b16 %v3277, %v3274
    %v3395 = vpack.c.b16 %v3281, %v3278
    %v3396 = vpack.c.b16 %v3282, %v3279
    %v3397 = vpack.c.b16 %v3283, %v3280
    %v3398 = vpack.c.b16 %v3287, %v3284
    %v3399 = vpack.c.b16 %v3288, %v3285
    %v3400 = vpack.c.b16 %v3289, %v3286
    %v3401 = vpack.c.b16 %v3293, %v3290
    %v3402 = vpack.c.b16 %v3294, %v3291
    %v3403 = vpack.c.b16 %v3295, %v3292
    %v3404 = vpack.c.b16 %v3299, %v3296
    %v3405 = vpack.c.b16 %v3300, %v3297
    %v3406 = vpack.c.b16 %v3301, %v3298
    %v3407 = vpack.c.b16 %v3305, %v3302
    %v3408 = vpack.c.b16 %v3306, %v3303
    %v3409 = vpack.c.b16 %v3307, %v3304
    %v3410 = vpack.c.b16 %v3311, %v3308
    %v3411 = vpack.c.b16 %v3312, %v3309
    %v3412 = vpack.c.b16 %v3313, %v3310
    %v3413 = vpack.c.b16 %v3317, %v3314
    %v3414 = vpack.c.b16 %v3318, %v3315
    %v3415 = vpack.c.b16 %v3319, %v3316
    %v3416 = vpack.c.b16 %v3323, %v3320
    %v3417 = vpack.c.b16 %v3324, %v3321
    %v3418 = vpack.c.b16 %v3325, %v3322
    %v3419 = vpack.c.b16 %v3329, %v3326
    %v3420 = vpack.c.b16 %v3330, %v3327
    %v3421 = vpack.c.b16 %v3331, %v3328
    %v3422 = vpack.c.b16 %v3335, %v3332
    %v3423 = vpack.c.b16 %v3336, %v3333
    %v3424 = vpack.c.b16 %v3337, %v3334
    %v3425 = vpack.c.b16 %v3341, %v3338
    %v3426 = vpack.c.b16 %v3342, %v3339
    %v3427 = vpack.c.b16 %v3343, %v3340
    %v3428 = vpack.c.b16 %v3347, %v3344
    %v3429 = vpack.c.b16 %v3348, %v3345
    %v3430 = vpack.c.b16 %v3349, %v3346
    %v3431 = vpack.c.b16 %v3353, %v3350
    %v3432 = vpack.c.b16 %v3354, %v3351
    %v3433 = vpack.c.b16 %v3355, %v3352
    %v3434 = vpack.c.b16 %v3359, %v3356
    %v3435 = vpack.c.b16 %v3360, %v3357
    %v3436 = vpack.c.b16 %v3361, %v3358
    %v3437 = vpack.c.b16 %v3365, %v3362
    %v3438 = vpack.c.b16 %v3366, %v3363
    %v3439 = vpack.c.b16 %v3367, %v3364
    %3512 = vmatprep.subr.bf16.mxu0 %v3369
    %3513 = vmatpush1.bf16.msra.mxu0 %v3368
    %3514 = vmatprep.subr.bf16.mxu0 %v3372
    %3515 = vmatpush1.bf16.msra.mxu0 %v3371
    %3516 = vmatprep.subr.bf16.mxu0 %v3375
    %3517 = vmatpush1.bf16.msra.mxu0 %v3374
    %3518 = vmatprep.subr.bf16.mxu0 %v3378
    %3519 = vmatpush1.bf16.msra.mxu0 %v3377
    %3520 = vmatprep.subr.bf16.mxu0 %v3381
    %3521 = vmatpush1.bf16.msra.mxu0 %v3380
    %3522 = vmatprep.subr.bf16.mxu0 %v3384
    %3523 = vmatpush1.bf16.msra.mxu0 %v3383
    %3524 = vmatprep.subr.bf16.mxu0 %v3387
    %3525 = vmatpush1.bf16.msra.mxu0 %v3386
    %3526 = vmatprep.subr.bf16.mxu0 %v3390
    %3527 = vmatpush1.bf16.msra.mxu0 %v3389
    %3528 = vmatprep.subr.bf16.mxu0 %v3393
    %3529 = vmatpush1.bf16.msra.mxu0 %v3392
    %3530 = vmatprep.subr.bf16.mxu0 %v3396
    %3531 = vmatpush1.bf16.msra.mxu0 %v3395
    %3532 = vmatprep.subr.bf16.mxu0 %v3399
    %3533 = vmatpush1.bf16.msra.mxu0 %v3398
    %3534 = vmatprep.subr.bf16.mxu0 %v3402
    %3535 = vmatpush1.bf16.msra.mxu0 %v3401
    %3536 = vmatprep.subr.bf16.mxu0 %v3405
    %3537 = vmatpush1.bf16.msra.mxu0 %v3404
    %3538 = vmatprep.subr.bf16.mxu0 %v3408
    %3539 = vmatpush1.bf16.msra.mxu0 %v3407
    %3540 = vmatprep.subr.bf16.mxu0 %v3411
    %3541 = vmatpush1.bf16.msra.mxu0 %v3410
    %3542 = vmatprep.subr.bf16.mxu0 %v3414
    %3543 = vmatpush1.bf16.msra.mxu0 %v3413
    %3544 = vmatprep.mubr.bf16.mxu0 %v3011
    %3545 = vmatmul.mubr.bf16.gmra.mrb[0].mxu0 %v3010
    %v3546 = vpop.f32.mrb[0].mxu0
    %v3547 = vadd.f32 %v3116, %v3546
    %v3548 = vpop.f32.mrb[0].mxu0
    %v3549 = vadd.f32 %v3120, %v3548
    %v3550 = vpop.f32.mrb[0].mxu0
    %v3551 = vpop.f32.mrb[0].mxu0
    %3552 = vdwg.mxu0
    %3553 = vmatprep.subr.bf16.mxu0 %v3417
    %3554 = vmatpush1.bf16.msra.mxu0 %v3416
    %3555 = vmatprep.subr.bf16.mxu0 %v3420
    %3556 = vmatpush1.bf16.msra.mxu0 %v3419
    %3557 = vmatprep.subr.bf16.mxu0 %v3423
    %3558 = vmatpush1.bf16.msra.mxu0 %v3422
    %3559 = vmatprep.subr.bf16.mxu0 %v3426
    %3560 = vmatpush1.bf16.msra.mxu0 %v3425
    %3561 = vmatprep.subr.bf16.mxu0 %v3429
    %3562 = vmatpush1.bf16.msra.mxu0 %v3428
    %3563 = vmatprep.subr.bf16.mxu0 %v3432
    %3564 = vmatpush1.bf16.msra.mxu0 %v3431
    %3565 = vmatprep.subr.bf16.mxu0 %v3435
    %3566 = vmatpush1.bf16.msra.mxu0 %v3434
    %3567 = vmatprep.subr.bf16.mxu0 %v3438
    %3568 = vmatpush1.bf16.msra.mxu0 %v3437
    %3569 = vmatprep.subr.bf16.mxu0 0
    %3570 = vmatpush1.bf16.msra.mxu0 0
    %3571 = vmatprep.subr.bf16.mxu0 0
    %3572 = vmatpush1.bf16.msra.mxu0 0
    %3573 = vmatprep.subr.bf16.mxu0 0
    %3574 = vmatpush1.bf16.msra.mxu0 0
    %3575 = vmatprep.subr.bf16.mxu0 0
    %3576 = vmatpush1.bf16.msra.mxu0 0
    %3577 = vmatprep.subr.bf16.mxu0 0
    %3578 = vmatpush1.bf16.msra.mxu0 0
    %3579 = vmatprep.subr.bf16.mxu0 0
    %3580 = vmatpush1.bf16.msra.mxu0 0
    %3581 = vmatprep.subr.bf16.mxu0 0
    %3582 = vmatpush1.bf16.msra.mxu0 0
    %3583 = vmatprep.subr.bf16.mxu0 0
    %3584 = vmatpush1.bf16.msra.mxu0 0
    %3585 = vmatprep.mubr.bf16.mxu0 0
    %3586 = vmatmul.mubr.bf16.gmra.mrb[0].mxu0 %v3012
    %v3587 = vpop.f32.mrb[0].mxu0
    %v3588 = vadd.f32 %v3547, %v3587
    %v3589 = vpop.f32.mrb[0].mxu0
    %v3590 = vadd.f32 %v3549, %v3589
    %v3591 = vpop.f32.mrb[0].mxu0
    %v3592 = vpop.f32.mrb[0].mxu0
    %3593 = vdwg.mxu0
    %3594 = vmatprep.subr.bf16.mxu0 0
    %3595 = vmatpush1.bf16.msra.mxu0 %v3370
    %3596 = vmatprep.subr.bf16.mxu0 0
    %3597 = vmatpush1.bf16.msra.mxu0 %v3373
    %3598 = vmatprep.subr.bf16.mxu0 0
    %3599 = vmatpush1.bf16.msra.mxu0 %v3376
    %3600 = vmatprep.subr.bf16.mxu0 0
    %3601 = vmatpush1.bf16.msra.mxu0 %v3379
    %3602 = vmatprep.subr.bf16.mxu0 0
    %3603 = vmatpush1.bf16.msra.mxu0 %v3382
    %3604 = vmatprep.subr.bf16.mxu0 0
    %3605 = vmatpush1.bf16.msra.mxu0 %v3385
    %3606 = vmatprep.subr.bf16.mxu0 0
    %3607 = vmatpush1.bf16.msra.mxu0 %v3388
    %3608 = vmatprep.subr.bf16.mxu0 0
    %3609 = vmatpush1.bf16.msra.mxu0 %v3391
    %3610 = vmatprep.subr.bf16.mxu0 0
    %3611 = vmatpush1.bf16.msra.mxu0 %v3394
    %3612 = vmatprep.subr.bf16.mxu0 0
    %3613 = vmatpush1.bf16.msra.mxu0 %v3397
    %3614 = vmatprep.subr.bf16.mxu0 0
    %3615 = vmatpush1.bf16.msra.mxu0 %v3400
    %3616 = vmatprep.subr.bf16.mxu0 0
    %3617 = vmatpush1.bf16.msra.mxu0 %v3403
    %3618 = vmatprep.subr.bf16.mxu0 0
    %3619 = vmatpush1.bf16.msra.mxu0 %v3406
    %3620 = vmatprep.subr.bf16.mxu0 0
    %3621 = vmatpush1.bf16.msra.mxu0 %v3409
    %3622 = vmatprep.subr.bf16.mxu0 0
    %3623 = vmatpush1.bf16.msra.mxu0 %v3412
    %3624 = vmatprep.subr.bf16.mxu0 0
    %3625 = vmatpush1.bf16.msra.mxu0 %v3415
    %3626 = vmatprep.mubr.bf16.mxu0 %v3011
    %3627 = vmatmul.mubr.bf16.gmra.mrb[0].mxu0 %v3010
    %v3628 = vpop.f32.mrb[0].mxu0
    %v3629 = vadd.f32 %v3124, %v3628
    %v3630 = vpop.f32.mrb[0].mxu0
    %v3631 = vpop.f32.mrb[0].mxu0
    %v3632 = vpop.f32.mrb[0].mxu0
    %3633 = vdwg.mxu0
    %3634 = vmatprep.subr.bf16.mxu0 0
    %3635 = vmatpush1.bf16.msra.mxu0 %v3418
    %3636 = vmatprep.subr.bf16.mxu0 0
    %3637 = vmatpush1.bf16.msra.mxu0 %v3421
    %3638 = vmatprep.subr.bf16.mxu0 0
    %3639 = vmatpush1.bf16.msra.mxu0 %v3424
    %3640 = vmatprep.subr.bf16.mxu0 0
    %3641 = vmatpush1.bf16.msra.mxu0 %v3427
    %3642 = vmatprep.subr.bf16.mxu0 0
    %3643 = vmatpush1.bf16.msra.mxu0 %v3430
    %3644 = vmatprep.subr.bf16.mxu0 0
    %3645 = vmatpush1.bf16.msra.mxu0 %v3433
    %3646 = vmatprep.subr.bf16.mxu0 0
    %3647 = vmatpush1.bf16.msra.mxu0 %v3436
    %3648 = vmatprep.subr.bf16.mxu0 0
    %3649 = vmatpush1.bf16.msra.mxu0 %v3439
    %3650 = vmatprep.subr.bf16.mxu0 0
    %3651 = vmatpush1.bf16.msra.mxu0 0
    %3652 = vmatprep.subr.bf16.mxu0 0
    %3653 = vmatpush1.bf16.msra.mxu0 0
    %3654 = vmatprep.subr.bf16.mxu0 0
    %3655 = vmatpush1.bf16.msra.mxu0 0
    %3656 = vmatprep.subr.bf16.mxu0 0
    %3657 = vmatpush1.bf16.msra.mxu0 0
    %3658 = vmatprep.subr.bf16.mxu0 0
    %3659 = vmatpush1.bf16.msra.mxu0 0
    %3660 = vmatprep.subr.bf16.mxu0 0
    %3661 = vmatpush1.bf16.msra.mxu0 0
    %3662 = vmatprep.subr.bf16.mxu0 0
    %3663 = vmatpush1.bf16.msra.mxu0 0
    %3664 = vmatprep.subr.bf16.mxu0 0
    %3665 = vmatpush1.bf16.msra.mxu0 0
    %3666 = vmatprep.mubr.bf16.mxu0 0
    %3667 = vmatmul.mubr.bf16.gmra.mrb[0].mxu0 %v3012
    %v3668 = vpop.f32.mrb[0].mxu0
    %v3669 = vadd.f32 %v3629, %v3668
    %v3670 = vpop.f32.mrb[0].mxu0
    %v3671 = vpop.f32.mrb[0].mxu0
    %v3672 = vpop.f32.mrb[0].mxu0
    %3673 = vdwg.mxu0
    %v3674 = vmax.f32 %v3588, 0.0
    %v3675 = vmax.f32 %v3590, 0.0
    %v3676 = vmax.f32 %v3669, 0.0
    %v3677 = vpack.c.bf16 %v3674, %v3674
    %v3678 = vpack.c.bf16 %v3675, %v3675
    %v3679 = vpack.c.bf16 %v3676, %v3676
    %v3680 = vld [vmem:[#allocation7] sm:$0xf]
    %v3681 = vld [vmem:[#allocation7 + $0x4] sm:$0xf]
    %v3682 = vld [vmem:[#allocation7 + $0x8] sm:$0xf]
    %v3683 = vld [vmem:[#allocation7 + $0xc] sm:$0xf]
    %v3684 = vld [vmem:[#allocation7 + $0x10] sm:$0xf]
    %v3685 = vld [vmem:[#allocation7 + $0x14] sm:$0xf]
    %v3686 = vld [vmem:[#allocation7 + $0x18] sm:$0xf]
    %v3687 = vld [vmem:[#allocation7 + $0x1c] sm:$0xf]
    %v3688 = vld [vmem:[#allocation7 + $0x20] sm:$0xf]
    %v3689 = vld [vmem:[#allocation7 + $0x24] sm:$0xf]
    %v3690 = vld [vmem:[#allocation7 + $0x28] sm:$0xf]
    %v3691 = vld [vmem:[#allocation7 + $0x2c] sm:$0xf]
    %v3692 = vld [vmem:[#allocation7 + $0x30] sm:$0xf]
    %v3693 = vld [vmem:[#allocation7 + $0x34] sm:$0xf]
    %v3694 = vld [vmem:[#allocation7 + $0x38] sm:$0xf]
    %v3695 = vld [vmem:[#allocation7 + $0x3c] sm:$0xf]
    %v3696 = vld [vmem:[#allocation7 + $0x40] sm:$0xf]
    %v3697 = vld [vmem:[#allocation7 + $0x44] sm:$0xf]
    %v3698 = vld [vmem:[#allocation7 + $0x48] sm:$0xf]
    %v3699 = vld [vmem:[#allocation7 + $0x4c] sm:$0xf]
    %v3700 = vld [vmem:[#allocation7 + $0x50] sm:$0xf]
    %v3701 = vld [vmem:[#allocation7 + $0x54] sm:$0xf]
    %v3702 = vld [vmem:[#allocation7 + $0x58] sm:$0xf]
    %v3703 = vld [vmem:[#allocation7 + $0x5c] sm:$0xf]
    %v3704 = vld [vmem:[#allocation7 + $0x60] sm:$0xf]
    %v3705 = vld [vmem:[#allocation7 + $0x64] sm:$0xf]
    %v3706 = vld [vmem:[#allocation7 + $0x68] sm:$0xf]
    %v3707 = vld [vmem:[#allocation7 + $0x6c] sm:$0xf]
    %v3708 = vld [vmem:[#allocation7 + $0x70] sm:$0xf]
    %v3709 = vld [vmem:[#allocation7 + $0x74] sm:$0xf]
    %v3710 = vld [vmem:[#allocation7 + $0x78] sm:$0xf]
    %v3711 = vld [vmem:[#allocation7 + $0x7c] sm:$0xf]
    %v3712 = vld [vmem:[#allocation7 + $0x80] sm:$0xf]
    %v3713 = vld [vmem:[#allocation7 + $0x84] sm:$0xf]
    %v3714 = vld [vmem:[#allocation7 + $0x88] sm:$0xf]
    %v3715 = vld [vmem:[#allocation7 + $0x8c] sm:$0xf]
    %v3716 = vld [vmem:[#allocation7 + $0x90] sm:$0xf]
    %v3717 = vld [vmem:[#allocation7 + $0x94] sm:$0xf]
    %v3718 = vld [vmem:[#allocation7 + $0x98] sm:$0xf]
    %v3719 = vld [vmem:[#allocation7 + $0x9c] sm:$0xf]
    %v3720 = vld [vmem:[#allocation7 + $0xa0] sm:$0xf]
    %v3721 = vld [vmem:[#allocation7 + $0xa4] sm:$0xf]
    %v3722 = vld [vmem:[#allocation7 + $0xa8] sm:$0xf]
    %v3723 = vld [vmem:[#allocation7 + $0xac] sm:$0xf]
    %v3724 = vld [vmem:[#allocation7 + $0xb0] sm:$0xf]
    %v3725 = vld [vmem:[#allocation7 + $0xb4] sm:$0xf]
    %v3726 = vld [vmem:[#allocation7 + $0xb8] sm:$0xf]
    %v3727 = vld [vmem:[#allocation7 + $0xbc] sm:$0xf]
    %v3728 = vld [vmem:[#allocation6 + $0x6] ss:$0 sm:$0xff]
    %v3777 = vunpack.c.l.b16 %v3680
    %v3778 = vunpack.c.l.b16 %v3681
    %v3779 = vunpack.c.l.b16 %v3682
    %v3780 = vunpack.c.l.b16 %v3683
    %v3781 = vunpack.c.l.b16 %v3684
    %v3782 = vunpack.c.l.b16 %v3685
    %v3783 = vunpack.c.l.b16 %v3686
    %v3784 = vunpack.c.l.b16 %v3687
    %v3785 = vunpack.c.l.b16 %v3688
    %v3786 = vunpack.c.l.b16 %v3689
    %v3787 = vunpack.c.l.b16 %v3690
    %v3788 = vunpack.c.l.b16 %v3691
    %v3789 = vunpack.c.l.b16 %v3692
    %v3790 = vunpack.c.l.b16 %v3693
    %v3791 = vunpack.c.l.b16 %v3694
    %v3792 = vunpack.c.l.b16 %v3695
    %v3793 = vunpack.c.l.b16 %v3696
    %v3794 = vunpack.c.l.b16 %v3697
    %v3795 = vunpack.c.l.b16 %v3698
    %v3796 = vunpack.c.l.b16 %v3699
    %v3797 = vunpack.c.l.b16 %v3700
    %v3798 = vunpack.c.l.b16 %v3701
    %v3799 = vunpack.c.l.b16 %v3702
    %v3800 = vunpack.c.l.b16 %v3703
    %v3801 = vunpack.c.l.b16 %v3704
    %v3802 = vunpack.c.l.b16 %v3705
    %v3803 = vunpack.c.l.b16 %v3706
    %v3804 = vunpack.c.l.b16 %v3707
    %v3805 = vunpack.c.l.b16 %v3708
    %v3806 = vunpack.c.l.b16 %v3709
    %v3807 = vunpack.c.l.b16 %v3710
    %v3808 = vunpack.c.l.b16 %v3711
    %v3809 = vunpack.c.l.b16 %v3712
    %v3810 = vunpack.c.l.b16 %v3713
    %v3811 = vunpack.c.l.b16 %v3714
    %v3812 = vunpack.c.l.b16 %v3715
    %v3813 = vunpack.c.l.b16 %v3716
    %v3814 = vunpack.c.l.b16 %v3717
    %v3815 = vunpack.c.l.b16 %v3718
    %v3816 = vunpack.c.l.b16 %v3719
    %v3817 = vunpack.c.l.b16 %v3720
    %v3818 = vunpack.c.l.b16 %v3721
    %v3819 = vunpack.c.l.b16 %v3722
    %v3820 = vunpack.c.l.b16 %v3723
    %v3821 = vunpack.c.l.b16 %v3724
    %v3822 = vunpack.c.l.b16 %v3725
    %v3823 = vunpack.c.l.b16 %v3726
    %v3824 = vunpack.c.l.b16 %v3727
    %v3825 = vpack.c.b16 %v3778, %v3777
    %v3826 = vpack.c.b16 %v3780, %v3779
    %v3827 = vpack.c.b16 %v3782, %v3781
    %v3828 = vpack.c.b16 %v3784, %v3783
    %v3829 = vpack.c.b16 %v3786, %v3785
    %v3830 = vpack.c.b16 %v3788, %v3787
    %v3831 = vpack.c.b16 %v3790, %v3789
    %v3832 = vpack.c.b16 %v3792, %v3791
    %v3833 = vpack.c.b16 %v3794, %v3793
    %v3834 = vpack.c.b16 %v3796, %v3795
    %v3835 = vpack.c.b16 %v3798, %v3797
    %v3836 = vpack.c.b16 %v3800, %v3799
    %v3837 = vpack.c.b16 %v3802, %v3801
    %v3838 = vpack.c.b16 %v3804, %v3803
    %v3839 = vpack.c.b16 %v3806, %v3805
    %v3840 = vpack.c.b16 %v3808, %v3807
    %v3841 = vpack.c.b16 %v3810, %v3809
    %v3842 = vpack.c.b16 %v3812, %v3811
    %v3843 = vpack.c.b16 %v3814, %v3813
    %v3844 = vpack.c.b16 %v3816, %v3815
    %v3845 = vpack.c.b16 %v3818, %v3817
    %v3846 = vpack.c.b16 %v3820, %v3819
    %v3847 = vpack.c.b16 %v3822, %v3821
    %v3848 = vpack.c.b16 %v3824, %v3823
    %3873 = vmatprep.subr.bf16.mxu0 0
    %3874 = vmatpush1.bf16.msra.mxu0 %v3825
    %3875 = vmatprep.subr.bf16.mxu0 0
    %3876 = vmatpush1.bf16.msra.mxu0 %v3826
    %3877 = vmatprep.subr.bf16.mxu0 0
    %3878 = vmatpush1.bf16.msra.mxu0 %v3827
    %3879 = vmatprep.subr.bf16.mxu0 0
    %3880 = vmatpush1.bf16.msra.mxu0 %v3828
    %3881 = vmatprep.subr.bf16.mxu0 0
    %3882 = vmatpush1.bf16.msra.mxu0 %v3829
    %3883 = vmatprep.subr.bf16.mxu0 0
    %3884 = vmatpush1.bf16.msra.mxu0 %v3830
    %3885 = vmatprep.subr.bf16.mxu0 0
    %3886 = vmatpush1.bf16.msra.mxu0 %v3831
    %3887 = vmatprep.subr.bf16.mxu0 0
    %3888 = vmatpush1.bf16.msra.mxu0 %v3832
    %3889 = vmatprep.subr.bf16.mxu0 0
    %3890 = vmatpush1.bf16.msra.mxu0 %v3833
    %3891 = vmatprep.subr.bf16.mxu0 0
    %3892 = vmatpush1.bf16.msra.mxu0 %v3834
    %3893 = vmatprep.subr.bf16.mxu0 0
    %3894 = vmatpush1.bf16.msra.mxu0 %v3835
    %3895 = vmatprep.subr.bf16.mxu0 0
    %3896 = vmatpush1.bf16.msra.mxu0 %v3836
    %3897 = vmatprep.subr.bf16.mxu0 0
    %3898 = vmatpush1.bf16.msra.mxu0 %v3837
    %3899 = vmatprep.subr.bf16.mxu0 0
    %3900 = vmatpush1.bf16.msra.mxu0 %v3838
    %3901 = vmatprep.subr.bf16.mxu0 0
    %3902 = vmatpush1.bf16.msra.mxu0 %v3839
    %3903 = vmatprep.subr.bf16.mxu0 0
    %3904 = vmatpush1.bf16.msra.mxu0 %v3840
    %3905 = vmatprep.mubr.bf16.mxu0 %v3678
    %3906 = vmatmul.mubr.bf16.gmra.mrb[0].mxu0 %v3677
    %v3907 = vpop.f32.mrb[0].mxu0
    %v3908 = vadd.f32 %v3728, %v3907
    %v3909 = vpop.f32.mrb[0].mxu0
    %v3910 = vpop.f32.mrb[0].mxu0
    %v3911 = vpop.f32.mrb[0].mxu0
    %3912 = vdwg.mxu0
    %3913 = vmatprep.subr.bf16.mxu0 0
    %3914 = vmatpush1.bf16.msra.mxu0 %v3841
    %3915 = vmatprep.subr.bf16.mxu0 0
    %3916 = vmatpush1.bf16.msra.mxu0 %v3842
    %3917 = vmatprep.subr.bf16.mxu0 0
    %3918 = vmatpush1.bf16.msra.mxu0 %v3843
    %3919 = vmatprep.subr.bf16.mxu0 0
    %3920 = vmatpush1.bf16.msra.mxu0 %v3844
    %3921 = vmatprep.subr.bf16.mxu0 0
    %3922 = vmatpush1.bf16.msra.mxu0 %v3845
    %3923 = vmatprep.subr.bf16.mxu0 0
    %3924 = vmatpush1.bf16.msra.mxu0 %v3846
    %3925 = vmatprep.subr.bf16.mxu0 0
    %3926 = vmatpush1.bf16.msra.mxu0 %v3847
    %3927 = vmatprep.subr.bf16.mxu0 0
    %3928 = vmatpush1.bf16.msra.mxu0 %v3848
    %3929 = vmatprep.subr.bf16.mxu0 0
    %3930 = vmatpush1.bf16.msra.mxu0 0
    %3931 = vmatprep.subr.bf16.mxu0 0
    %3932 = vmatpush1.bf16.msra.mxu0 0
    %3933 = vmatprep.subr.bf16.mxu0 0
    %3934 = vmatpush1.bf16.msra.mxu0 0
    %3935 = vmatprep.subr.bf16.mxu0 0
    %3936 = vmatpush1.bf16.msra.mxu0 0
    %3937 = vmatprep.subr.bf16.mxu0 0
    %3938 = vmatpush1.bf16.msra.mxu0 0
    %3939 = vmatprep.subr.bf16.mxu0 0
    %3940 = vmatpush1.bf16.msra.mxu0 0
    %3941 = vmatprep.subr.bf16.mxu0 0
    %3942 = vmatpush1.bf16.msra.mxu0 0
    %3943 = vmatprep.subr.bf16.mxu0 0
    %3944 = vmatpush1.bf16.msra.mxu0 0
    %3945 = vmatprep.mubr.bf16.mxu0 0
    %3946 = vmatmul.mubr.bf16.gmra.mrb[0].mxu0 %v3679
    %v3947 = vpop.f32.mrb[0].mxu0
    %v3948 = vadd.f32 %v3908, %v3947
    %v3949 = vpop.f32.mrb[0].mxu0
    %v3950 = vpop.f32.mrb[0].mxu0
    %v3951 = vpop.f32.mrb[0].mxu0
    %3952 = vdwg.mxu0
    %3953 = vst [vmem:[%s5] sm:$0xff] %v3948
    // Predicated region
    $region38: #{resnet_forward.1} parent=1 // pred_check
      _
    $region39: #{resnet_forward.1} parent=1 // pred_check_branch
      %3955 = sbr.rel (0) target = $region41
    $region40: #{resnet_forward.1} parent=1 // pred_region
      _
    $region41: #{resnet_forward.1} parent=1 // pred_fallthru
      _
    // Predicated region
    $region42: #{resnet_forward.1} parent=1 // pred_check
      _
    $region43: #{resnet_forward.1} parent=1 // pred_check_branch
      %3957 = sbr.rel (0) target = $region45
    $region44: #{resnet_forward.1} parent=1 // pred_region
      _
    $region45: #{resnet_forward.1} parent=1 // pred_fallthru
      _
    %3958 = vsyncpa [#allocation3], 1
    %3959 = vsyncpa [#allocation5], 1
    %3960 = vsyncpa [#allocation8], 1

</llo_original>
